<compile_context>
chip_gen: v7x
topology: tpu7x:2x2x1
jax: 0.10.0
libtpu: 0.0.40
codegen_flags: <defaults>
</compile_context>

<pallas_src>
import jax
import jax.numpy as jnp
from jax.experimental import pallas as pl
from jax.experimental.pallas import tpu as pltpu

# ---------------- model hyper-parameters (small, consistent with the module) ----------
VOCAB_SIZE = 40
EMBED_SIZE = 32          # != vocab_size  -> nn.Embedding branch
HIDDEN_SIZE = 32
NUM_LAYERS = 3
BATCH = 2
SEQ = 8

_VMEM = pl.BlockSpec(memory_space=pltpu.MemorySpace.VMEM)


# ---------------------------- packed parameter layout ---------------------------------
def _round8(n):
    return ((n + 7) // 8) * 8


_GATES = 4 * HIDDEN_SIZE                       # 128 lanes: i|f|g|o
_PACK_W = max(_GATES, VOCAB_SIZE)              # packed slab width (lanes)


def _make_layout():
    off, r = {}, 0

    def add(name, rows):
        nonlocal r
        off[name] = r
        r += _round8(rows)

    add("w_tok0", VOCAB_SIZE)                  # embed @ Wih0^T            (V, 4H)
    add("whh0", HIDDEN_SIZE)                   # Whh0^T                    (H, 4H)
    for l in range(1, NUM_LAYERS):
        add(f"wcat{l}", 2 * HIDDEN_SIZE)       # [[Wih_l^T],[Whh_l^T]]     (2H, 4H)
    for l in range(NUM_LAYERS):
        add(f"b{l}", 1)                        # bih + bhh                 (1, 4H)
    add("wv", HIDDEN_SIZE)                     # dist.weight^T             (H, V)
    add("bv", 1)                               # dist.bias                 (1, V)
    return off, r


_OFF, _PACK_ROWS = _make_layout()              # all offsets are multiples of 8


# ---------------------------- small int helpers (power-of-two fast path) --------------
def _imod(x, m):
    if m & (m - 1) == 0:
        return jnp.bitwise_and(x, m - 1)
    return x % m


def _idiv(x, m):
    if m & (m - 1) == 0:
        return jnp.right_shift(x, int(m).bit_length() - 1)
    return x // m


# ---------------------------- fused Pallas kernel --------------------------------------
def _fused_rnnlm_kernel(tok_ref, p_ref, hc0_ref, out_ref, hcT_ref):
    """Whole forward pass, VMEM-resident, wavefront-scheduled recurrence.

    tok_ref:  (N*T, 1) int32   batch-major flattened token ids (row n*T + t)
    p_ref:    (_PACK_ROWS, _PACK_W) f32 packed parameters (see _make_layout)
    hc0_ref:  (2, L, N, H)     initial (h, c)
    out_ref:  (N*T, V)         batch-major flattened logits (row n*T + t)
    hcT_ref:  (2, L, N, H)     final (h, c)
    Gate order follows PyTorch nn.LSTM: i, f, g, o.
    """
    NT = tok_ref.shape[0]
    _, L, N, H = hc0_ref.shape
    T = NT // N
    G = 4 * H
    V = out_ref.shape[1]

    # ---- unpack parameter slab with static, 8-aligned row offsets -------------------
    def blk(name, rows, cols):
        r = _OFF[name]
        return p_ref[r:r + rows, 0:cols]

    w_tok0 = blk("w_tok0", V, G)                       # (V, 4H)
    whh0 = blk("whh0", H, G)                           # (H, 4H)
    wcat = [None] + [blk(f"wcat{l}", 2 * H, G) for l in range(1, L)]
    bias = [blk(f"b{l}", 1, G) for l in range(L)]
    wv = blk("wv", H, V)                               # (H, V)
    bv = blk("bv", 1, V)                               # (1, V)

    # ---- embedding lookup + layer-0 input projection folded into ONE matmul ---------
    tok = tok_ref[...]                                                   # (NT, 1) int32
    iota_v = jax.lax.broadcasted_iota(jnp.int32, (NT, V), 1)
    onehot = jnp.where(iota_v == tok, 1.0, 0.0)                          # (NT, V) f32
    xw0_bm = jnp.dot(onehot, w_tok0,
                     preferred_element_type=jnp.float32) + bias[0]       # (NT, 4H) bm

    # ---- in-kernel batch-major <-> time-major permutation matrices (exact 0/1) ------
    row = jax.lax.broadcasted_iota(jnp.int32, (NT, NT), 0)
    col = jax.lax.broadcasted_iota(jnp.int32, (NT, NT), 1)
    # time-major row r = t*N + n   picks batch-major col c = n*T + t
    ptm = jnp.where(col == _imod(row, N) * T + _idiv(row, N), 1.0, 0.0)
    # batch-major row r = n*T + t  picks time-major col c = t*N + n
    pbm = jnp.where(col == _imod(row, T) * N + _idiv(row, T), 1.0, 0.0)

    xw0 = jnp.dot(ptm, xw0_bm, preferred_element_type=jnp.float32)       # (NT, 4H) tm
    # embed_drop: identity in eval mode.

    # ---- wavefront recurrence: T + L - 1 waves, up to L independent cells per wave ---
    h = [hc0_ref[0, l] for l in range(L)]              # each (N, H)
    c = [hc0_ref[1, l] for l in range(L)]
    xin = [None] * L                                   # xin[l]: layer l-1 output at time t
    ys = []                                            # final-layer outputs, time order

    for w in range(T + L - 1):
        # Descending layer order so each consumer reads the previous wave's producer
        # value before it is overwritten within this wave.
        for l in reversed(range(L)):
            t = w - l
            if t < 0 or t >= T:
                continue
            if l == 0:
                # Hoisted/folded input path: only h @ Whh0 remains on the serial path.
                gates = xw0[t * N:(t + 1) * N, :] + jnp.dot(
                    h[0], whh0, preferred_element_type=jnp.float32)      # (N, 4H)
            else:
                # Single fused dot per cell: [x_t | h_{t-1}] @ [[Wih],[Whh]].
                xh = jnp.concatenate([xin[l], h[l]], axis=1)             # (N, 2H)
                gates = jnp.dot(xh, wcat[l],
                                preferred_element_type=jnp.float32) + bias[l]
            sg = jax.nn.sigmoid(gates)                 # full-vreg EUP op
            th = jnp.tanh(gates)                       # full-vreg EUP op
            i_g = sg[:, 0 * H:1 * H]
            f_g = sg[:, 1 * H:2 * H]
            g_g = th[:, 2 * H:3 * H]
            o_g = sg[:, 3 * H:4 * H]
            c_new = f_g * c[l] + i_g * g_g
            h_new = o_g * jnp.tanh(c_new)
            h[l] = h_new
            c[l] = c_new
            if l + 1 < L:
                xin[l + 1] = h_new                     # input for layer l+1 next wave
            else:
                ys.append(h_new)                       # final-layer output at time t
            # inter-layer dropout (PyTorchRNN dropout=0.2) is identity in eval mode.

    # ---- head: reorder to batch-major with a tiny permutation matmul, then project ---
    # pred_drop: identity in eval mode.
    y_tm = jnp.concatenate(ys, axis=0)                                   # (NT, H) tm
    y_bm = jnp.dot(pbm, y_tm, preferred_element_type=jnp.float32)        # (NT, H) bm
    out_ref[...] = jnp.dot(y_bm, wv, preferred_element_type=jnp.float32) + bv

    for l in range(L):
        hcT_ref[0, l] = h[l]
        hcT_ref[1, l] = c[l]


# ---------------------------- parameter construction ----------------------------------
def init_params(key):
    """Deterministic parameters matching TorchRNNLM.__init__ / init_weights shapes."""
    keys = jax.random.split(key, 2 + 4 * NUM_LAYERS)
    initrange = 0.1
    params = {
        # nn.Embedding(vocab_size, embed_size), uniform(-0.1, 0.1)
        "embed": jax.random.uniform(keys[0], (VOCAB_SIZE, EMBED_SIZE),
                                    jnp.float32, -initrange, initrange),
        # nn.Linear(hidden_size, vocab_size): weight (V, H), bias zeros
        "dist_w": jax.random.uniform(keys[1], (VOCAB_SIZE, HIDDEN_SIZE),
                                     jnp.float32, -initrange, initrange),
        "dist_b": jnp.zeros((VOCAB_SIZE,), jnp.float32),
        "lstm": [],
    }
    stdv = 1.0 / jnp.sqrt(HIDDEN_SIZE)
    for l in range(NUM_LAYERS):
        din = EMBED_SIZE if l == 0 else HIDDEN_SIZE
        k = keys[2 + 4 * l: 2 + 4 * (l + 1)]
        wih = jax.random.uniform(k[0], (4 * HIDDEN_SIZE, din), jnp.float32, -stdv, stdv)
        whh = jax.random.uniform(k[1], (4 * HIDDEN_SIZE, HIDDEN_SIZE), jnp.float32,
                                 -stdv, stdv)
        bih = jax.random.uniform(k[2], (4 * HIDDEN_SIZE,), jnp.float32, -stdv, stdv)
        bhh = jax.random.uniform(k[3], (4 * HIDDEN_SIZE,), jnp.float32, -stdv, stdv)
        params["lstm"].append({"wih": wih, "whh": whh, "bih": bih, "bhh": bhh})
    return params


def prepare_params(params):
    """One-time layout prep: transposes, bias fusion, embedding folded into layer-0 input
    projection, and everything packed into a single f32 slab (one DMA into the kernel)."""
    blocks = {
        # embed (V,E) @ Wih0^T (E,4H) -> (V,4H): token id -> layer-0 gate contribution
        "w_tok0": jnp.dot(params["embed"].astype(jnp.float32),
                          params["lstm"][0]["wih"].T.astype(jnp.float32),
                          precision=jax.lax.Precision.HIGHEST),
        "whh0": params["lstm"][0]["whh"].T,
        "wv": params["dist_w"].T,                       # (H, V)
        "bv": params["dist_b"].reshape(1, -1),
    }
    for l in range(NUM_LAYERS):
        lw = params["lstm"][l]
        blocks[f"b{l}"] = (lw["bih"] + lw["bhh"]).reshape(1, -1)
        if l > 0:
            blocks[f"wcat{l}"] = jnp.concatenate([lw["wih"].T, lw["whh"].T], axis=0)

    buf = jnp.zeros((_PACK_ROWS, _PACK_W), jnp.float32)
    for name, blk in blocks.items():
        blk = blk.astype(jnp.float32)
        r, c = blk.shape
        buf = buf.at[_OFF[name]:_OFF[name] + r, :c].set(blk)
    return {"packed": buf}


# ---------------------------- forward (wrapper = thin glue only) -----------------------
@jax.jit
def rnn_lm_forward(prep, token, h0=None, c0=None):
    """token: (N, T) int32 -> (logits (N, T, V), (h (L, N, H), c (L, N, H)))"""
    N, T = token.shape
    if h0 is None or c0 is None:
        hc0 = jnp.zeros((2, NUM_LAYERS, N, HIDDEN_SIZE), jnp.float32)
    else:
        hc0 = jnp.stack([h0, c0]).astype(jnp.float32)

    tok_flat = token.astype(jnp.int32).reshape(N * T, 1)      # batch-major, free reshape

    out_flat, hcT = pl.pallas_call(
        _fused_rnnlm_kernel,
        out_shape=(
            jax.ShapeDtypeStruct((N * T, VOCAB_SIZE), jnp.float32),
            jax.ShapeDtypeStruct((2, NUM_LAYERS, N, HIDDEN_SIZE), jnp.float32),
        ),
        in_specs=[_VMEM, _VMEM, _VMEM],
        out_specs=(_VMEM, _VMEM),
    )(tok_flat, prep["packed"], hc0)

    logits = out_flat.reshape(N, T, VOCAB_SIZE)               # free metadata reshape
    return logits, (hcT[0], hcT[1])


# ---------------------------- pure-JAX reference for validation -----------------------
def _reference_forward(params, token):
    N, T = token.shape
    emb = jnp.take(params["embed"], token, axis=0)
    x = jnp.transpose(emb, (1, 0, 2)).astype(jnp.float32)     # (T, N, E)
    H = HIDDEN_SIZE
    hs, cs = [], []
    for l in range(NUM_LAYERS):
        lw = params["lstm"][l]

        def step(carry, x_t, lw=lw):
            h, c = carry
            g = x_t @ lw["wih"].T + h @ lw["whh"].T + lw["bih"] + lw["bhh"]
            i = jax.nn.sigmoid(g[:, 0 * H:1 * H])
            f = jax.nn.sigmoid(g[:, 1 * H:2 * H])
            gg = jnp.tanh(g[:, 2 * H:3 * H])
            o = jax.nn.sigmoid(g[:, 3 * H:4 * H])
            c = f * c + i * gg
            h = o * jnp.tanh(c)
            return (h, c), h

        init = (jnp.zeros((N, H), jnp.float32), jnp.zeros((N, H), jnp.float32))
        (hT, cT), x = jax.lax.scan(step, init, x)
        hs.append(hT)
        cs.append(cT)
    out = x @ params["dist_w"].T + params["dist_b"]
    return jnp.transpose(out, (1, 0, 2)), (jnp.stack(hs), jnp.stack(cs))


if __name__ == "__main__":
    key = jax.random.PRNGKey(0)
    pkey, tkey = jax.random.split(key)
    params = init_params(pkey)
    prep = prepare_params(params)
    token = jax.random.randint(tkey, (BATCH, SEQ), 0, VOCAB_SIZE, dtype=jnp.int32)

    logits, (h, c) = rnn_lm_forward(prep, token)
    jax.block_until_ready((logits, h, c))

    ref_logits, (ref_h, ref_c) = _reference_forward(params, token)
    assert logits.shape == (BATCH, SEQ, VOCAB_SIZE)
    assert h.shape == (NUM_LAYERS, BATCH, HIDDEN_SIZE)
    assert c.shape == (NUM_LAYERS, BATCH, HIDDEN_SIZE)
    assert jnp.allclose(logits, ref_logits, atol=1e-4, rtol=1e-4)
    assert jnp.allclose(h, ref_h, atol=1e-4, rtol=1e-4)
    assert jnp.allclose(c, ref_c, atol=1e-4, rtol=1e-4)

    print("KERNEL_OK")
</pallas_src>

<mosaic_0001>
module attributes {stable_mosaic.version = 11 : i64} {
  func.func @_fused_rnnlm_kernel(%arg0: memref<16x1xi32, #tpu.memory_space<vmem>>, %arg1: memref<264x128xf32, #tpu.memory_space<vmem>>, %arg2: memref<2x3x2x32xf32, #tpu.memory_space<vmem>>, %arg3: memref<16x40xf32, #tpu.memory_space<vmem>>, %arg4: memref<2x3x2x32xf32, #tpu.memory_space<vmem>>) attributes {dimension_semantics = [], scalar_prefetch = 0 : i64, scratch_operands = 0 : i64, tpu.core_type = #tpu.core_type<tc>} {
    %c0 = arith.constant 0 : index
    %c0_0 = arith.constant 0 : index
    %0 = vector.load %arg1[%c0, %c0_0] : memref<264x128xf32, #tpu.memory_space<vmem>>, vector<40x128xf32>
    %c40 = arith.constant 40 : index
    %c0_1 = arith.constant 0 : index
    %1 = vector.load %arg1[%c40, %c0_1] : memref<264x128xf32, #tpu.memory_space<vmem>>, vector<32x128xf32>
    %c72 = arith.constant 72 : index
    %c0_2 = arith.constant 0 : index
    %2 = vector.load %arg1[%c72, %c0_2] : memref<264x128xf32, #tpu.memory_space<vmem>>, vector<64x128xf32>
    %c136 = arith.constant 136 : index
    %c0_3 = arith.constant 0 : index
    %3 = vector.load %arg1[%c136, %c0_3] : memref<264x128xf32, #tpu.memory_space<vmem>>, vector<64x128xf32>
    %c200 = arith.constant 200 : index
    %c0_4 = arith.constant 0 : index
    %4 = vector.load %arg1[%c200, %c0_4] : memref<264x128xf32, #tpu.memory_space<vmem>>, vector<1x128xf32>
    %c208 = arith.constant 208 : index
    %c0_5 = arith.constant 0 : index
    %5 = vector.load %arg1[%c208, %c0_5] : memref<264x128xf32, #tpu.memory_space<vmem>>, vector<1x128xf32>
    %c216 = arith.constant 216 : index
    %c0_6 = arith.constant 0 : index
    %6 = vector.load %arg1[%c216, %c0_6] : memref<264x128xf32, #tpu.memory_space<vmem>>, vector<1x128xf32>
    %c224 = arith.constant 224 : index
    %c0_7 = arith.constant 0 : index
    %7 = vector.load %arg1[%c224, %c0_7] : memref<264x128xf32, #tpu.memory_space<vmem>>, vector<32x40xf32>
    %c256 = arith.constant 256 : index
    %c0_8 = arith.constant 0 : index
    %8 = vector.load %arg1[%c256, %c0_8] : memref<264x128xf32, #tpu.memory_space<vmem>>, vector<1x40xf32>
    %c0_9 = arith.constant 0 : index
    %c0_10 = arith.constant 0 : index
    %9 = vector.load %arg0[%c0_9, %c0_10] : memref<16x1xi32, #tpu.memory_space<vmem>>, vector<16x1xi32>
    %10 = tpu.iota {dimensions = array<i32: 1>} : vector<16x40xi32>
    %11 = vector.broadcast %9 : vector<16x1xi32> to vector<16x40xi32>
    %12 = arith.cmpi eq, %10, %11 : vector<16x40xi32>
    %cst = arith.constant 1.000000e+00 : f32
    %cst_11 = arith.constant 0.000000e+00 : f32
    %13 = vector.broadcast %cst : f32 to vector<16x40xf32>
    %14 = vector.broadcast %cst_11 : f32 to vector<16x40xf32>
    %15 = arith.select %12, %13, %14 : vector<16x40xi1>, vector<16x40xf32>
    %cst_12 = arith.constant dense<0.000000e+00> : vector<16x128xf32>
    %16 = tpu.matmul %15, %0, %cst_12 {dimension_numbers = #tpu.dot_dimension_numbers<[1], [0], [0], [1], [0, 0, 1, 1], [], []>} : vector<16x40xf32>, vector<40x128xf32>, vector<16x128xf32> -> vector<16x128xf32>
    %17 = vector.broadcast %4 : vector<1x128xf32> to vector<16x128xf32>
    %18 = arith.addf %16, %17 : vector<16x128xf32>
    %19 = tpu.iota {dimensions = array<i32: 0>} : vector<16x16xi32>
    %20 = tpu.iota {dimensions = array<i32: 1>} : vector<16x16xi32>
    %c1_i32 = arith.constant 1 : i32
    %21 = vector.broadcast %c1_i32 : i32 to vector<16x16xi32>
    %22 = arith.andi %19, %21 : vector<16x16xi32>
    %c8_i32 = arith.constant 8 : i32
    %23 = vector.broadcast %c8_i32 : i32 to vector<16x16xi32>
    %24 = arith.muli %22, %23 : vector<16x16xi32>
    %c1_i32_13 = arith.constant 1 : i32
    %25 = vector.broadcast %c1_i32_13 : i32 to vector<16x16xi32>
    %26 = arith.shrsi %19, %25 : vector<16x16xi32>
    %27 = arith.addi %24, %26 : vector<16x16xi32>
    %28 = arith.cmpi eq, %20, %27 : vector<16x16xi32>
    %cst_14 = arith.constant 1.000000e+00 : f32
    %cst_15 = arith.constant 0.000000e+00 : f32
    %29 = vector.broadcast %cst_14 : f32 to vector<16x16xf32>
    %30 = vector.broadcast %cst_15 : f32 to vector<16x16xf32>
    %31 = arith.select %28, %29, %30 : vector<16x16xi1>, vector<16x16xf32>
    %c7_i32 = arith.constant 7 : i32
    %32 = vector.broadcast %c7_i32 : i32 to vector<16x16xi32>
    %33 = arith.andi %19, %32 : vector<16x16xi32>
    %c2_i32 = arith.constant 2 : i32
    %34 = vector.broadcast %c2_i32 : i32 to vector<16x16xi32>
    %35 = arith.muli %33, %34 : vector<16x16xi32>
    %c3_i32 = arith.constant 3 : i32
    %36 = vector.broadcast %c3_i32 : i32 to vector<16x16xi32>
    %37 = arith.shrsi %19, %36 : vector<16x16xi32>
    %38 = arith.addi %35, %37 : vector<16x16xi32>
    %39 = arith.cmpi eq, %20, %38 : vector<16x16xi32>
    %cst_16 = arith.constant 1.000000e+00 : f32
    %cst_17 = arith.constant 0.000000e+00 : f32
    %40 = vector.broadcast %cst_16 : f32 to vector<16x16xf32>
    %41 = vector.broadcast %cst_17 : f32 to vector<16x16xf32>
    %42 = arith.select %39, %40, %41 : vector<16x16xi1>, vector<16x16xf32>
    %cst_18 = arith.constant dense<0.000000e+00> : vector<16x128xf32>
    %43 = tpu.matmul %31, %18, %cst_18 {dimension_numbers = #tpu.dot_dimension_numbers<[1], [0], [0], [1], [0, 0, 1, 1], [], []>} : vector<16x16xf32>, vector<16x128xf32>, vector<16x128xf32> -> vector<16x128xf32>
    %c0_19 = arith.constant 0 : index
    %c0_20 = arith.constant 0 : index
    %c0_21 = arith.constant 0 : index
    %c0_22 = arith.constant 0 : index
    %44 = vector.load %arg2[%c0_19, %c0_20, %c0_21, %c0_22] : memref<2x3x2x32xf32, #tpu.memory_space<vmem>>, vector<1x1x2x32xf32>
    %45 = vector.shape_cast %44 : vector<1x1x2x32xf32> to vector<2x32xf32>
    %c0_23 = arith.constant 0 : index
    %c1 = arith.constant 1 : index
    %c0_24 = arith.constant 0 : index
    %c0_25 = arith.constant 0 : index
    %46 = vector.load %arg2[%c0_23, %c1, %c0_24, %c0_25] : memref<2x3x2x32xf32, #tpu.memory_space<vmem>>, vector<1x1x2x32xf32>
    %47 = vector.shape_cast %46 : vector<1x1x2x32xf32> to vector<2x32xf32>
    %c0_26 = arith.constant 0 : index
    %c2 = arith.constant 2 : index
    %c0_27 = arith.constant 0 : index
    %c0_28 = arith.constant 0 : index
    %48 = vector.load %arg2[%c0_26, %c2, %c0_27, %c0_28] : memref<2x3x2x32xf32, #tpu.memory_space<vmem>>, vector<1x1x2x32xf32>
    %49 = vector.shape_cast %48 : vector<1x1x2x32xf32> to vector<2x32xf32>
    %c1_29 = arith.constant 1 : index
    %c0_30 = arith.constant 0 : index
    %c0_31 = arith.constant 0 : index
    %c0_32 = arith.constant 0 : index
    %50 = vector.load %arg2[%c1_29, %c0_30, %c0_31, %c0_32] : memref<2x3x2x32xf32, #tpu.memory_space<vmem>>, vector<1x1x2x32xf32>
    %51 = vector.shape_cast %50 : vector<1x1x2x32xf32> to vector<2x32xf32>
    %c1_33 = arith.constant 1 : index
    %c1_34 = arith.constant 1 : index
    %c0_35 = arith.constant 0 : index
    %c0_36 = arith.constant 0 : index
    %52 = vector.load %arg2[%c1_33, %c1_34, %c0_35, %c0_36] : memref<2x3x2x32xf32, #tpu.memory_space<vmem>>, vector<1x1x2x32xf32>
    %53 = vector.shape_cast %52 : vector<1x1x2x32xf32> to vector<2x32xf32>
    %c1_37 = arith.constant 1 : index
    %c2_38 = arith.constant 2 : index
    %c0_39 = arith.constant 0 : index
    %c0_40 = arith.constant 0 : index
    %54 = vector.load %arg2[%c1_37, %c2_38, %c0_39, %c0_40] : memref<2x3x2x32xf32, #tpu.memory_space<vmem>>, vector<1x1x2x32xf32>
    %55 = vector.shape_cast %54 : vector<1x1x2x32xf32> to vector<2x32xf32>
    %56 = vector.extract_strided_slice %43 {offsets = [0, 0], sizes = [2, 128], strides = [1, 1]} : vector<16x128xf32> to vector<2x128xf32>
    %cst_41 = arith.constant dense<0.000000e+00> : vector<2x128xf32>
    %57 = tpu.matmul %45, %1, %cst_41 {dimension_numbers = #tpu.dot_dimension_numbers<[1], [0], [0], [1], [0, 0, 1, 1], [], []>} : vector<2x32xf32>, vector<32x128xf32>, vector<2x128xf32> -> vector<2x128xf32>
    %58 = arith.addf %56, %57 : vector<2x128xf32>
    %59 = arith.negf %58 : vector<2x128xf32>
    %60 = math.exp %59 : vector<2x128xf32>
    %cst_42 = arith.constant 1.000000e+00 : f32
    %61 = vector.broadcast %cst_42 : f32 to vector<2x128xf32>
    %62 = arith.addf %61, %60 : vector<2x128xf32>
    %63 = arith.divf %61, %62 : vector<2x128xf32>
    %64 = math.tanh %58 : vector<2x128xf32>
    %65 = vector.extract_strided_slice %63 {offsets = [0, 0], sizes = [2, 32], strides = [1, 1]} : vector<2x128xf32> to vector<2x32xf32>
    %66 = vector.extract_strided_slice %63 {offsets = [0, 32], sizes = [2, 32], strides = [1, 1]} : vector<2x128xf32> to vector<2x32xf32>
    %67 = vector.extract_strided_slice %64 {offsets = [0, 64], sizes = [2, 32], strides = [1, 1]} : vector<2x128xf32> to vector<2x32xf32>
    %68 = vector.extract_strided_slice %63 {offsets = [0, 96], sizes = [2, 32], strides = [1, 1]} : vector<2x128xf32> to vector<2x32xf32>
    %69 = arith.mulf %66, %51 : vector<2x32xf32>
    %70 = arith.mulf %65, %67 : vector<2x32xf32>
    %71 = arith.addf %69, %70 : vector<2x32xf32>
    %72 = math.tanh %71 : vector<2x32xf32>
    %73 = arith.mulf %68, %72 : vector<2x32xf32>
    %74 = tpu.concatenate %73, %47 in 1 : vector<2x32xf32>, vector<2x32xf32> -> vector<2x64xf32>
    %cst_43 = arith.constant dense<0.000000e+00> : vector<2x128xf32>
    %75 = tpu.matmul %74, %2, %cst_43 {dimension_numbers = #tpu.dot_dimension_numbers<[1], [0], [0], [1], [0, 0, 1, 1], [], []>} : vector<2x64xf32>, vector<64x128xf32>, vector<2x128xf32> -> vector<2x128xf32>
    %76 = vector.broadcast %5 : vector<1x128xf32> to vector<2x128xf32>
    %77 = arith.addf %75, %76 : vector<2x128xf32>
    %78 = arith.negf %77 : vector<2x128xf32>
    %79 = math.exp %78 : vector<2x128xf32>
    %cst_44 = arith.constant 1.000000e+00 : f32
    %80 = vector.broadcast %cst_44 : f32 to vector<2x128xf32>
    %81 = arith.addf %80, %79 : vector<2x128xf32>
    %82 = arith.divf %80, %81 : vector<2x128xf32>
    %83 = math.tanh %77 : vector<2x128xf32>
    %84 = vector.extract_strided_slice %82 {offsets = [0, 0], sizes = [2, 32], strides = [1, 1]} : vector<2x128xf32> to vector<2x32xf32>
    %85 = vector.extract_strided_slice %82 {offsets = [0, 32], sizes = [2, 32], strides = [1, 1]} : vector<2x128xf32> to vector<2x32xf32>
    %86 = vector.extract_strided_slice %83 {offsets = [0, 64], sizes = [2, 32], strides = [1, 1]} : vector<2x128xf32> to vector<2x32xf32>
    %87 = vector.extract_strided_slice %82 {offsets = [0, 96], sizes = [2, 32], strides = [1, 1]} : vector<2x128xf32> to vector<2x32xf32>
    %88 = arith.mulf %85, %53 : vector<2x32xf32>
    %89 = arith.mulf %84, %86 : vector<2x32xf32>
    %90 = arith.addf %88, %89 : vector<2x32xf32>
    %91 = math.tanh %90 : vector<2x32xf32>
    %92 = arith.mulf %87, %91 : vector<2x32xf32>
    %93 = vector.extract_strided_slice %43 {offsets = [2, 0], sizes = [2, 128], strides = [1, 1]} : vector<16x128xf32> to vector<2x128xf32>
    %cst_45 = arith.constant dense<0.000000e+00> : vector<2x128xf32>
    %94 = tpu.matmul %73, %1, %cst_45 {dimension_numbers = #tpu.dot_dimension_numbers<[1], [0], [0], [1], [0, 0, 1, 1], [], []>} : vector<2x32xf32>, vector<32x128xf32>, vector<2x128xf32> -> vector<2x128xf32>
    %95 = arith.addf %93, %94 : vector<2x128xf32>
    %96 = arith.negf %95 : vector<2x128xf32>
    %97 = math.exp %96 : vector<2x128xf32>
    %cst_46 = arith.constant 1.000000e+00 : f32
    %98 = vector.broadcast %cst_46 : f32 to vector<2x128xf32>
    %99 = arith.addf %98, %97 : vector<2x128xf32>
    %100 = arith.divf %98, %99 : vector<2x128xf32>
    %101 = math.tanh %95 : vector<2x128xf32>
    %102 = vector.extract_strided_slice %100 {offsets = [0, 0], sizes = [2, 32], strides = [1, 1]} : vector<2x128xf32> to vector<2x32xf32>
    %103 = vector.extract_strided_slice %100 {offsets = [0, 32], sizes = [2, 32], strides = [1, 1]} : vector<2x128xf32> to vector<2x32xf32>
    %104 = vector.extract_strided_slice %101 {offsets = [0, 64], sizes = [2, 32], strides = [1, 1]} : vector<2x128xf32> to vector<2x32xf32>
    %105 = vector.extract_strided_slice %100 {offsets = [0, 96], sizes = [2, 32], strides = [1, 1]} : vector<2x128xf32> to vector<2x32xf32>
    %106 = arith.mulf %103, %71 : vector<2x32xf32>
    %107 = arith.mulf %102, %104 : vector<2x32xf32>
    %108 = arith.addf %106, %107 : vector<2x32xf32>
    %109 = math.tanh %108 : vector<2x32xf32>
    %110 = arith.mulf %105, %109 : vector<2x32xf32>
    %111 = tpu.concatenate %92, %49 in 1 : vector<2x32xf32>, vector<2x32xf32> -> vector<2x64xf32>
    %cst_47 = arith.constant dense<0.000000e+00> : vector<2x128xf32>
    %112 = tpu.matmul %111, %3, %cst_47 {dimension_numbers = #tpu.dot_dimension_numbers<[1], [0], [0], [1], [0, 0, 1, 1], [], []>} : vector<2x64xf32>, vector<64x128xf32>, vector<2x128xf32> -> vector<2x128xf32>
    %113 = vector.broadcast %6 : vector<1x128xf32> to vector<2x128xf32>
    %114 = arith.addf %112, %113 : vector<2x128xf32>
    %115 = arith.negf %114 : vector<2x128xf32>
    %116 = math.exp %115 : vector<2x128xf32>
    %cst_48 = arith.constant 1.000000e+00 : f32
    %117 = vector.broadcast %cst_48 : f32 to vector<2x128xf32>
    %118 = arith.addf %117, %116 : vector<2x128xf32>
    %119 = arith.divf %117, %118 : vector<2x128xf32>
    %120 = math.tanh %114 : vector<2x128xf32>
    %121 = vector.extract_strided_slice %119 {offsets = [0, 0], sizes = [2, 32], strides = [1, 1]} : vector<2x128xf32> to vector<2x32xf32>
    %122 = vector.extract_strided_slice %119 {offsets = [0, 32], sizes = [2, 32], strides = [1, 1]} : vector<2x128xf32> to vector<2x32xf32>
    %123 = vector.extract_strided_slice %120 {offsets = [0, 64], sizes = [2, 32], strides = [1, 1]} : vector<2x128xf32> to vector<2x32xf32>
    %124 = vector.extract_strided_slice %119 {offsets = [0, 96], sizes = [2, 32], strides = [1, 1]} : vector<2x128xf32> to vector<2x32xf32>
    %125 = arith.mulf %122, %55 : vector<2x32xf32>
    %126 = arith.mulf %121, %123 : vector<2x32xf32>
    %127 = arith.addf %125, %126 : vector<2x32xf32>
    %128 = math.tanh %127 : vector<2x32xf32>
    %129 = arith.mulf %124, %128 : vector<2x32xf32>
    %130 = tpu.concatenate %110, %92 in 1 : vector<2x32xf32>, vector<2x32xf32> -> vector<2x64xf32>
    %cst_49 = arith.constant dense<0.000000e+00> : vector<2x128xf32>
    %131 = tpu.matmul %130, %2, %cst_49 {dimension_numbers = #tpu.dot_dimension_numbers<[1], [0], [0], [1], [0, 0, 1, 1], [], []>} : vector<2x64xf32>, vector<64x128xf32>, vector<2x128xf32> -> vector<2x128xf32>
    %132 = vector.broadcast %5 : vector<1x128xf32> to vector<2x128xf32>
    %133 = arith.addf %131, %132 : vector<2x128xf32>
    %134 = arith.negf %133 : vector<2x128xf32>
    %135 = math.exp %134 : vector<2x128xf32>
    %cst_50 = arith.constant 1.000000e+00 : f32
    %136 = vector.broadcast %cst_50 : f32 to vector<2x128xf32>
    %137 = arith.addf %136, %135 : vector<2x128xf32>
    %138 = arith.divf %136, %137 : vector<2x128xf32>
    %139 = math.tanh %133 : vector<2x128xf32>
    %140 = vector.extract_strided_slice %138 {offsets = [0, 0], sizes = [2, 32], strides = [1, 1]} : vector<2x128xf32> to vector<2x32xf32>
    %141 = vector.extract_strided_slice %138 {offsets = [0, 32], sizes = [2, 32], strides = [1, 1]} : vector<2x128xf32> to vector<2x32xf32>
    %142 = vector.extract_strided_slice %139 {offsets = [0, 64], sizes = [2, 32], strides = [1, 1]} : vector<2x128xf32> to vector<2x32xf32>
    %143 = vector.extract_strided_slice %138 {offsets = [0, 96], sizes = [2, 32], strides = [1, 1]} : vector<2x128xf32> to vector<2x32xf32>
    %144 = arith.mulf %141, %90 : vector<2x32xf32>
    %145 = arith.mulf %140, %142 : vector<2x32xf32>
    %146 = arith.addf %144, %145 : vector<2x32xf32>
    %147 = math.tanh %146 : vector<2x32xf32>
    %148 = arith.mulf %143, %147 : vector<2x32xf32>
    %149 = vector.extract_strided_slice %43 {offsets = [4, 0], sizes = [2, 128], strides = [1, 1]} : vector<16x128xf32> to vector<2x128xf32>
    %cst_51 = arith.constant dense<0.000000e+00> : vector<2x128xf32>
    %150 = tpu.matmul %110, %1, %cst_51 {dimension_numbers = #tpu.dot_dimension_numbers<[1], [0], [0], [1], [0, 0, 1, 1], [], []>} : vector<2x32xf32>, vector<32x128xf32>, vector<2x128xf32> -> vector<2x128xf32>
    %151 = arith.addf %149, %150 : vector<2x128xf32>
    %152 = arith.negf %151 : vector<2x128xf32>
    %153 = math.exp %152 : vector<2x128xf32>
    %cst_52 = arith.constant 1.000000e+00 : f32
    %154 = vector.broadcast %cst_52 : f32 to vector<2x128xf32>
    %155 = arith.addf %154, %153 : vector<2x128xf32>
    %156 = arith.divf %154, %155 : vector<2x128xf32>
    %157 = math.tanh %151 : vector<2x128xf32>
    %158 = vector.extract_strided_slice %156 {offsets = [0, 0], sizes = [2, 32], strides = [1, 1]} : vector<2x128xf32> to vector<2x32xf32>
    %159 = vector.extract_strided_slice %156 {offsets = [0, 32], sizes = [2, 32], strides = [1, 1]} : vector<2x128xf32> to vector<2x32xf32>
    %160 = vector.extract_strided_slice %157 {offsets = [0, 64], sizes = [2, 32], strides = [1, 1]} : vector<2x128xf32> to vector<2x32xf32>
    %161 = vector.extract_strided_slice %156 {offsets = [0, 96], sizes = [2, 32], strides = [1, 1]} : vector<2x128xf32> to vector<2x32xf32>
    %162 = arith.mulf %159, %108 : vector<2x32xf32>
    %163 = arith.mulf %158, %160 : vector<2x32xf32>
    %164 = arith.addf %162, %163 : vector<2x32xf32>
    %165 = math.tanh %164 : vector<2x32xf32>
    %166 = arith.mulf %161, %165 : vector<2x32xf32>
    %167 = tpu.concatenate %148, %129 in 1 : vector<2x32xf32>, vector<2x32xf32> -> vector<2x64xf32>
    %cst_53 = arith.constant dense<0.000000e+00> : vector<2x128xf32>
    %168 = tpu.matmul %167, %3, %cst_53 {dimension_numbers = #tpu.dot_dimension_numbers<[1], [0], [0], [1], [0, 0, 1, 1], [], []>} : vector<2x64xf32>, vector<64x128xf32>, vector<2x128xf32> -> vector<2x128xf32>
    %169 = vector.broadcast %6 : vector<1x128xf32> to vector<2x128xf32>
    %170 = arith.addf %168, %169 : vector<2x128xf32>
    %171 = arith.negf %170 : vector<2x128xf32>
    %172 = math.exp %171 : vector<2x128xf32>
    %cst_54 = arith.constant 1.000000e+00 : f32
    %173 = vector.broadcast %cst_54 : f32 to vector<2x128xf32>
    %174 = arith.addf %173, %172 : vector<2x128xf32>
    %175 = arith.divf %173, %174 : vector<2x128xf32>
    %176 = math.tanh %170 : vector<2x128xf32>
    %177 = vector.extract_strided_slice %175 {offsets = [0, 0], sizes = [2, 32], strides = [1, 1]} : vector<2x128xf32> to vector<2x32xf32>
    %178 = vector.extract_strided_slice %175 {offsets = [0, 32], sizes = [2, 32], strides = [1, 1]} : vector<2x128xf32> to vector<2x32xf32>
    %179 = vector.extract_strided_slice %176 {offsets = [0, 64], sizes = [2, 32], strides = [1, 1]} : vector<2x128xf32> to vector<2x32xf32>
    %180 = vector.extract_strided_slice %175 {offsets = [0, 96], sizes = [2, 32], strides = [1, 1]} : vector<2x128xf32> to vector<2x32xf32>
    %181 = arith.mulf %178, %127 : vector<2x32xf32>
    %182 = arith.mulf %177, %179 : vector<2x32xf32>
    %183 = arith.addf %181, %182 : vector<2x32xf32>
    %184 = math.tanh %183 : vector<2x32xf32>
    %185 = arith.mulf %180, %184 : vector<2x32xf32>
    %186 = tpu.concatenate %166, %148 in 1 : vector<2x32xf32>, vector<2x32xf32> -> vector<2x64xf32>
    %cst_55 = arith.constant dense<0.000000e+00> : vector<2x128xf32>
    %187 = tpu.matmul %186, %2, %cst_55 {dimension_numbers = #tpu.dot_dimension_numbers<[1], [0], [0], [1], [0, 0, 1, 1], [], []>} : vector<2x64xf32>, vector<64x128xf32>, vector<2x128xf32> -> vector<2x128xf32>
    %188 = vector.broadcast %5 : vector<1x128xf32> to vector<2x128xf32>
    %189 = arith.addf %187, %188 : vector<2x128xf32>
    %190 = arith.negf %189 : vector<2x128xf32>
    %191 = math.exp %190 : vector<2x128xf32>
    %cst_56 = arith.constant 1.000000e+00 : f32
    %192 = vector.broadcast %cst_56 : f32 to vector<2x128xf32>
    %193 = arith.addf %192, %191 : vector<2x128xf32>
    %194 = arith.divf %192, %193 : vector<2x128xf32>
    %195 = math.tanh %189 : vector<2x128xf32>
    %196 = vector.extract_strided_slice %194 {offsets = [0, 0], sizes = [2, 32], strides = [1, 1]} : vector<2x128xf32> to vector<2x32xf32>
    %197 = vector.extract_strided_slice %194 {offsets = [0, 32], sizes = [2, 32], strides = [1, 1]} : vector<2x128xf32> to vector<2x32xf32>
    %198 = vector.extract_strided_slice %195 {offsets = [0, 64], sizes = [2, 32], strides = [1, 1]} : vector<2x128xf32> to vector<2x32xf32>
    %199 = vector.extract_strided_slice %194 {offsets = [0, 96], sizes = [2, 32], strides = [1, 1]} : vector<2x128xf32> to vector<2x32xf32>
    %200 = arith.mulf %197, %146 : vector<2x32xf32>
    %201 = arith.mulf %196, %198 : vector<2x32xf32>
    %202 = arith.addf %200, %201 : vector<2x32xf32>
    %203 = math.tanh %202 : vector<2x32xf32>
    %204 = arith.mulf %199, %203 : vector<2x32xf32>
    %205 = vector.extract_strided_slice %43 {offsets = [6, 0], sizes = [2, 128], strides = [1, 1]} : vector<16x128xf32> to vector<2x128xf32>
    %cst_57 = arith.constant dense<0.000000e+00> : vector<2x128xf32>
    %206 = tpu.matmul %166, %1, %cst_57 {dimension_numbers = #tpu.dot_dimension_numbers<[1], [0], [0], [1], [0, 0, 1, 1], [], []>} : vector<2x32xf32>, vector<32x128xf32>, vector<2x128xf32> -> vector<2x128xf32>
    %207 = arith.addf %205, %206 : vector<2x128xf32>
    %208 = arith.negf %207 : vector<2x128xf32>
    %209 = math.exp %208 : vector<2x128xf32>
    %cst_58 = arith.constant 1.000000e+00 : f32
    %210 = vector.broadcast %cst_58 : f32 to vector<2x128xf32>
    %211 = arith.addf %210, %209 : vector<2x128xf32>
    %212 = arith.divf %210, %211 : vector<2x128xf32>
    %213 = math.tanh %207 : vector<2x128xf32>
    %214 = vector.extract_strided_slice %212 {offsets = [0, 0], sizes = [2, 32], strides = [1, 1]} : vector<2x128xf32> to vector<2x32xf32>
    %215 = vector.extract_strided_slice %212 {offsets = [0, 32], sizes = [2, 32], strides = [1, 1]} : vector<2x128xf32> to vector<2x32xf32>
    %216 = vector.extract_strided_slice %213 {offsets = [0, 64], sizes = [2, 32], strides = [1, 1]} : vector<2x128xf32> to vector<2x32xf32>
    %217 = vector.extract_strided_slice %212 {offsets = [0, 96], sizes = [2, 32], strides = [1, 1]} : vector<2x128xf32> to vector<2x32xf32>
    %218 = arith.mulf %215, %164 : vector<2x32xf32>
    %219 = arith.mulf %214, %216 : vector<2x32xf32>
    %220 = arith.addf %218, %219 : vector<2x32xf32>
    %221 = math.tanh %220 : vector<2x32xf32>
    %222 = arith.mulf %217, %221 : vector<2x32xf32>
    %223 = tpu.concatenate %204, %185 in 1 : vector<2x32xf32>, vector<2x32xf32> -> vector<2x64xf32>
    %cst_59 = arith.constant dense<0.000000e+00> : vector<2x128xf32>
    %224 = tpu.matmul %223, %3, %cst_59 {dimension_numbers = #tpu.dot_dimension_numbers<[1], [0], [0], [1], [0, 0, 1, 1], [], []>} : vector<2x64xf32>, vector<64x128xf32>, vector<2x128xf32> -> vector<2x128xf32>
    %225 = vector.broadcast %6 : vector<1x128xf32> to vector<2x128xf32>
    %226 = arith.addf %224, %225 : vector<2x128xf32>
    %227 = arith.negf %226 : vector<2x128xf32>
    %228 = math.exp %227 : vector<2x128xf32>
    %cst_60 = arith.constant 1.000000e+00 : f32
    %229 = vector.broadcast %cst_60 : f32 to vector<2x128xf32>
    %230 = arith.addf %229, %228 : vector<2x128xf32>
    %231 = arith.divf %229, %230 : vector<2x128xf32>
    %232 = math.tanh %226 : vector<2x128xf32>
    %233 = vector.extract_strided_slice %231 {offsets = [0, 0], sizes = [2, 32], strides = [1, 1]} : vector<2x128xf32> to vector<2x32xf32>
    %234 = vector.extract_strided_slice %231 {offsets = [0, 32], sizes = [2, 32], strides = [1, 1]} : vector<2x128xf32> to vector<2x32xf32>
    %235 = vector.extract_strided_slice %232 {offsets = [0, 64], sizes = [2, 32], strides = [1, 1]} : vector<2x128xf32> to vector<2x32xf32>
    %236 = vector.extract_strided_slice %231 {offsets = [0, 96], sizes = [2, 32], strides = [1, 1]} : vector<2x128xf32> to vector<2x32xf32>
    %237 = arith.mulf %234, %183 : vector<2x32xf32>
    %238 = arith.mulf %233, %235 : vector<2x32xf32>
    %239 = arith.addf %237, %238 : vector<2x32xf32>
    %240 = math.tanh %239 : vector<2x32xf32>
    %241 = arith.mulf %236, %240 : vector<2x32xf32>
    %242 = tpu.concatenate %222, %204 in 1 : vector<2x32xf32>, vector<2x32xf32> -> vector<2x64xf32>
    %cst_61 = arith.constant dense<0.000000e+00> : vector<2x128xf32>
    %243 = tpu.matmul %242, %2, %cst_61 {dimension_numbers = #tpu.dot_dimension_numbers<[1], [0], [0], [1], [0, 0, 1, 1], [], []>} : vector<2x64xf32>, vector<64x128xf32>, vector<2x128xf32> -> vector<2x128xf32>
    %244 = vector.broadcast %5 : vector<1x128xf32> to vector<2x128xf32>
    %245 = arith.addf %243, %244 : vector<2x128xf32>
    %246 = arith.negf %245 : vector<2x128xf32>
    %247 = math.exp %246 : vector<2x128xf32>
    %cst_62 = arith.constant 1.000000e+00 : f32
    %248 = vector.broadcast %cst_62 : f32 to vector<2x128xf32>
    %249 = arith.addf %248, %247 : vector<2x128xf32>
    %250 = arith.divf %248, %249 : vector<2x128xf32>
    %251 = math.tanh %245 : vector<2x128xf32>
    %252 = vector.extract_strided_slice %250 {offsets = [0, 0], sizes = [2, 32], strides = [1, 1]} : vector<2x128xf32> to vector<2x32xf32>
    %253 = vector.extract_strided_slice %250 {offsets = [0, 32], sizes = [2, 32], strides = [1, 1]} : vector<2x128xf32> to vector<2x32xf32>
    %254 = vector.extract_strided_slice %251 {offsets = [0, 64], sizes = [2, 32], strides = [1, 1]} : vector<2x128xf32> to vector<2x32xf32>
    %255 = vector.extract_strided_slice %250 {offsets = [0, 96], sizes = [2, 32], strides = [1, 1]} : vector<2x128xf32> to vector<2x32xf32>
    %256 = arith.mulf %253, %202 : vector<2x32xf32>
    %257 = arith.mulf %252, %254 : vector<2x32xf32>
    %258 = arith.addf %256, %257 : vector<2x32xf32>
    %259 = math.tanh %258 : vector<2x32xf32>
    %260 = arith.mulf %255, %259 : vector<2x32xf32>
    %261 = vector.extract_strided_slice %43 {offsets = [8, 0], sizes = [2, 128], strides = [1, 1]} : vector<16x128xf32> to vector<2x128xf32>
    %cst_63 = arith.constant dense<0.000000e+00> : vector<2x128xf32>
    %262 = tpu.matmul %222, %1, %cst_63 {dimension_numbers = #tpu.dot_dimension_numbers<[1], [0], [0], [1], [0, 0, 1, 1], [], []>} : vector<2x32xf32>, vector<32x128xf32>, vector<2x128xf32> -> vector<2x128xf32>
    %263 = arith.addf %261, %262 : vector<2x128xf32>
    %264 = arith.negf %263 : vector<2x128xf32>
    %265 = math.exp %264 : vector<2x128xf32>
    %cst_64 = arith.constant 1.000000e+00 : f32
    %266 = vector.broadcast %cst_64 : f32 to vector<2x128xf32>
    %267 = arith.addf %266, %265 : vector<2x128xf32>
    %268 = arith.divf %266, %267 : vector<2x128xf32>
    %269 = math.tanh %263 : vector<2x128xf32>
    %270 = vector.extract_strided_slice %268 {offsets = [0, 0], sizes = [2, 32], strides = [1, 1]} : vector<2x128xf32> to vector<2x32xf32>
    %271 = vector.extract_strided_slice %268 {offsets = [0, 32], sizes = [2, 32], strides = [1, 1]} : vector<2x128xf32> to vector<2x32xf32>
    %272 = vector.extract_strided_slice %269 {offsets = [0, 64], sizes = [2, 32], strides = [1, 1]} : vector<2x128xf32> to vector<2x32xf32>
    %273 = vector.extract_strided_slice %268 {offsets = [0, 96], sizes = [2, 32], strides = [1, 1]} : vector<2x128xf32> to vector<2x32xf32>
    %274 = arith.mulf %271, %220 : vector<2x32xf32>
    %275 = arith.mulf %270, %272 : vector<2x32xf32>
    %276 = arith.addf %274, %275 : vector<2x32xf32>
    %277 = math.tanh %276 : vector<2x32xf32>
    %278 = arith.mulf %273, %277 : vector<2x32xf32>
    %279 = tpu.concatenate %260, %241 in 1 : vector<2x32xf32>, vector<2x32xf32> -> vector<2x64xf32>
    %cst_65 = arith.constant dense<0.000000e+00> : vector<2x128xf32>
    %280 = tpu.matmul %279, %3, %cst_65 {dimension_numbers = #tpu.dot_dimension_numbers<[1], [0], [0], [1], [0, 0, 1, 1], [], []>} : vector<2x64xf32>, vector<64x128xf32>, vector<2x128xf32> -> vector<2x128xf32>
    %281 = vector.broadcast %6 : vector<1x128xf32> to vector<2x128xf32>
    %282 = arith.addf %280, %281 : vector<2x128xf32>
    %283 = arith.negf %282 : vector<2x128xf32>
    %284 = math.exp %283 : vector<2x128xf32>
    %cst_66 = arith.constant 1.000000e+00 : f32
    %285 = vector.broadcast %cst_66 : f32 to vector<2x128xf32>
    %286 = arith.addf %285, %284 : vector<2x128xf32>
    %287 = arith.divf %285, %286 : vector<2x128xf32>
    %288 = math.tanh %282 : vector<2x128xf32>
    %289 = vector.extract_strided_slice %287 {offsets = [0, 0], sizes = [2, 32], strides = [1, 1]} : vector<2x128xf32> to vector<2x32xf32>
    %290 = vector.extract_strided_slice %287 {offsets = [0, 32], sizes = [2, 32], strides = [1, 1]} : vector<2x128xf32> to vector<2x32xf32>
    %291 = vector.extract_strided_slice %288 {offsets = [0, 64], sizes = [2, 32], strides = [1, 1]} : vector<2x128xf32> to vector<2x32xf32>
    %292 = vector.extract_strided_slice %287 {offsets = [0, 96], sizes = [2, 32], strides = [1, 1]} : vector<2x128xf32> to vector<2x32xf32>
    %293 = arith.mulf %290, %239 : vector<2x32xf32>
    %294 = arith.mulf %289, %291 : vector<2x32xf32>
    %295 = arith.addf %293, %294 : vector<2x32xf32>
    %296 = math.tanh %295 : vector<2x32xf32>
    %297 = arith.mulf %292, %296 : vector<2x32xf32>
    %298 = tpu.concatenate %278, %260 in 1 : vector<2x32xf32>, vector<2x32xf32> -> vector<2x64xf32>
    %cst_67 = arith.constant dense<0.000000e+00> : vector<2x128xf32>
    %299 = tpu.matmul %298, %2, %cst_67 {dimension_numbers = #tpu.dot_dimension_numbers<[1], [0], [0], [1], [0, 0, 1, 1], [], []>} : vector<2x64xf32>, vector<64x128xf32>, vector<2x128xf32> -> vector<2x128xf32>
    %300 = vector.broadcast %5 : vector<1x128xf32> to vector<2x128xf32>
    %301 = arith.addf %299, %300 : vector<2x128xf32>
    %302 = arith.negf %301 : vector<2x128xf32>
    %303 = math.exp %302 : vector<2x128xf32>
    %cst_68 = arith.constant 1.000000e+00 : f32
    %304 = vector.broadcast %cst_68 : f32 to vector<2x128xf32>
    %305 = arith.addf %304, %303 : vector<2x128xf32>
    %306 = arith.divf %304, %305 : vector<2x128xf32>
    %307 = math.tanh %301 : vector<2x128xf32>
    %308 = vector.extract_strided_slice %306 {offsets = [0, 0], sizes = [2, 32], strides = [1, 1]} : vector<2x128xf32> to vector<2x32xf32>
    %309 = vector.extract_strided_slice %306 {offsets = [0, 32], sizes = [2, 32], strides = [1, 1]} : vector<2x128xf32> to vector<2x32xf32>
    %310 = vector.extract_strided_slice %307 {offsets = [0, 64], sizes = [2, 32], strides = [1, 1]} : vector<2x128xf32> to vector<2x32xf32>
    %311 = vector.extract_strided_slice %306 {offsets = [0, 96], sizes = [2, 32], strides = [1, 1]} : vector<2x128xf32> to vector<2x32xf32>
    %312 = arith.mulf %309, %258 : vector<2x32xf32>
    %313 = arith.mulf %308, %310 : vector<2x32xf32>
    %314 = arith.addf %312, %313 : vector<2x32xf32>
    %315 = math.tanh %314 : vector<2x32xf32>
    %316 = arith.mulf %311, %315 : vector<2x32xf32>
    %317 = vector.extract_strided_slice %43 {offsets = [10, 0], sizes = [2, 128], strides = [1, 1]} : vector<16x128xf32> to vector<2x128xf32>
    %cst_69 = arith.constant dense<0.000000e+00> : vector<2x128xf32>
    %318 = tpu.matmul %278, %1, %cst_69 {dimension_numbers = #tpu.dot_dimension_numbers<[1], [0], [0], [1], [0, 0, 1, 1], [], []>} : vector<2x32xf32>, vector<32x128xf32>, vector<2x128xf32> -> vector<2x128xf32>
    %319 = arith.addf %317, %318 : vector<2x128xf32>
    %320 = arith.negf %319 : vector<2x128xf32>
    %321 = math.exp %320 : vector<2x128xf32>
    %cst_70 = arith.constant 1.000000e+00 : f32
    %322 = vector.broadcast %cst_70 : f32 to vector<2x128xf32>
    %323 = arith.addf %322, %321 : vector<2x128xf32>
    %324 = arith.divf %322, %323 : vector<2x128xf32>
    %325 = math.tanh %319 : vector<2x128xf32>
    %326 = vector.extract_strided_slice %324 {offsets = [0, 0], sizes = [2, 32], strides = [1, 1]} : vector<2x128xf32> to vector<2x32xf32>
    %327 = vector.extract_strided_slice %324 {offsets = [0, 32], sizes = [2, 32], strides = [1, 1]} : vector<2x128xf32> to vector<2x32xf32>
    %328 = vector.extract_strided_slice %325 {offsets = [0, 64], sizes = [2, 32], strides = [1, 1]} : vector<2x128xf32> to vector<2x32xf32>
    %329 = vector.extract_strided_slice %324 {offsets = [0, 96], sizes = [2, 32], strides = [1, 1]} : vector<2x128xf32> to vector<2x32xf32>
    %330 = arith.mulf %327, %276 : vector<2x32xf32>
    %331 = arith.mulf %326, %328 : vector<2x32xf32>
    %332 = arith.addf %330, %331 : vector<2x32xf32>
    %333 = math.tanh %332 : vector<2x32xf32>
    %334 = arith.mulf %329, %333 : vector<2x32xf32>
    %335 = tpu.concatenate %316, %297 in 1 : vector<2x32xf32>, vector<2x32xf32> -> vector<2x64xf32>
    %cst_71 = arith.constant dense<0.000000e+00> : vector<2x128xf32>
    %336 = tpu.matmul %335, %3, %cst_71 {dimension_numbers = #tpu.dot_dimension_numbers<[1], [0], [0], [1], [0, 0, 1, 1], [], []>} : vector<2x64xf32>, vector<64x128xf32>, vector<2x128xf32> -> vector<2x128xf32>
    %337 = vector.broadcast %6 : vector<1x128xf32> to vector<2x128xf32>
    %338 = arith.addf %336, %337 : vector<2x128xf32>
    %339 = arith.negf %338 : vector<2x128xf32>
    %340 = math.exp %339 : vector<2x128xf32>
    %cst_72 = arith.constant 1.000000e+00 : f32
    %341 = vector.broadcast %cst_72 : f32 to vector<2x128xf32>
    %342 = arith.addf %341, %340 : vector<2x128xf32>
    %343 = arith.divf %341, %342 : vector<2x128xf32>
    %344 = math.tanh %338 : vector<2x128xf32>
    %345 = vector.extract_strided_slice %343 {offsets = [0, 0], sizes = [2, 32], strides = [1, 1]} : vector<2x128xf32> to vector<2x32xf32>
    %346 = vector.extract_strided_slice %343 {offsets = [0, 32], sizes = [2, 32], strides = [1, 1]} : vector<2x128xf32> to vector<2x32xf32>
    %347 = vector.extract_strided_slice %344 {offsets = [0, 64], sizes = [2, 32], strides = [1, 1]} : vector<2x128xf32> to vector<2x32xf32>
    %348 = vector.extract_strided_slice %343 {offsets = [0, 96], sizes = [2, 32], strides = [1, 1]} : vector<2x128xf32> to vector<2x32xf32>
    %349 = arith.mulf %346, %295 : vector<2x32xf32>
    %350 = arith.mulf %345, %347 : vector<2x32xf32>
    %351 = arith.addf %349, %350 : vector<2x32xf32>
    %352 = math.tanh %351 : vector<2x32xf32>
    %353 = arith.mulf %348, %352 : vector<2x32xf32>
    %354 = tpu.concatenate %334, %316 in 1 : vector<2x32xf32>, vector<2x32xf32> -> vector<2x64xf32>
    %cst_73 = arith.constant dense<0.000000e+00> : vector<2x128xf32>
    %355 = tpu.matmul %354, %2, %cst_73 {dimension_numbers = #tpu.dot_dimension_numbers<[1], [0], [0], [1], [0, 0, 1, 1], [], []>} : vector<2x64xf32>, vector<64x128xf32>, vector<2x128xf32> -> vector<2x128xf32>
    %356 = vector.broadcast %5 : vector<1x128xf32> to vector<2x128xf32>
    %357 = arith.addf %355, %356 : vector<2x128xf32>
    %358 = arith.negf %357 : vector<2x128xf32>
    %359 = math.exp %358 : vector<2x128xf32>
    %cst_74 = arith.constant 1.000000e+00 : f32
    %360 = vector.broadcast %cst_74 : f32 to vector<2x128xf32>
    %361 = arith.addf %360, %359 : vector<2x128xf32>
    %362 = arith.divf %360, %361 : vector<2x128xf32>
    %363 = math.tanh %357 : vector<2x128xf32>
    %364 = vector.extract_strided_slice %362 {offsets = [0, 0], sizes = [2, 32], strides = [1, 1]} : vector<2x128xf32> to vector<2x32xf32>
    %365 = vector.extract_strided_slice %362 {offsets = [0, 32], sizes = [2, 32], strides = [1, 1]} : vector<2x128xf32> to vector<2x32xf32>
    %366 = vector.extract_strided_slice %363 {offsets = [0, 64], sizes = [2, 32], strides = [1, 1]} : vector<2x128xf32> to vector<2x32xf32>
    %367 = vector.extract_strided_slice %362 {offsets = [0, 96], sizes = [2, 32], strides = [1, 1]} : vector<2x128xf32> to vector<2x32xf32>
    %368 = arith.mulf %365, %314 : vector<2x32xf32>
    %369 = arith.mulf %364, %366 : vector<2x32xf32>
    %370 = arith.addf %368, %369 : vector<2x32xf32>
    %371 = math.tanh %370 : vector<2x32xf32>
    %372 = arith.mulf %367, %371 : vector<2x32xf32>
    %373 = vector.extract_strided_slice %43 {offsets = [12, 0], sizes = [2, 128], strides = [1, 1]} : vector<16x128xf32> to vector<2x128xf32>
    %cst_75 = arith.constant dense<0.000000e+00> : vector<2x128xf32>
    %374 = tpu.matmul %334, %1, %cst_75 {dimension_numbers = #tpu.dot_dimension_numbers<[1], [0], [0], [1], [0, 0, 1, 1], [], []>} : vector<2x32xf32>, vector<32x128xf32>, vector<2x128xf32> -> vector<2x128xf32>
    %375 = arith.addf %373, %374 : vector<2x128xf32>
    %376 = arith.negf %375 : vector<2x128xf32>
    %377 = math.exp %376 : vector<2x128xf32>
    %cst_76 = arith.constant 1.000000e+00 : f32
    %378 = vector.broadcast %cst_76 : f32 to vector<2x128xf32>
    %379 = arith.addf %378, %377 : vector<2x128xf32>
    %380 = arith.divf %378, %379 : vector<2x128xf32>
    %381 = math.tanh %375 : vector<2x128xf32>
    %382 = vector.extract_strided_slice %380 {offsets = [0, 0], sizes = [2, 32], strides = [1, 1]} : vector<2x128xf32> to vector<2x32xf32>
    %383 = vector.extract_strided_slice %380 {offsets = [0, 32], sizes = [2, 32], strides = [1, 1]} : vector<2x128xf32> to vector<2x32xf32>
    %384 = vector.extract_strided_slice %381 {offsets = [0, 64], sizes = [2, 32], strides = [1, 1]} : vector<2x128xf32> to vector<2x32xf32>
    %385 = vector.extract_strided_slice %380 {offsets = [0, 96], sizes = [2, 32], strides = [1, 1]} : vector<2x128xf32> to vector<2x32xf32>
    %386 = arith.mulf %383, %332 : vector<2x32xf32>
    %387 = arith.mulf %382, %384 : vector<2x32xf32>
    %388 = arith.addf %386, %387 : vector<2x32xf32>
    %389 = math.tanh %388 : vector<2x32xf32>
    %390 = arith.mulf %385, %389 : vector<2x32xf32>
    %391 = tpu.concatenate %372, %353 in 1 : vector<2x32xf32>, vector<2x32xf32> -> vector<2x64xf32>
    %cst_77 = arith.constant dense<0.000000e+00> : vector<2x128xf32>
    %392 = tpu.matmul %391, %3, %cst_77 {dimension_numbers = #tpu.dot_dimension_numbers<[1], [0], [0], [1], [0, 0, 1, 1], [], []>} : vector<2x64xf32>, vector<64x128xf32>, vector<2x128xf32> -> vector<2x128xf32>
    %393 = vector.broadcast %6 : vector<1x128xf32> to vector<2x128xf32>
    %394 = arith.addf %392, %393 : vector<2x128xf32>
    %395 = arith.negf %394 : vector<2x128xf32>
    %396 = math.exp %395 : vector<2x128xf32>
    %cst_78 = arith.constant 1.000000e+00 : f32
    %397 = vector.broadcast %cst_78 : f32 to vector<2x128xf32>
    %398 = arith.addf %397, %396 : vector<2x128xf32>
    %399 = arith.divf %397, %398 : vector<2x128xf32>
    %400 = math.tanh %394 : vector<2x128xf32>
    %401 = vector.extract_strided_slice %399 {offsets = [0, 0], sizes = [2, 32], strides = [1, 1]} : vector<2x128xf32> to vector<2x32xf32>
    %402 = vector.extract_strided_slice %399 {offsets = [0, 32], sizes = [2, 32], strides = [1, 1]} : vector<2x128xf32> to vector<2x32xf32>
    %403 = vector.extract_strided_slice %400 {offsets = [0, 64], sizes = [2, 32], strides = [1, 1]} : vector<2x128xf32> to vector<2x32xf32>
    %404 = vector.extract_strided_slice %399 {offsets = [0, 96], sizes = [2, 32], strides = [1, 1]} : vector<2x128xf32> to vector<2x32xf32>
    %405 = arith.mulf %402, %351 : vector<2x32xf32>
    %406 = arith.mulf %401, %403 : vector<2x32xf32>
    %407 = arith.addf %405, %406 : vector<2x32xf32>
    %408 = math.tanh %407 : vector<2x32xf32>
    %409 = arith.mulf %404, %408 : vector<2x32xf32>
    %410 = tpu.concatenate %390, %372 in 1 : vector<2x32xf32>, vector<2x32xf32> -> vector<2x64xf32>
    %cst_79 = arith.constant dense<0.000000e+00> : vector<2x128xf32>
    %411 = tpu.matmul %410, %2, %cst_79 {dimension_numbers = #tpu.dot_dimension_numbers<[1], [0], [0], [1], [0, 0, 1, 1], [], []>} : vector<2x64xf32>, vector<64x128xf32>, vector<2x128xf32> -> vector<2x128xf32>
    %412 = vector.broadcast %5 : vector<1x128xf32> to vector<2x128xf32>
    %413 = arith.addf %411, %412 : vector<2x128xf32>
    %414 = arith.negf %413 : vector<2x128xf32>
    %415 = math.exp %414 : vector<2x128xf32>
    %cst_80 = arith.constant 1.000000e+00 : f32
    %416 = vector.broadcast %cst_80 : f32 to vector<2x128xf32>
    %417 = arith.addf %416, %415 : vector<2x128xf32>
    %418 = arith.divf %416, %417 : vector<2x128xf32>
    %419 = math.tanh %413 : vector<2x128xf32>
    %420 = vector.extract_strided_slice %418 {offsets = [0, 0], sizes = [2, 32], strides = [1, 1]} : vector<2x128xf32> to vector<2x32xf32>
    %421 = vector.extract_strided_slice %418 {offsets = [0, 32], sizes = [2, 32], strides = [1, 1]} : vector<2x128xf32> to vector<2x32xf32>
    %422 = vector.extract_strided_slice %419 {offsets = [0, 64], sizes = [2, 32], strides = [1, 1]} : vector<2x128xf32> to vector<2x32xf32>
    %423 = vector.extract_strided_slice %418 {offsets = [0, 96], sizes = [2, 32], strides = [1, 1]} : vector<2x128xf32> to vector<2x32xf32>
    %424 = arith.mulf %421, %370 : vector<2x32xf32>
    %425 = arith.mulf %420, %422 : vector<2x32xf32>
    %426 = arith.addf %424, %425 : vector<2x32xf32>
    %427 = math.tanh %426 : vector<2x32xf32>
    %428 = arith.mulf %423, %427 : vector<2x32xf32>
    %429 = vector.extract_strided_slice %43 {offsets = [14, 0], sizes = [2, 128], strides = [1, 1]} : vector<16x128xf32> to vector<2x128xf32>
    %cst_81 = arith.constant dense<0.000000e+00> : vector<2x128xf32>
    %430 = tpu.matmul %390, %1, %cst_81 {dimension_numbers = #tpu.dot_dimension_numbers<[1], [0], [0], [1], [0, 0, 1, 1], [], []>} : vector<2x32xf32>, vector<32x128xf32>, vector<2x128xf32> -> vector<2x128xf32>
    %431 = arith.addf %429, %430 : vector<2x128xf32>
    %432 = arith.negf %431 : vector<2x128xf32>
    %433 = math.exp %432 : vector<2x128xf32>
    %cst_82 = arith.constant 1.000000e+00 : f32
    %434 = vector.broadcast %cst_82 : f32 to vector<2x128xf32>
    %435 = arith.addf %434, %433 : vector<2x128xf32>
    %436 = arith.divf %434, %435 : vector<2x128xf32>
    %437 = math.tanh %431 : vector<2x128xf32>
    %438 = vector.extract_strided_slice %436 {offsets = [0, 0], sizes = [2, 32], strides = [1, 1]} : vector<2x128xf32> to vector<2x32xf32>
    %439 = vector.extract_strided_slice %436 {offsets = [0, 32], sizes = [2, 32], strides = [1, 1]} : vector<2x128xf32> to vector<2x32xf32>
    %440 = vector.extract_strided_slice %437 {offsets = [0, 64], sizes = [2, 32], strides = [1, 1]} : vector<2x128xf32> to vector<2x32xf32>
    %441 = vector.extract_strided_slice %436 {offsets = [0, 96], sizes = [2, 32], strides = [1, 1]} : vector<2x128xf32> to vector<2x32xf32>
    %442 = arith.mulf %439, %388 : vector<2x32xf32>
    %443 = arith.mulf %438, %440 : vector<2x32xf32>
    %444 = arith.addf %442, %443 : vector<2x32xf32>
    %445 = math.tanh %444 : vector<2x32xf32>
    %446 = arith.mulf %441, %445 : vector<2x32xf32>
    %447 = tpu.concatenate %428, %409 in 1 : vector<2x32xf32>, vector<2x32xf32> -> vector<2x64xf32>
    %cst_83 = arith.constant dense<0.000000e+00> : vector<2x128xf32>
    %448 = tpu.matmul %447, %3, %cst_83 {dimension_numbers = #tpu.dot_dimension_numbers<[1], [0], [0], [1], [0, 0, 1, 1], [], []>} : vector<2x64xf32>, vector<64x128xf32>, vector<2x128xf32> -> vector<2x128xf32>
    %449 = vector.broadcast %6 : vector<1x128xf32> to vector<2x128xf32>
    %450 = arith.addf %448, %449 : vector<2x128xf32>
    %451 = arith.negf %450 : vector<2x128xf32>
    %452 = math.exp %451 : vector<2x128xf32>
    %cst_84 = arith.constant 1.000000e+00 : f32
    %453 = vector.broadcast %cst_84 : f32 to vector<2x128xf32>
    %454 = arith.addf %453, %452 : vector<2x128xf32>
    %455 = arith.divf %453, %454 : vector<2x128xf32>
    %456 = math.tanh %450 : vector<2x128xf32>
    %457 = vector.extract_strided_slice %455 {offsets = [0, 0], sizes = [2, 32], strides = [1, 1]} : vector<2x128xf32> to vector<2x32xf32>
    %458 = vector.extract_strided_slice %455 {offsets = [0, 32], sizes = [2, 32], strides = [1, 1]} : vector<2x128xf32> to vector<2x32xf32>
    %459 = vector.extract_strided_slice %456 {offsets = [0, 64], sizes = [2, 32], strides = [1, 1]} : vector<2x128xf32> to vector<2x32xf32>
    %460 = vector.extract_strided_slice %455 {offsets = [0, 96], sizes = [2, 32], strides = [1, 1]} : vector<2x128xf32> to vector<2x32xf32>
    %461 = arith.mulf %458, %407 : vector<2x32xf32>
    %462 = arith.mulf %457, %459 : vector<2x32xf32>
    %463 = arith.addf %461, %462 : vector<2x32xf32>
    %464 = math.tanh %463 : vector<2x32xf32>
    %465 = arith.mulf %460, %464 : vector<2x32xf32>
    %466 = tpu.concatenate %446, %428 in 1 : vector<2x32xf32>, vector<2x32xf32> -> vector<2x64xf32>
    %cst_85 = arith.constant dense<0.000000e+00> : vector<2x128xf32>
    %467 = tpu.matmul %466, %2, %cst_85 {dimension_numbers = #tpu.dot_dimension_numbers<[1], [0], [0], [1], [0, 0, 1, 1], [], []>} : vector<2x64xf32>, vector<64x128xf32>, vector<2x128xf32> -> vector<2x128xf32>
    %468 = vector.broadcast %5 : vector<1x128xf32> to vector<2x128xf32>
    %469 = arith.addf %467, %468 : vector<2x128xf32>
    %470 = arith.negf %469 : vector<2x128xf32>
    %471 = math.exp %470 : vector<2x128xf32>
    %cst_86 = arith.constant 1.000000e+00 : f32
    %472 = vector.broadcast %cst_86 : f32 to vector<2x128xf32>
    %473 = arith.addf %472, %471 : vector<2x128xf32>
    %474 = arith.divf %472, %473 : vector<2x128xf32>
    %475 = math.tanh %469 : vector<2x128xf32>
    %476 = vector.extract_strided_slice %474 {offsets = [0, 0], sizes = [2, 32], strides = [1, 1]} : vector<2x128xf32> to vector<2x32xf32>
    %477 = vector.extract_strided_slice %474 {offsets = [0, 32], sizes = [2, 32], strides = [1, 1]} : vector<2x128xf32> to vector<2x32xf32>
    %478 = vector.extract_strided_slice %475 {offsets = [0, 64], sizes = [2, 32], strides = [1, 1]} : vector<2x128xf32> to vector<2x32xf32>
    %479 = vector.extract_strided_slice %474 {offsets = [0, 96], sizes = [2, 32], strides = [1, 1]} : vector<2x128xf32> to vector<2x32xf32>
    %480 = arith.mulf %477, %426 : vector<2x32xf32>
    %481 = arith.mulf %476, %478 : vector<2x32xf32>
    %482 = arith.addf %480, %481 : vector<2x32xf32>
    %483 = math.tanh %482 : vector<2x32xf32>
    %484 = arith.mulf %479, %483 : vector<2x32xf32>
    %485 = tpu.concatenate %484, %465 in 1 : vector<2x32xf32>, vector<2x32xf32> -> vector<2x64xf32>
    %cst_87 = arith.constant dense<0.000000e+00> : vector<2x128xf32>
    %486 = tpu.matmul %485, %3, %cst_87 {dimension_numbers = #tpu.dot_dimension_numbers<[1], [0], [0], [1], [0, 0, 1, 1], [], []>} : vector<2x64xf32>, vector<64x128xf32>, vector<2x128xf32> -> vector<2x128xf32>
    %487 = vector.broadcast %6 : vector<1x128xf32> to vector<2x128xf32>
    %488 = arith.addf %486, %487 : vector<2x128xf32>
    %489 = arith.negf %488 : vector<2x128xf32>
    %490 = math.exp %489 : vector<2x128xf32>
    %cst_88 = arith.constant 1.000000e+00 : f32
    %491 = vector.broadcast %cst_88 : f32 to vector<2x128xf32>
    %492 = arith.addf %491, %490 : vector<2x128xf32>
    %493 = arith.divf %491, %492 : vector<2x128xf32>
    %494 = math.tanh %488 : vector<2x128xf32>
    %495 = vector.extract_strided_slice %493 {offsets = [0, 0], sizes = [2, 32], strides = [1, 1]} : vector<2x128xf32> to vector<2x32xf32>
    %496 = vector.extract_strided_slice %493 {offsets = [0, 32], sizes = [2, 32], strides = [1, 1]} : vector<2x128xf32> to vector<2x32xf32>
    %497 = vector.extract_strided_slice %494 {offsets = [0, 64], sizes = [2, 32], strides = [1, 1]} : vector<2x128xf32> to vector<2x32xf32>
    %498 = vector.extract_strided_slice %493 {offsets = [0, 96], sizes = [2, 32], strides = [1, 1]} : vector<2x128xf32> to vector<2x32xf32>
    %499 = arith.mulf %496, %463 : vector<2x32xf32>
    %500 = arith.mulf %495, %497 : vector<2x32xf32>
    %501 = arith.addf %499, %500 : vector<2x32xf32>
    %502 = math.tanh %501 : vector<2x32xf32>
    %503 = arith.mulf %498, %502 : vector<2x32xf32>
    %504 = tpu.concatenate %129, %185, %241, %297, %353, %409, %465, %503 in 0 : vector<2x32xf32>, vector<2x32xf32>, vector<2x32xf32>, vector<2x32xf32>, vector<2x32xf32>, vector<2x32xf32>, vector<2x32xf32>, vector<2x32xf32> -> vector<16x32xf32>
    %cst_89 = arith.constant dense<0.000000e+00> : vector<16x32xf32>
    %505 = tpu.matmul %42, %504, %cst_89 {dimension_numbers = #tpu.dot_dimension_numbers<[1], [0], [0], [1], [0, 0, 1, 1], [], []>} : vector<16x16xf32>, vector<16x32xf32>, vector<16x32xf32> -> vector<16x32xf32>
    %cst_90 = arith.constant dense<0.000000e+00> : vector<16x40xf32>
    %506 = tpu.matmul %505, %7, %cst_90 {dimension_numbers = #tpu.dot_dimension_numbers<[1], [0], [0], [1], [0, 0, 1, 1], [], []>} : vector<16x32xf32>, vector<32x40xf32>, vector<16x40xf32> -> vector<16x40xf32>
    %507 = vector.broadcast %8 : vector<1x40xf32> to vector<16x40xf32>
    %508 = arith.addf %506, %507 : vector<16x40xf32>
    %c0_91 = arith.constant 0 : index
    %c0_92 = arith.constant 0 : index
    %509 = vector.load %arg3[%c0_91, %c0_92] : memref<16x40xf32, #tpu.memory_space<vmem>>, vector<16x40xf32>
    tpu.vector_store %arg3[%c0_91, %c0_92], %508 {strides = array<i32>} : memref<16x40xf32, #tpu.memory_space<vmem>>, vector<16x40xf32>,
    %c0_93 = arith.constant 0 : index
    %c0_94 = arith.constant 0 : index
    %c0_95 = arith.constant 0 : index
    %c0_96 = arith.constant 0 : index
    %510 = vector.load %arg4[%c0_93, %c0_94, %c0_95, %c0_96] : memref<2x3x2x32xf32, #tpu.memory_space<vmem>>, vector<1x1x2x32xf32>
    %511 = vector.shape_cast %510 : vector<1x1x2x32xf32> to vector<2x32xf32>
    %512 = vector.shape_cast %446 : vector<2x32xf32> to vector<1x1x2x32xf32>
    tpu.vector_store %arg4[%c0_93, %c0_94, %c0_95, %c0_96], %512 {strides = array<i32>} : memref<2x3x2x32xf32, #tpu.memory_space<vmem>>, vector<1x1x2x32xf32>,
    %c1_97 = arith.constant 1 : index
    %c0_98 = arith.constant 0 : index
    %c0_99 = arith.constant 0 : index
    %c0_100 = arith.constant 0 : index
    %513 = vector.load %arg4[%c1_97, %c0_98, %c0_99, %c0_100] : memref<2x3x2x32xf32, #tpu.memory_space<vmem>>, vector<1x1x2x32xf32>
    %514 = vector.shape_cast %513 : vector<1x1x2x32xf32> to vector<2x32xf32>
    %515 = vector.shape_cast %444 : vector<2x32xf32> to vector<1x1x2x32xf32>
    tpu.vector_store %arg4[%c1_97, %c0_98, %c0_99, %c0_100], %515 {strides = array<i32>} : memref<2x3x2x32xf32, #tpu.memory_space<vmem>>, vector<1x1x2x32xf32>,
    %c0_101 = arith.constant 0 : index
    %c1_102 = arith.constant 1 : index
    %c0_103 = arith.constant 0 : index
    %c0_104 = arith.constant 0 : index
    %516 = vector.load %arg4[%c0_101, %c1_102, %c0_103, %c0_104] : memref<2x3x2x32xf32, #tpu.memory_space<vmem>>, vector<1x1x2x32xf32>
    %517 = vector.shape_cast %516 : vector<1x1x2x32xf32> to vector<2x32xf32>
    %518 = vector.shape_cast %484 : vector<2x32xf32> to vector<1x1x2x32xf32>
    tpu.vector_store %arg4[%c0_101, %c1_102, %c0_103, %c0_104], %518 {strides = array<i32>} : memref<2x3x2x32xf32, #tpu.memory_space<vmem>>, vector<1x1x2x32xf32>,
    %c1_105 = arith.constant 1 : index
    %c1_106 = arith.constant 1 : index
    %c0_107 = arith.constant 0 : index
    %c0_108 = arith.constant 0 : index
    %519 = vector.load %arg4[%c1_105, %c1_106, %c0_107, %c0_108] : memref<2x3x2x32xf32, #tpu.memory_space<vmem>>, vector<1x1x2x32xf32>
    %520 = vector.shape_cast %519 : vector<1x1x2x32xf32> to vector<2x32xf32>
    %521 = vector.shape_cast %482 : vector<2x32xf32> to vector<1x1x2x32xf32>
    tpu.vector_store %arg4[%c1_105, %c1_106, %c0_107, %c0_108], %521 {strides = array<i32>} : memref<2x3x2x32xf32, #tpu.memory_space<vmem>>, vector<1x1x2x32xf32>,
    %c0_109 = arith.constant 0 : index
    %c2_110 = arith.constant 2 : index
    %c0_111 = arith.constant 0 : index
    %c0_112 = arith.constant 0 : index
    %522 = vector.load %arg4[%c0_109, %c2_110, %c0_111, %c0_112] : memref<2x3x2x32xf32, #tpu.memory_space<vmem>>, vector<1x1x2x32xf32>
    %523 = vector.shape_cast %522 : vector<1x1x2x32xf32> to vector<2x32xf32>
    %524 = vector.shape_cast %503 : vector<2x32xf32> to vector<1x1x2x32xf32>
    tpu.vector_store %arg4[%c0_109, %c2_110, %c0_111, %c0_112], %524 {strides = array<i32>} : memref<2x3x2x32xf32, #tpu.memory_space<vmem>>, vector<1x1x2x32xf32>,
    %c1_113 = arith.constant 1 : index
    %c2_114 = arith.constant 2 : index
    %c0_115 = arith.constant 0 : index
    %c0_116 = arith.constant 0 : index
    %525 = vector.load %arg4[%c1_113, %c2_114, %c0_115, %c0_116] : memref<2x3x2x32xf32, #tpu.memory_space<vmem>>, vector<1x1x2x32xf32>
    %526 = vector.shape_cast %525 : vector<1x1x2x32xf32> to vector<2x32xf32>
    %527 = vector.shape_cast %501 : vector<2x32xf32> to vector<1x1x2x32xf32>
    tpu.vector_store %arg4[%c1_113, %c2_114, %c0_115, %c0_116], %527 {strides = array<i32>} : memref<2x3x2x32xf32, #tpu.memory_space<vmem>>, vector<1x1x2x32xf32>,
    return
  }
}

</mosaic_0001>

<llo_original>
// kernel: rnn_lm_forward.1
$region0: #{rnn_lm_forward.1}
  #allocation0 [shape = 'u32[]', space=smem, size = 0x4, offset = 0x4, fixed_abs, tag = 'smem constant byte address 0x4 - core index']
  #allocation1 [shape = 'u32[144,128]{1,0:T(1,128)}', space=vmem, size = 0x12000, scoped, tag = 'internal scratch']
  %s0 = inlined_call_operand.vmem [shape: s32[16,1], index: 0, kind: input, shape index: {}]
  %s1 = inlined_call_operand.hbm [shape: f32[264,128], index: 1, kind: input, shape index: {}]
  %s2 = inlined_call_operand.vmem [shape: f32[2,3,2,32], index: 2, kind: input, shape index: {}]
  %s3 = inlined_call_operand.hbm [shape: f32[16,40], index: 3, kind: output, shape index: {0}]
  %s4 = inlined_call_operand.vmem [shape: f32[2,3,2,32], index: 4, kind: output, shape index: {1}]
  %5 = xla_tuple %s3, %s4
  %s6 = sld [smem:[#allocation0]]
  $region34: #{rnn_lm_forward.1} parent=0
    _
  %s8 = ssub.s32 1, %s6
  %s9 = scalar_select 0, %s8, %s6
  $region1: #{rnn_lm_forward.1} parent=0
    #allocation2 [shape = 'u8[135168]{0}', space=vmem, size = 0x21000, scoped, tag = 'input window, operand 1, single buffered']
    #allocation3 [shape = 's32[1]{0}', space=sflag, size = 0x4, scoped, tag = 'scoped memory for rnn_lm_forward.1']
    #allocation4 [shape = 's32[1]{0}', space=sflag, size = 0x4, scoped, tag = 'scoped memory for rnn_lm_forward.1']
    #allocation5 [shape = 'u8[8192]{0}', space=vmem, size = 0x2000, scoped, tag = 'output window, operand 0, single buffered']
    %10 = vsyncpa [#allocation3], 0
    %11 = vsyncpa [#allocation4], 0
    // Predicated region
    $region2: #{rnn_lm_forward.1} parent=1 // pred_check
      _
    $region3: #{rnn_lm_forward.1} parent=1 // pred_check_branch
      %13 = sbr.rel (0) target = $region5
    $region4: #{rnn_lm_forward.1} parent=1 // pred_region
      _
    $region5: #{rnn_lm_forward.1} parent=1 // pred_fallthru
      _
    // Predicated region
    $region6: #{rnn_lm_forward.1} parent=1 // pred_check
      _
    $region7: #{rnn_lm_forward.1} parent=1 // pred_check_branch
      %15 = sbr.rel (0) target = $region9
    $region8: #{rnn_lm_forward.1} parent=1 // pred_region
      %s17 = ssub.s32 4224, 4224
      %18 = vsyncadd [#allocation3], %s17
      %s19 = sshll.u32 [#allocation2], 4
      %s20 = int_to_ptr.vmem [resolvable:$true] %s19
      %25 = dma.hbm_to_vmem [thread:$0]  %s1, 4224, %s20, [#allocation3], 128, 128, 8
    $region9: #{rnn_lm_forward.1} parent=1 // pred_fallthru
      _
    // Predicated region
    $region10: #{rnn_lm_forward.1} parent=1 // pred_check
      _
    $region11: #{rnn_lm_forward.1} parent=1 // pred_check_branch
      %27 = sbr.rel (0) target = $region13
    $region12: #{rnn_lm_forward.1} parent=1 // pred_region
      _
    $region13: #{rnn_lm_forward.1} parent=1 // pred_fallthru
      _
    // Predicated region
    $region14: #{rnn_lm_forward.1} parent=1 // pred_check
      _
    $region15: #{rnn_lm_forward.1} parent=1 // pred_check_branch
      %29 = sbr.rel (0) target = $region17
    $region16: #{rnn_lm_forward.1} parent=1 // pred_region
      %30 = dma.done [#allocation3], 4224
    $region17: #{rnn_lm_forward.1} parent=1 // pred_fallthru
      _
    %v31 = vld [vmem:[#allocation2] sm:$0xff]
    %v32 = vld [vmem:[#allocation2 + $0x8] sm:$0xff]
    %v33 = vld [vmem:[#allocation2 + $0x10] sm:$0xff]
    %v34 = vld [vmem:[#allocation2 + $0x18] sm:$0xff]
    %v35 = vld [vmem:[#allocation2 + $0x20] sm:$0xff]
    %v36 = vld [vmem:[#allocation2 + $0x28] sm:$0xff]
    %v37 = vld [vmem:[#allocation2 + $0x30] sm:$0xff]
    %v38 = vld [vmem:[#allocation2 + $0x38] sm:$0xff]
    %v39 = vld [vmem:[#allocation2 + $0x40] sm:$0xff]
    %v40 = vld [vmem:[#allocation2 + $0x48] sm:$0xff]
    %v41 = vld [vmem:[#allocation2 + $0x50] sm:$0xff]
    %v42 = vld [vmem:[#allocation2 + $0x58] sm:$0xff]
    %v43 = vld [vmem:[#allocation2 + $0x60] sm:$0xff]
    %v44 = vld [vmem:[#allocation2 + $0x68] sm:$0xff]
    %v45 = vld [vmem:[#allocation2 + $0x70] sm:$0xff]
    %v46 = vld [vmem:[#allocation2 + $0x78] sm:$0xff]
    %v47 = vld [vmem:[#allocation2 + $0x80] sm:$0xff]
    %v48 = vld [vmem:[#allocation2 + $0x88] sm:$0xff]
    %v49 = vld [vmem:[#allocation2 + $0x90] sm:$0xff]
    %v50 = vld [vmem:[#allocation2 + $0x98] sm:$0xff]
    %v51 = vld [vmem:[#allocation2 + $0xa0] sm:$0xff]
    %v52 = vld [vmem:[#allocation2 + $0xa8] sm:$0xff]
    %v53 = vld [vmem:[#allocation2 + $0xb0] sm:$0xff]
    %v54 = vld [vmem:[#allocation2 + $0xb8] sm:$0xff]
    %v55 = vld [vmem:[#allocation2 + $0xc0] sm:$0xff]
    %v56 = vld [vmem:[#allocation2 + $0xc8] sm:$0x1]
    %v57 = vld [vmem:[#allocation2 + $0xd0] sm:$0x1]
    %v58 = vld [vmem:[#allocation2 + $0xd8] sm:$0x1]
    %v59 = vld [vmem:[#allocation2 + $0xe0] sm:$0xff]
    %v60 = vld [vmem:[#allocation2 + $0xe8] sm:$0xff]
    %v61 = vld [vmem:[#allocation2 + $0xf0] sm:$0xff]
    %v62 = vld [vmem:[#allocation2 + $0xf8] sm:$0xff]
    %v63 = vld [vmem:[#allocation2 + $0x100] sm:$0x1]
    %v64 = vld [vmem:[%s0] sm:$0xff]
    %v65 = vld [vmem:[%s0 + $0x8] sm:$0xff]
    %v66 = vlaneseq
    %v67 = vand.u32 %v66, 127
    %68 = vset.pattern.permute.xlu0 0
    %69 = vperm.xlu0 %68, %v64
    %v70 = vpop.permute.xlu0 %69
    %71 = vset.pattern.permute.xlu0 0
    %72 = vperm.xlu0 %71, %v65
    %v73 = vpop.permute.xlu0 %72
    %vm74 = vcmp.eq.s32.totalorder %v67, %v70
    %vm75 = vcmp.eq.s32.totalorder %v67, %v73
    %v76 = vsel %vm74, 1.0, 0.0
    %v77 = vsel %vm75, 1.0, 0.0
    %v78 = vlaneseq
    %v79 = vshrl.u32 %v78, 7
    %v80 = vsub.s32 0, %v79
    %v81 = vrot.slane %v56, %v80
    %vm82 = vcmask 326656
    %v84 = vsel %vm82, %v76, 0
    %v87 = vsel %vm82, %v77, 0
    %89 = vmatprep.subr.mxu0 0.0
    %90 = vmatpush1.msra.mxu0 %v31
    %91 = vmatprep.subr.mxu0 0.0
    %92 = vmatpush1.msra.mxu0 %v32
    %93 = vmatprep.subr.mxu0 0.0
    %94 = vmatpush1.msra.mxu0 %v33
    %95 = vmatprep.subr.mxu0 0.0
    %96 = vmatpush1.msra.mxu0 %v34
    %97 = vmatprep.subr.mxu0 0.0
    %98 = vmatpush1.msra.mxu0 %v35
    %99 = vmatprep.subr.mxu0 0.0
    %100 = vmatpush1.msra.mxu0 0.0
    %101 = vmatprep.subr.mxu0 0.0
    %102 = vmatpush1.msra.mxu0 0.0
    %103 = vmatprep.subr.mxu0 0.0
    %104 = vmatpush1.msra.mxu0 0.0
    %105 = vmatprep.subr.mxu0 0.0
    %106 = vmatpush1.msra.mxu0 0.0
    %107 = vmatprep.subr.mxu0 0.0
    %108 = vmatpush1.msra.mxu0 0.0
    %109 = vmatprep.subr.mxu0 0.0
    %110 = vmatpush1.msra.mxu0 0.0
    %111 = vmatprep.subr.mxu0 0.0
    %112 = vmatpush1.msra.mxu0 0.0
    %113 = vmatprep.subr.mxu0 0.0
    %114 = vmatpush1.msra.mxu0 0.0
    %115 = vmatprep.subr.mxu0 0.0
    %116 = vmatpush1.msra.mxu0 0.0
    %117 = vmatprep.subr.mxu0 0.0
    %118 = vmatpush1.msra.mxu0 0.0
    %119 = vmatprep.subr.mxu0 0.0
    %120 = vmatpush1.msra.mxu0 0.0
    %121 = vmatprep.subr.mxu0 0.0
    %122 = vmatpush1.msra.mxu0 0.0
    %123 = vmatprep.subr.mxu0 0.0
    %124 = vmatpush1.msra.mxu0 0.0
    %125 = vmatprep.subr.mxu0 0.0
    %126 = vmatpush1.msra.mxu0 0.0
    %127 = vmatprep.subr.mxu0 0.0
    %128 = vmatpush1.msra.mxu0 0.0
    %129 = vmatprep.subr.mxu0 0.0
    %130 = vmatpush1.msra.mxu0 0.0
    %131 = vmatprep.subr.mxu0 0.0
    %132 = vmatpush1.msra.mxu0 0.0
    %133 = vmatprep.subr.mxu0 0.0
    %134 = vmatpush1.msra.mxu0 0.0
    %135 = vmatprep.subr.mxu0 0.0
    %136 = vmatpush1.msra.mxu0 0.0
    %137 = vmatprep.subr.mxu0 0.0
    %138 = vmatpush1.msra.mxu0 0.0
    %139 = vmatprep.subr.mxu0 0.0
    %140 = vmatpush1.msra.mxu0 0.0
    %141 = vmatprep.subr.mxu0 0.0
    %142 = vmatpush1.msra.mxu0 0.0
    %143 = vmatprep.subr.mxu0 0.0
    %144 = vmatpush1.msra.mxu0 0.0
    %145 = vmatprep.subr.mxu0 0.0
    %146 = vmatpush1.msra.mxu0 0.0
    %147 = vmatprep.subr.mxu0 0.0
    %148 = vmatpush1.msra.mxu0 0.0
    %149 = vmatprep.subr.mxu0 0.0
    %150 = vmatpush1.msra.mxu0 0.0
    %151 = vmatprep.subr.mxu0 0.0
    %152 = vmatpush1.msra.mxu0 0.0
    %153 = vmatprep.mubr.f32.mxu0 0.0
    %154 = vmatmul.mubr.f32.gmra.mrb[0].mxu0 %v84
    %v155 = vpop.f32.mrb[0].mxu0
    %v156 = vadd.f32 %v81, %v155
    %v157 = vpop.f32.mrb[0].mxu0
    %158 = vmatprep.mubr.f32.mxu0 0.0
    %159 = vmatmul.mubr.f32.gmra.mrb[0].mxu0 %v87
    %v160 = vpop.f32.mrb[0].mxu0
    %v161 = vadd.f32 %v81, %v160
    %v162 = vpop.f32.mrb[0].mxu0
    %163 = vdwg.mxu0
    %v164 = vlaneseq
    %v165 = vshrl.u32 %v164, 7
    %v166 = vadd.s32 %v165, 8
    %v167 = vand.u32 %v165, 1
    %v168 = vand.u32 %v166, 1
    %v169 = vmul.u32 %v167, 8
    %v170 = vmul.u32 %v168, 8
    %v171 = vshra.s32 %v165, 1
    %v172 = vshra.s32 %v166, 1
    %v173 = vadd.s32 %v169, %v171
    %v174 = vadd.s32 %v170, %v172
    %vm175 = vcmp.eq.s32.totalorder %v67, %v173
    %vm176 = vcmp.eq.s32.totalorder %v67, %v174
    %v177 = vsel %vm175, 1.0, 0.0
    %v178 = vsel %vm176, 1.0, 0.0
    %v179 = vand.u32 %v165, 7
    %v180 = vand.u32 %v166, 7
    %v181 = vmul.u32 %v179, 2
    %v182 = vmul.u32 %v180, 2
    %v183 = vshra.s32 %v165, 3
    %v184 = vshra.s32 %v166, 3
    %v185 = vadd.s32 %v181, %v183
    %v186 = vadd.s32 %v182, %v184
    %vm187 = vcmp.eq.s32.totalorder %v67, %v185
    %vm188 = vcmp.eq.s32.totalorder %v67, %v186
    %v189 = vsel %vm187, 1.0, 0.0
    %v190 = vsel %vm188, 1.0, 0.0
    %vm191 = vcmask 130048
    %v193 = vsel %vm191, %v177, 0
    %v196 = vsel %vm191, %v178, 0
    %198 = vmatprep.subr.mxu0 0.0
    %199 = vmatpush1.msra.mxu0 %v156
    %200 = vmatprep.subr.mxu0 0.0
    %201 = vmatpush1.msra.mxu0 %v161
    %202 = vmatprep.subr.mxu0 0.0
    %203 = vmatpush1.msra.mxu0 0.0
    %204 = vmatprep.subr.mxu0 0.0
    %205 = vmatpush1.msra.mxu0 0.0
    %206 = vmatprep.subr.mxu0 0.0
    %207 = vmatpush1.msra.mxu0 0.0
    %208 = vmatprep.subr.mxu0 0.0
    %209 = vmatpush1.msra.mxu0 0.0
    %210 = vmatprep.subr.mxu0 0.0
    %211 = vmatpush1.msra.mxu0 0.0
    %212 = vmatprep.subr.mxu0 0.0
    %213 = vmatpush1.msra.mxu0 0.0
    %214 = vmatprep.subr.mxu0 0.0
    %215 = vmatpush1.msra.mxu0 0.0
    %216 = vmatprep.subr.mxu0 0.0
    %217 = vmatpush1.msra.mxu0 0.0
    %218 = vmatprep.subr.mxu0 0.0
    %219 = vmatpush1.msra.mxu0 0.0
    %220 = vmatprep.subr.mxu0 0.0
    %221 = vmatpush1.msra.mxu0 0.0
    %222 = vmatprep.subr.mxu0 0.0
    %223 = vmatpush1.msra.mxu0 0.0
    %224 = vmatprep.subr.mxu0 0.0
    %225 = vmatpush1.msra.mxu0 0.0
    %226 = vmatprep.subr.mxu0 0.0
    %227 = vmatpush1.msra.mxu0 0.0
    %228 = vmatprep.subr.mxu0 0.0
    %229 = vmatpush1.msra.mxu0 0.0
    %230 = vmatprep.subr.mxu0 0.0
    %231 = vmatpush1.msra.mxu0 0.0
    %232 = vmatprep.subr.mxu0 0.0
    %233 = vmatpush1.msra.mxu0 0.0
    %234 = vmatprep.subr.mxu0 0.0
    %235 = vmatpush1.msra.mxu0 0.0
    %236 = vmatprep.subr.mxu0 0.0
    %237 = vmatpush1.msra.mxu0 0.0
    %238 = vmatprep.subr.mxu0 0.0
    %239 = vmatpush1.msra.mxu0 0.0
    %240 = vmatprep.subr.mxu0 0.0
    %241 = vmatpush1.msra.mxu0 0.0
    %242 = vmatprep.subr.mxu0 0.0
    %243 = vmatpush1.msra.mxu0 0.0
    %244 = vmatprep.subr.mxu0 0.0
    %245 = vmatpush1.msra.mxu0 0.0
    %246 = vmatprep.subr.mxu0 0.0
    %247 = vmatpush1.msra.mxu0 0.0
    %248 = vmatprep.subr.mxu0 0.0
    %249 = vmatpush1.msra.mxu0 0.0
    %250 = vmatprep.subr.mxu0 0.0
    %251 = vmatpush1.msra.mxu0 0.0
    %252 = vmatprep.subr.mxu0 0.0
    %253 = vmatpush1.msra.mxu0 0.0
    %254 = vmatprep.subr.mxu0 0.0
    %255 = vmatpush1.msra.mxu0 0.0
    %256 = vmatprep.subr.mxu0 0.0
    %257 = vmatpush1.msra.mxu0 0.0
    %258 = vmatprep.subr.mxu0 0.0
    %259 = vmatpush1.msra.mxu0 0.0
    %260 = vmatprep.subr.mxu0 0.0
    %261 = vmatpush1.msra.mxu0 0.0
    %262 = vmatprep.mubr.f32.mxu0 0.0
    %263 = vmatmul.mubr.f32.gmra.mrb[0].mxu0 %v193
    %v264 = vpop.f32.mrb[0].mxu0
    %v265 = vadd.f32 0.0, %v264
    %v266 = vpop.f32.mrb[0].mxu0
    %267 = vmatprep.mubr.f32.mxu0 0.0
    %268 = vmatmul.mubr.f32.gmra.mrb[0].mxu0 %v196
    %v269 = vpop.f32.mrb[0].mxu0
    %v270 = vadd.f32 0.0, %v269
    %v271 = vpop.f32.mrb[0].mxu0
    %272 = vdwg.mxu0
    %v273 = vld [vmem:[%s2] sm:$0x3]
    %s274 = scalar_lea.vmem %s2, 2
    %v275 = vld [vmem:[%s274] sm:$0x3]
    %s276 = scalar_lea.vmem %s2, 4
    %v277 = vld [vmem:[%s276] sm:$0x3]
    %s278 = scalar_lea.vmem %s2, 6
    %v279 = vld [vmem:[%s278] sm:$0x3]
    %s280 = scalar_lea.vmem %s2, 8
    %v281 = vld [vmem:[%s280] sm:$0x3]
    %s282 = scalar_lea.vmem %s2, 10
    %v283 = vld [vmem:[%s282] sm:$0x3]
    %vm284 = vcmask 261120
    %v286 = vsel %vm284, %v273, 0
    %288 = vmatprep.subr.mxu0 0.0
    %289 = vmatpush1.msra.mxu0 %v36
    %290 = vmatprep.subr.mxu0 0.0
    %291 = vmatpush1.msra.mxu0 %v37
    %292 = vmatprep.subr.mxu0 0.0
    %293 = vmatpush1.msra.mxu0 %v38
    %294 = vmatprep.subr.mxu0 0.0
    %295 = vmatpush1.msra.mxu0 %v39
    %296 = vmatprep.subr.mxu0 0.0
    %297 = vmatpush1.msra.mxu0 0.0
    %298 = vmatprep.subr.mxu0 0.0
    %299 = vmatpush1.msra.mxu0 0.0
    %300 = vmatprep.subr.mxu0 0.0
    %301 = vmatpush1.msra.mxu0 0.0
    %302 = vmatprep.subr.mxu0 0.0
    %303 = vmatpush1.msra.mxu0 0.0
    %304 = vmatprep.subr.mxu0 0.0
    %305 = vmatpush1.msra.mxu0 0.0
    %306 = vmatprep.subr.mxu0 0.0
    %307 = vmatpush1.msra.mxu0 0.0
    %308 = vmatprep.subr.mxu0 0.0
    %309 = vmatpush1.msra.mxu0 0.0
    %310 = vmatprep.subr.mxu0 0.0
    %311 = vmatpush1.msra.mxu0 0.0
    %312 = vmatprep.subr.mxu0 0.0
    %313 = vmatpush1.msra.mxu0 0.0
    %314 = vmatprep.subr.mxu0 0.0
    %315 = vmatpush1.msra.mxu0 0.0
    %316 = vmatprep.subr.mxu0 0.0
    %317 = vmatpush1.msra.mxu0 0.0
    %318 = vmatprep.subr.mxu0 0.0
    %319 = vmatpush1.msra.mxu0 0.0
    %320 = vmatprep.subr.mxu0 0.0
    %321 = vmatpush1.msra.mxu0 0.0
    %322 = vmatprep.subr.mxu0 0.0
    %323 = vmatpush1.msra.mxu0 0.0
    %324 = vmatprep.subr.mxu0 0.0
    %325 = vmatpush1.msra.mxu0 0.0
    %326 = vmatprep.subr.mxu0 0.0
    %327 = vmatpush1.msra.mxu0 0.0
    %328 = vmatprep.subr.mxu0 0.0
    %329 = vmatpush1.msra.mxu0 0.0
    %330 = vmatprep.subr.mxu0 0.0
    %331 = vmatpush1.msra.mxu0 0.0
    %332 = vmatprep.subr.mxu0 0.0
    %333 = vmatpush1.msra.mxu0 0.0
    %334 = vmatprep.subr.mxu0 0.0
    %335 = vmatpush1.msra.mxu0 0.0
    %336 = vmatprep.subr.mxu0 0.0
    %337 = vmatpush1.msra.mxu0 0.0
    %338 = vmatprep.subr.mxu0 0.0
    %339 = vmatpush1.msra.mxu0 0.0
    %340 = vmatprep.subr.mxu0 0.0
    %341 = vmatpush1.msra.mxu0 0.0
    %342 = vmatprep.subr.mxu0 0.0
    %343 = vmatpush1.msra.mxu0 0.0
    %344 = vmatprep.subr.mxu0 0.0
    %345 = vmatpush1.msra.mxu0 0.0
    %346 = vmatprep.subr.mxu0 0.0
    %347 = vmatpush1.msra.mxu0 0.0
    %348 = vmatprep.subr.mxu0 0.0
    %349 = vmatpush1.msra.mxu0 0.0
    %350 = vmatprep.subr.mxu0 0.0
    %351 = vmatpush1.msra.mxu0 0.0
    %352 = vmatprep.mubr.f32.mxu0 0.0
    %353 = vmatmul.mubr.f32.gmra.mrb[0].mxu0 %v286
    %v354 = vpop.f32.mrb[0].mxu0
    %v355 = vadd.f32 0.0, %v354
    %v356 = vpop.f32.mrb[0].mxu0
    %357 = vdwg.mxu0
    %v358 = vadd.f32 %v265, %v355
    %v359 = vxor.u32 %v358, 2147483648
    %v360 = vmul.f32 %v359, 1.442695
    %v361 = vpow.pop %v360
    %v362 = vadd.f32 %v361, 1.0
    %v363 = vrcp.pop %v362
    %v364 = vmul.f32 1.0, %v363
    %v365 = vtanh.pop %v358
    %367 = vrot.lane.b32.xlu0 %v279, 32
    %v368 = vpop.permute.xlu0 %367
    %v370 = vmul.f32 %v364, %v368
    %372 = vrot.lane.b32.xlu0 %v365, 64
    %v373 = vpop.permute.xlu0 %372
    %v375 = vmul.f32 %v364, %v373
    %377 = vrot.lane.b32.xlu0 %v375, 32
    %v378 = vpop.permute.xlu0 %377
    %v380 = vadd.f32 %v370, %v378
    %v381 = vtanh.pop %v380
    %383 = vrot.lane.b32.xlu0 %v381, 64
    %v384 = vpop.permute.xlu0 %383
    %v386 = vmul.f32 %v364, %v384
    %388 = vrot.lane.b32.xlu0 %v386, 32
    %v389 = vpop.permute.xlu0 %388
    %392 = vrot.lane.b32.xlu0 %v275, 32
    %v393 = vpop.permute.xlu0 %392
    %v395 = vsel %vm284, %v389, %v393
    %v396 = vlaneseq
    %v397 = vshrl.u32 %v396, 7
    %v398 = vsub.s32 0, %v397
    %v399 = vrot.slane %v57, %v398
    %vm400 = vcmask 523264
    %v402 = vsel %vm400, %v395, 0
    %404 = vmatprep.subr.mxu0 0.0
    %405 = vmatpush1.msra.mxu0 %v40
    %406 = vmatprep.subr.mxu0 0.0
    %407 = vmatpush1.msra.mxu0 %v41
    %408 = vmatprep.subr.mxu0 0.0
    %409 = vmatpush1.msra.mxu0 %v42
    %410 = vmatprep.subr.mxu0 0.0
    %411 = vmatpush1.msra.mxu0 %v43
    %412 = vmatprep.subr.mxu0 0.0
    %413 = vmatpush1.msra.mxu0 %v44
    %414 = vmatprep.subr.mxu0 0.0
    %415 = vmatpush1.msra.mxu0 %v45
    %416 = vmatprep.subr.mxu0 0.0
    %417 = vmatpush1.msra.mxu0 %v46
    %418 = vmatprep.subr.mxu0 0.0
    %419 = vmatpush1.msra.mxu0 %v47
    %420 = vmatprep.subr.mxu0 0.0
    %421 = vmatpush1.msra.mxu0 0.0
    %422 = vmatprep.subr.mxu0 0.0
    %423 = vmatpush1.msra.mxu0 0.0
    %424 = vmatprep.subr.mxu0 0.0
    %425 = vmatpush1.msra.mxu0 0.0
    %426 = vmatprep.subr.mxu0 0.0
    %427 = vmatpush1.msra.mxu0 0.0
    %428 = vmatprep.subr.mxu0 0.0
    %429 = vmatpush1.msra.mxu0 0.0
    %430 = vmatprep.subr.mxu0 0.0
    %431 = vmatpush1.msra.mxu0 0.0
    %432 = vmatprep.subr.mxu0 0.0
    %433 = vmatpush1.msra.mxu0 0.0
    %434 = vmatprep.subr.mxu0 0.0
    %435 = vmatpush1.msra.mxu0 0.0
    %436 = vmatprep.subr.mxu0 0.0
    %437 = vmatpush1.msra.mxu0 0.0
    %438 = vmatprep.subr.mxu0 0.0
    %439 = vmatpush1.msra.mxu0 0.0
    %440 = vmatprep.subr.mxu0 0.0
    %441 = vmatpush1.msra.mxu0 0.0
    %442 = vmatprep.subr.mxu0 0.0
    %443 = vmatpush1.msra.mxu0 0.0
    %444 = vmatprep.subr.mxu0 0.0
    %445 = vmatpush1.msra.mxu0 0.0
    %446 = vmatprep.subr.mxu0 0.0
    %447 = vmatpush1.msra.mxu0 0.0
    %448 = vmatprep.subr.mxu0 0.0
    %449 = vmatpush1.msra.mxu0 0.0
    %450 = vmatprep.subr.mxu0 0.0
    %451 = vmatpush1.msra.mxu0 0.0
    %452 = vmatprep.subr.mxu0 0.0
    %453 = vmatpush1.msra.mxu0 0.0
    %454 = vmatprep.subr.mxu0 0.0
    %455 = vmatpush1.msra.mxu0 0.0
    %456 = vmatprep.subr.mxu0 0.0
    %457 = vmatpush1.msra.mxu0 0.0
    %458 = vmatprep.subr.mxu0 0.0
    %459 = vmatpush1.msra.mxu0 0.0
    %460 = vmatprep.subr.mxu0 0.0
    %461 = vmatpush1.msra.mxu0 0.0
    %462 = vmatprep.subr.mxu0 0.0
    %463 = vmatpush1.msra.mxu0 0.0
    %464 = vmatprep.subr.mxu0 0.0
    %465 = vmatpush1.msra.mxu0 0.0
    %466 = vmatprep.subr.mxu0 0.0
    %467 = vmatpush1.msra.mxu0 0.0
    %468 = vmatprep.mubr.f32.mxu0 0.0
    %469 = vmatmul.mubr.f32.gmra.mrb[0].mxu0 %v402
    %v470 = vpop.f32.mrb[0].mxu0
    %v471 = vadd.f32 %v399, %v470
    %v472 = vpop.f32.mrb[0].mxu0
    %473 = vdwg.mxu0
    %v474 = vxor.u32 %v471, 2147483648
    %v475 = vmul.f32 %v474, 1.442695
    %v476 = vpow.pop %v475
    %v477 = vadd.f32 %v476, 1.0
    %v478 = vrcp.pop %v477
    %v479 = vmul.f32 1.0, %v478
    %v480 = vtanh.pop %v471
    %482 = vrot.lane.b32.xlu0 %v281, 32
    %v483 = vpop.permute.xlu0 %482
    %v485 = vmul.f32 %v479, %v483
    %487 = vrot.lane.b32.xlu0 %v480, 64
    %v488 = vpop.permute.xlu0 %487
    %v490 = vmul.f32 %v479, %v488
    %492 = vrot.lane.b32.xlu0 %v490, 32
    %v493 = vpop.permute.xlu0 %492
    %v495 = vadd.f32 %v485, %v493
    %v496 = vtanh.pop %v495
    %498 = vrot.lane.b32.xlu0 %v496, 64
    %v499 = vpop.permute.xlu0 %498
    %v501 = vmul.f32 %v479, %v499
    %v502 = vsel %vm284, %v389, 0
    %504 = vmatprep.subr.mxu0 0.0
    %505 = vmatpush1.msra.mxu0 %v36
    %506 = vmatprep.subr.mxu0 0.0
    %507 = vmatpush1.msra.mxu0 %v37
    %508 = vmatprep.subr.mxu0 0.0
    %509 = vmatpush1.msra.mxu0 %v38
    %510 = vmatprep.subr.mxu0 0.0
    %511 = vmatpush1.msra.mxu0 %v39
    %512 = vmatprep.subr.mxu0 0.0
    %513 = vmatpush1.msra.mxu0 0.0
    %514 = vmatprep.subr.mxu0 0.0
    %515 = vmatpush1.msra.mxu0 0.0
    %516 = vmatprep.subr.mxu0 0.0
    %517 = vmatpush1.msra.mxu0 0.0
    %518 = vmatprep.subr.mxu0 0.0
    %519 = vmatpush1.msra.mxu0 0.0
    %520 = vmatprep.subr.mxu0 0.0
    %521 = vmatpush1.msra.mxu0 0.0
    %522 = vmatprep.subr.mxu0 0.0
    %523 = vmatpush1.msra.mxu0 0.0
    %524 = vmatprep.subr.mxu0 0.0
    %525 = vmatpush1.msra.mxu0 0.0
    %526 = vmatprep.subr.mxu0 0.0
    %527 = vmatpush1.msra.mxu0 0.0
    %528 = vmatprep.subr.mxu0 0.0
    %529 = vmatpush1.msra.mxu0 0.0
    %530 = vmatprep.subr.mxu0 0.0
    %531 = vmatpush1.msra.mxu0 0.0
    %532 = vmatprep.subr.mxu0 0.0
    %533 = vmatpush1.msra.mxu0 0.0
    %534 = vmatprep.subr.mxu0 0.0
    %535 = vmatpush1.msra.mxu0 0.0
    %536 = vmatprep.subr.mxu0 0.0
    %537 = vmatpush1.msra.mxu0 0.0
    %538 = vmatprep.subr.mxu0 0.0
    %539 = vmatpush1.msra.mxu0 0.0
    %540 = vmatprep.subr.mxu0 0.0
    %541 = vmatpush1.msra.mxu0 0.0
    %542 = vmatprep.subr.mxu0 0.0
    %543 = vmatpush1.msra.mxu0 0.0
    %544 = vmatprep.subr.mxu0 0.0
    %545 = vmatpush1.msra.mxu0 0.0
    %546 = vmatprep.subr.mxu0 0.0
    %547 = vmatpush1.msra.mxu0 0.0
    %548 = vmatprep.subr.mxu0 0.0
    %549 = vmatpush1.msra.mxu0 0.0
    %550 = vmatprep.subr.mxu0 0.0
    %551 = vmatpush1.msra.mxu0 0.0
    %552 = vmatprep.subr.mxu0 0.0
    %553 = vmatpush1.msra.mxu0 0.0
    %554 = vmatprep.subr.mxu0 0.0
    %555 = vmatpush1.msra.mxu0 0.0
    %556 = vmatprep.subr.mxu0 0.0
    %557 = vmatpush1.msra.mxu0 0.0
    %558 = vmatprep.subr.mxu0 0.0
    %559 = vmatpush1.msra.mxu0 0.0
    %560 = vmatprep.subr.mxu0 0.0
    %561 = vmatpush1.msra.mxu0 0.0
    %562 = vmatprep.subr.mxu0 0.0
    %563 = vmatpush1.msra.mxu0 0.0
    %564 = vmatprep.subr.mxu0 0.0
    %565 = vmatpush1.msra.mxu0 0.0
    %566 = vmatprep.subr.mxu0 0.0
    %567 = vmatpush1.msra.mxu0 0.0
    %568 = vmatprep.mubr.f32.mxu0 0.0
    %569 = vmatmul.mubr.f32.gmra.mrb[0].mxu0 %v502
    %v570 = vpop.f32.mrb[0].mxu0
    %v571 = vadd.f32 0.0, %v570
    %v572 = vpop.f32.mrb[0].mxu0
    %573 = vdwg.mxu0
    %v575 = vrot.slane %v571, 6
    %v577 = vadd.f32 %v265, %v575
    %v578 = vxor.u32 %v577, 2147483648
    %v579 = vmul.f32 %v578, 1.442695
    %v580 = vpow.pop %v579
    %v581 = vadd.f32 %v580, 1.0
    %v582 = vrcp.pop %v581
    %v583 = vmul.f32 1.0, %v582
    %v584 = vtanh.pop %v577
    %v586 = vrot.slane %v380, 6
    %v588 = vmul.f32 %v583, %v586
    %590 = vrot.lane.b32.xlu0 %v584, 64
    %v591 = vpop.permute.xlu0 %590
    %v593 = vmul.f32 %v583, %v591
    %595 = vrot.lane.b32.xlu0 %v593, 32
    %v596 = vpop.permute.xlu0 %595
    %v598 = vadd.f32 %v588, %v596
    %v599 = vtanh.pop %v598
    %601 = vrot.lane.b32.xlu0 %v599, 64
    %v602 = vpop.permute.xlu0 %601
    %v604 = vmul.f32 %v583, %v602
    %606 = vrot.lane.b32.xlu0 %v501, 32
    %v607 = vpop.permute.xlu0 %606
    %610 = vrot.lane.b32.xlu0 %v277, 32
    %v611 = vpop.permute.xlu0 %610
    %v613 = vsel %vm284, %v607, %v611
    %v614 = vlaneseq
    %v615 = vshrl.u32 %v614, 7
    %v616 = vsub.s32 0, %v615
    %v617 = vrot.slane %v58, %v616
    %v619 = vsel %vm400, %v613, 0
    %621 = vmatprep.subr.mxu0 0.0
    %622 = vmatpush1.msra.mxu0 %v48
    %623 = vmatprep.subr.mxu0 0.0
    %624 = vmatpush1.msra.mxu0 %v49
    %625 = vmatprep.subr.mxu0 0.0
    %626 = vmatpush1.msra.mxu0 %v50
    %627 = vmatprep.subr.mxu0 0.0
    %628 = vmatpush1.msra.mxu0 %v51
    %629 = vmatprep.subr.mxu0 0.0
    %630 = vmatpush1.msra.mxu0 %v52
    %631 = vmatprep.subr.mxu0 0.0
    %632 = vmatpush1.msra.mxu0 %v53
    %633 = vmatprep.subr.mxu0 0.0
    %634 = vmatpush1.msra.mxu0 %v54
    %635 = vmatprep.subr.mxu0 0.0
    %636 = vmatpush1.msra.mxu0 %v55
    %637 = vmatprep.subr.mxu0 0.0
    %638 = vmatpush1.msra.mxu0 0.0
    %639 = vmatprep.subr.mxu0 0.0
    %640 = vmatpush1.msra.mxu0 0.0
    %641 = vmatprep.subr.mxu0 0.0
    %642 = vmatpush1.msra.mxu0 0.0
    %643 = vmatprep.subr.mxu0 0.0
    %644 = vmatpush1.msra.mxu0 0.0
    %645 = vmatprep.subr.mxu0 0.0
    %646 = vmatpush1.msra.mxu0 0.0
    %647 = vmatprep.subr.mxu0 0.0
    %648 = vmatpush1.msra.mxu0 0.0
    %649 = vmatprep.subr.mxu0 0.0
    %650 = vmatpush1.msra.mxu0 0.0
    %651 = vmatprep.subr.mxu0 0.0
    %652 = vmatpush1.msra.mxu0 0.0
    %653 = vmatprep.subr.mxu0 0.0
    %654 = vmatpush1.msra.mxu0 0.0
    %655 = vmatprep.subr.mxu0 0.0
    %656 = vmatpush1.msra.mxu0 0.0
    %657 = vmatprep.subr.mxu0 0.0
    %658 = vmatpush1.msra.mxu0 0.0
    %659 = vmatprep.subr.mxu0 0.0
    %660 = vmatpush1.msra.mxu0 0.0
    %661 = vmatprep.subr.mxu0 0.0
    %662 = vmatpush1.msra.mxu0 0.0
    %663 = vmatprep.subr.mxu0 0.0
    %664 = vmatpush1.msra.mxu0 0.0
    %665 = vmatprep.subr.mxu0 0.0
    %666 = vmatpush1.msra.mxu0 0.0
    %667 = vmatprep.subr.mxu0 0.0
    %668 = vmatpush1.msra.mxu0 0.0
    %669 = vmatprep.subr.mxu0 0.0
    %670 = vmatpush1.msra.mxu0 0.0
    %671 = vmatprep.subr.mxu0 0.0
    %672 = vmatpush1.msra.mxu0 0.0
    %673 = vmatprep.subr.mxu0 0.0
    %674 = vmatpush1.msra.mxu0 0.0
    %675 = vmatprep.subr.mxu0 0.0
    %676 = vmatpush1.msra.mxu0 0.0
    %677 = vmatprep.subr.mxu0 0.0
    %678 = vmatpush1.msra.mxu0 0.0
    %679 = vmatprep.subr.mxu0 0.0
    %680 = vmatpush1.msra.mxu0 0.0
    %681 = vmatprep.subr.mxu0 0.0
    %682 = vmatpush1.msra.mxu0 0.0
    %683 = vmatprep.subr.mxu0 0.0
    %684 = vmatpush1.msra.mxu0 0.0
    %685 = vmatprep.mubr.f32.mxu0 0.0
    %686 = vmatmul.mubr.f32.gmra.mrb[0].mxu0 %v619
    %v687 = vpop.f32.mrb[0].mxu0
    %v688 = vadd.f32 %v617, %v687
    %v689 = vpop.f32.mrb[0].mxu0
    %690 = vdwg.mxu0
    %v691 = vxor.u32 %v688, 2147483648
    %v692 = vmul.f32 %v691, 1.442695
    %v693 = vpow.pop %v692
    %v694 = vadd.f32 %v693, 1.0
    %v695 = vrcp.pop %v694
    %v696 = vmul.f32 1.0, %v695
    %v697 = vtanh.pop %v688
    %699 = vrot.lane.b32.xlu0 %v283, 32
    %v700 = vpop.permute.xlu0 %699
    %v702 = vmul.f32 %v696, %v700
    %704 = vrot.lane.b32.xlu0 %v697, 64
    %v705 = vpop.permute.xlu0 %704
    %v707 = vmul.f32 %v696, %v705
    %709 = vrot.lane.b32.xlu0 %v707, 32
    %v710 = vpop.permute.xlu0 %709
    %v712 = vadd.f32 %v702, %v710
    %v713 = vtanh.pop %v712
    %715 = vrot.lane.b32.xlu0 %v713, 64
    %v716 = vpop.permute.xlu0 %715
    %v718 = vmul.f32 %v696, %v716
    %720 = vrot.lane.b32.xlu0 %v604, 32
    %v721 = vpop.permute.xlu0 %720
    %v723 = vrot.slane %v501, 6
    %724 = vrot.lane.b32.xlu0 %v723, 64
    %v725 = vpop.permute.xlu0 %724
    %v727 = vsel %vm284, %v721, %v725
    %v729 = vrot.slane %v727, 2
    %v730 = vsel %vm400, %v729, 0
    %732 = vmatprep.subr.mxu0 0.0
    %733 = vmatpush1.msra.mxu0 %v40
    %734 = vmatprep.subr.mxu0 0.0
    %735 = vmatpush1.msra.mxu0 %v41
    %736 = vmatprep.subr.mxu0 0.0
    %737 = vmatpush1.msra.mxu0 %v42
    %738 = vmatprep.subr.mxu0 0.0
    %739 = vmatpush1.msra.mxu0 %v43
    %740 = vmatprep.subr.mxu0 0.0
    %741 = vmatpush1.msra.mxu0 %v44
    %742 = vmatprep.subr.mxu0 0.0
    %743 = vmatpush1.msra.mxu0 %v45
    %744 = vmatprep.subr.mxu0 0.0
    %745 = vmatpush1.msra.mxu0 %v46
    %746 = vmatprep.subr.mxu0 0.0
    %747 = vmatpush1.msra.mxu0 %v47
    %748 = vmatprep.subr.mxu0 0.0
    %749 = vmatpush1.msra.mxu0 0.0
    %750 = vmatprep.subr.mxu0 0.0
    %751 = vmatpush1.msra.mxu0 0.0
    %752 = vmatprep.subr.mxu0 0.0
    %753 = vmatpush1.msra.mxu0 0.0
    %754 = vmatprep.subr.mxu0 0.0
    %755 = vmatpush1.msra.mxu0 0.0
    %756 = vmatprep.subr.mxu0 0.0
    %757 = vmatpush1.msra.mxu0 0.0
    %758 = vmatprep.subr.mxu0 0.0
    %759 = vmatpush1.msra.mxu0 0.0
    %760 = vmatprep.subr.mxu0 0.0
    %761 = vmatpush1.msra.mxu0 0.0
    %762 = vmatprep.subr.mxu0 0.0
    %763 = vmatpush1.msra.mxu0 0.0
    %764 = vmatprep.subr.mxu0 0.0
    %765 = vmatpush1.msra.mxu0 0.0
    %766 = vmatprep.subr.mxu0 0.0
    %767 = vmatpush1.msra.mxu0 0.0
    %768 = vmatprep.subr.mxu0 0.0
    %769 = vmatpush1.msra.mxu0 0.0
    %770 = vmatprep.subr.mxu0 0.0
    %771 = vmatpush1.msra.mxu0 0.0
    %772 = vmatprep.subr.mxu0 0.0
    %773 = vmatpush1.msra.mxu0 0.0
    %774 = vmatprep.subr.mxu0 0.0
    %775 = vmatpush1.msra.mxu0 0.0
    %776 = vmatprep.subr.mxu0 0.0
    %777 = vmatpush1.msra.mxu0 0.0
    %778 = vmatprep.subr.mxu0 0.0
    %779 = vmatpush1.msra.mxu0 0.0
    %780 = vmatprep.subr.mxu0 0.0
    %781 = vmatpush1.msra.mxu0 0.0
    %782 = vmatprep.subr.mxu0 0.0
    %783 = vmatpush1.msra.mxu0 0.0
    %784 = vmatprep.subr.mxu0 0.0
    %785 = vmatpush1.msra.mxu0 0.0
    %786 = vmatprep.subr.mxu0 0.0
    %787 = vmatpush1.msra.mxu0 0.0
    %788 = vmatprep.subr.mxu0 0.0
    %789 = vmatpush1.msra.mxu0 0.0
    %790 = vmatprep.subr.mxu0 0.0
    %791 = vmatpush1.msra.mxu0 0.0
    %792 = vmatprep.subr.mxu0 0.0
    %793 = vmatpush1.msra.mxu0 0.0
    %794 = vmatprep.subr.mxu0 0.0
    %795 = vmatpush1.msra.mxu0 0.0
    %796 = vmatprep.mubr.f32.mxu0 0.0
    %797 = vmatmul.mubr.f32.gmra.mrb[0].mxu0 %v730
    %v798 = vpop.f32.mrb[0].mxu0
    %v799 = vadd.f32 %v399, %v798
    %v800 = vpop.f32.mrb[0].mxu0
    %801 = vdwg.mxu0
    %v802 = vxor.u32 %v799, 2147483648
    %v803 = vmul.f32 %v802, 1.442695
    %v804 = vpow.pop %v803
    %v805 = vadd.f32 %v804, 1.0
    %v806 = vrcp.pop %v805
    %v807 = vmul.f32 1.0, %v806
    %v808 = vtanh.pop %v799
    %v809 = vmul.f32 %v807, %v495
    %811 = vrot.lane.b32.xlu0 %v808, 64
    %v812 = vpop.permute.xlu0 %811
    %v814 = vmul.f32 %v807, %v812
    %816 = vrot.lane.b32.xlu0 %v814, 32
    %v817 = vpop.permute.xlu0 %816
    %v819 = vadd.f32 %v809, %v817
    %v820 = vtanh.pop %v819
    %822 = vrot.lane.b32.xlu0 %v820, 64
    %v823 = vpop.permute.xlu0 %822
    %v825 = vmul.f32 %v807, %v823
    %v826 = vrot.slane %v604, 2
    %827 = vrot.lane.b32.xlu0 %v826, 32
    %v828 = vpop.permute.xlu0 %827
    %v829 = vsel %vm284, %v828, 0
    %831 = vmatprep.subr.mxu0 0.0
    %832 = vmatpush1.msra.mxu0 %v36
    %833 = vmatprep.subr.mxu0 0.0
    %834 = vmatpush1.msra.mxu0 %v37
    %835 = vmatprep.subr.mxu0 0.0
    %836 = vmatpush1.msra.mxu0 %v38
    %837 = vmatprep.subr.mxu0 0.0
    %838 = vmatpush1.msra.mxu0 %v39
    %839 = vmatprep.subr.mxu0 0.0
    %840 = vmatpush1.msra.mxu0 0.0
    %841 = vmatprep.subr.mxu0 0.0
    %842 = vmatpush1.msra.mxu0 0.0
    %843 = vmatprep.subr.mxu0 0.0
    %844 = vmatpush1.msra.mxu0 0.0
    %845 = vmatprep.subr.mxu0 0.0
    %846 = vmatpush1.msra.mxu0 0.0
    %847 = vmatprep.subr.mxu0 0.0
    %848 = vmatpush1.msra.mxu0 0.0
    %849 = vmatprep.subr.mxu0 0.0
    %850 = vmatpush1.msra.mxu0 0.0
    %851 = vmatprep.subr.mxu0 0.0
    %852 = vmatpush1.msra.mxu0 0.0
    %853 = vmatprep.subr.mxu0 0.0
    %854 = vmatpush1.msra.mxu0 0.0
    %855 = vmatprep.subr.mxu0 0.0
    %856 = vmatpush1.msra.mxu0 0.0
    %857 = vmatprep.subr.mxu0 0.0
    %858 = vmatpush1.msra.mxu0 0.0
    %859 = vmatprep.subr.mxu0 0.0
    %860 = vmatpush1.msra.mxu0 0.0
    %861 = vmatprep.subr.mxu0 0.0
    %862 = vmatpush1.msra.mxu0 0.0
    %863 = vmatprep.subr.mxu0 0.0
    %864 = vmatpush1.msra.mxu0 0.0
    %865 = vmatprep.subr.mxu0 0.0
    %866 = vmatpush1.msra.mxu0 0.0
    %867 = vmatprep.subr.mxu0 0.0
    %868 = vmatpush1.msra.mxu0 0.0
    %869 = vmatprep.subr.mxu0 0.0
    %870 = vmatpush1.msra.mxu0 0.0
    %871 = vmatprep.subr.mxu0 0.0
    %872 = vmatpush1.msra.mxu0 0.0
    %873 = vmatprep.subr.mxu0 0.0
    %874 = vmatpush1.msra.mxu0 0.0
    %875 = vmatprep.subr.mxu0 0.0
    %876 = vmatpush1.msra.mxu0 0.0
    %877 = vmatprep.subr.mxu0 0.0
    %878 = vmatpush1.msra.mxu0 0.0
    %879 = vmatprep.subr.mxu0 0.0
    %880 = vmatpush1.msra.mxu0 0.0
    %881 = vmatprep.subr.mxu0 0.0
    %882 = vmatpush1.msra.mxu0 0.0
    %883 = vmatprep.subr.mxu0 0.0
    %884 = vmatpush1.msra.mxu0 0.0
    %885 = vmatprep.subr.mxu0 0.0
    %886 = vmatpush1.msra.mxu0 0.0
    %887 = vmatprep.subr.mxu0 0.0
    %888 = vmatpush1.msra.mxu0 0.0
    %889 = vmatprep.subr.mxu0 0.0
    %890 = vmatpush1.msra.mxu0 0.0
    %891 = vmatprep.subr.mxu0 0.0
    %892 = vmatpush1.msra.mxu0 0.0
    %893 = vmatprep.subr.mxu0 0.0
    %894 = vmatpush1.msra.mxu0 0.0
    %895 = vmatprep.mubr.f32.mxu0 0.0
    %896 = vmatmul.mubr.f32.gmra.mrb[0].mxu0 %v829
    %v897 = vpop.f32.mrb[0].mxu0
    %v898 = vadd.f32 0.0, %v897
    %v899 = vpop.f32.mrb[0].mxu0
    %900 = vdwg.mxu0
    %v902 = vrot.slane %v898, 4
    %v904 = vadd.f32 %v265, %v902
    %v905 = vxor.u32 %v904, 2147483648
    %v906 = vmul.f32 %v905, 1.442695
    %v907 = vpow.pop %v906
    %v908 = vadd.f32 %v907, 1.0
    %v909 = vrcp.pop %v908
    %v910 = vmul.f32 1.0, %v909
    %v911 = vtanh.pop %v904
    %v913 = vrot.slane %v598, 6
    %v915 = vmul.f32 %v910, %v913
    %917 = vrot.lane.b32.xlu0 %v911, 64
    %v918 = vpop.permute.xlu0 %917
    %v920 = vmul.f32 %v910, %v918
    %922 = vrot.lane.b32.xlu0 %v920, 32
    %v923 = vpop.permute.xlu0 %922
    %v925 = vadd.f32 %v915, %v923
    %v926 = vtanh.pop %v925
    %928 = vrot.lane.b32.xlu0 %v926, 64
    %v929 = vpop.permute.xlu0 %928
    %v931 = vmul.f32 %v910, %v929
    %933 = vrot.lane.b32.xlu0 %v825, 32
    %v934 = vpop.permute.xlu0 %933
    %937 = vrot.lane.b32.xlu0 %v718, 64
    %v938 = vpop.permute.xlu0 %937
    %v940 = vsel %vm284, %v934, %v938
    %v942 = vsel %vm400, %v940, 0
    %944 = vmatprep.subr.mxu0 0.0
    %945 = vmatpush1.msra.mxu0 %v48
    %946 = vmatprep.subr.mxu0 0.0
    %947 = vmatpush1.msra.mxu0 %v49
    %948 = vmatprep.subr.mxu0 0.0
    %949 = vmatpush1.msra.mxu0 %v50
    %950 = vmatprep.subr.mxu0 0.0
    %951 = vmatpush1.msra.mxu0 %v51
    %952 = vmatprep.subr.mxu0 0.0
    %953 = vmatpush1.msra.mxu0 %v52
    %954 = vmatprep.subr.mxu0 0.0
    %955 = vmatpush1.msra.mxu0 %v53
    %956 = vmatprep.subr.mxu0 0.0
    %957 = vmatpush1.msra.mxu0 %v54
    %958 = vmatprep.subr.mxu0 0.0
    %959 = vmatpush1.msra.mxu0 %v55
    %960 = vmatprep.subr.mxu0 0.0
    %961 = vmatpush1.msra.mxu0 0.0
    %962 = vmatprep.subr.mxu0 0.0
    %963 = vmatpush1.msra.mxu0 0.0
    %964 = vmatprep.subr.mxu0 0.0
    %965 = vmatpush1.msra.mxu0 0.0
    %966 = vmatprep.subr.mxu0 0.0
    %967 = vmatpush1.msra.mxu0 0.0
    %968 = vmatprep.subr.mxu0 0.0
    %969 = vmatpush1.msra.mxu0 0.0
    %970 = vmatprep.subr.mxu0 0.0
    %971 = vmatpush1.msra.mxu0 0.0
    %972 = vmatprep.subr.mxu0 0.0
    %973 = vmatpush1.msra.mxu0 0.0
    %974 = vmatprep.subr.mxu0 0.0
    %975 = vmatpush1.msra.mxu0 0.0
    %976 = vmatprep.subr.mxu0 0.0
    %977 = vmatpush1.msra.mxu0 0.0
    %978 = vmatprep.subr.mxu0 0.0
    %979 = vmatpush1.msra.mxu0 0.0
    %980 = vmatprep.subr.mxu0 0.0
    %981 = vmatpush1.msra.mxu0 0.0
    %982 = vmatprep.subr.mxu0 0.0
    %983 = vmatpush1.msra.mxu0 0.0
    %984 = vmatprep.subr.mxu0 0.0
    %985 = vmatpush1.msra.mxu0 0.0
    %986 = vmatprep.subr.mxu0 0.0
    %987 = vmatpush1.msra.mxu0 0.0
    %988 = vmatprep.subr.mxu0 0.0
    %989 = vmatpush1.msra.mxu0 0.0
    %990 = vmatprep.subr.mxu0 0.0
    %991 = vmatpush1.msra.mxu0 0.0
    %992 = vmatprep.subr.mxu0 0.0
    %993 = vmatpush1.msra.mxu0 0.0
    %994 = vmatprep.subr.mxu0 0.0
    %995 = vmatpush1.msra.mxu0 0.0
    %996 = vmatprep.subr.mxu0 0.0
    %997 = vmatpush1.msra.mxu0 0.0
    %998 = vmatprep.subr.mxu0 0.0
    %999 = vmatpush1.msra.mxu0 0.0
    %1000 = vmatprep.subr.mxu0 0.0
    %1001 = vmatpush1.msra.mxu0 0.0
    %1002 = vmatprep.subr.mxu0 0.0
    %1003 = vmatpush1.msra.mxu0 0.0
    %1004 = vmatprep.subr.mxu0 0.0
    %1005 = vmatpush1.msra.mxu0 0.0
    %1006 = vmatprep.subr.mxu0 0.0
    %1007 = vmatpush1.msra.mxu0 0.0
    %1008 = vmatprep.mubr.f32.mxu0 0.0
    %1009 = vmatmul.mubr.f32.gmra.mrb[0].mxu0 %v942
    %v1010 = vpop.f32.mrb[0].mxu0
    %v1011 = vadd.f32 %v617, %v1010
    %v1012 = vpop.f32.mrb[0].mxu0
    %1013 = vdwg.mxu0
    %v1014 = vxor.u32 %v1011, 2147483648
    %v1015 = vmul.f32 %v1014, 1.442695
    %v1016 = vpow.pop %v1015
    %v1017 = vadd.f32 %v1016, 1.0
    %v1018 = vrcp.pop %v1017
    %v1019 = vmul.f32 1.0, %v1018
    %v1020 = vtanh.pop %v1011
    %v1021 = vmul.f32 %v1019, %v712
    %1023 = vrot.lane.b32.xlu0 %v1020, 64
    %v1024 = vpop.permute.xlu0 %1023
    %v1026 = vmul.f32 %v1019, %v1024
    %1028 = vrot.lane.b32.xlu0 %v1026, 32
    %v1029 = vpop.permute.xlu0 %1028
    %v1031 = vadd.f32 %v1021, %v1029
    %v1032 = vtanh.pop %v1031
    %1034 = vrot.lane.b32.xlu0 %v1032, 64
    %v1035 = vpop.permute.xlu0 %1034
    %v1037 = vmul.f32 %v1019, %v1035
    %1039 = vrot.lane.b32.xlu0 %v931, 32
    %v1040 = vpop.permute.xlu0 %1039
    %v1042 = vrot.slane %v825, 4
    %1043 = vrot.lane.b32.xlu0 %v1042, 64
    %v1044 = vpop.permute.xlu0 %1043
    %v1046 = vsel %vm284, %v1040, %v1044
    %v1048 = vrot.slane %v1046, 4
    %v1049 = vsel %vm400, %v1048, 0
    %1051 = vmatprep.subr.mxu0 0.0
    %1052 = vmatpush1.msra.mxu0 %v40
    %1053 = vmatprep.subr.mxu0 0.0
    %1054 = vmatpush1.msra.mxu0 %v41
    %1055 = vmatprep.subr.mxu0 0.0
    %1056 = vmatpush1.msra.mxu0 %v42
    %1057 = vmatprep.subr.mxu0 0.0
    %1058 = vmatpush1.msra.mxu0 %v43
    %1059 = vmatprep.subr.mxu0 0.0
    %1060 = vmatpush1.msra.mxu0 %v44
    %1061 = vmatprep.subr.mxu0 0.0
    %1062 = vmatpush1.msra.mxu0 %v45
    %1063 = vmatprep.subr.mxu0 0.0
    %1064 = vmatpush1.msra.mxu0 %v46
    %1065 = vmatprep.subr.mxu0 0.0
    %1066 = vmatpush1.msra.mxu0 %v47
    %1067 = vmatprep.subr.mxu0 0.0
    %1068 = vmatpush1.msra.mxu0 0.0
    %1069 = vmatprep.subr.mxu0 0.0
    %1070 = vmatpush1.msra.mxu0 0.0
    %1071 = vmatprep.subr.mxu0 0.0
    %1072 = vmatpush1.msra.mxu0 0.0
    %1073 = vmatprep.subr.mxu0 0.0
    %1074 = vmatpush1.msra.mxu0 0.0
    %1075 = vmatprep.subr.mxu0 0.0
    %1076 = vmatpush1.msra.mxu0 0.0
    %1077 = vmatprep.subr.mxu0 0.0
    %1078 = vmatpush1.msra.mxu0 0.0
    %1079 = vmatprep.subr.mxu0 0.0
    %1080 = vmatpush1.msra.mxu0 0.0
    %1081 = vmatprep.subr.mxu0 0.0
    %1082 = vmatpush1.msra.mxu0 0.0
    %1083 = vmatprep.subr.mxu0 0.0
    %1084 = vmatpush1.msra.mxu0 0.0
    %1085 = vmatprep.subr.mxu0 0.0
    %1086 = vmatpush1.msra.mxu0 0.0
    %1087 = vmatprep.subr.mxu0 0.0
    %1088 = vmatpush1.msra.mxu0 0.0
    %1089 = vmatprep.subr.mxu0 0.0
    %1090 = vmatpush1.msra.mxu0 0.0
    %1091 = vmatprep.subr.mxu0 0.0
    %1092 = vmatpush1.msra.mxu0 0.0
    %1093 = vmatprep.subr.mxu0 0.0
    %1094 = vmatpush1.msra.mxu0 0.0
    %1095 = vmatprep.subr.mxu0 0.0
    %1096 = vmatpush1.msra.mxu0 0.0
    %1097 = vmatprep.subr.mxu0 0.0
    %1098 = vmatpush1.msra.mxu0 0.0
    %1099 = vmatprep.subr.mxu0 0.0
    %1100 = vmatpush1.msra.mxu0 0.0
    %1101 = vmatprep.subr.mxu0 0.0
    %1102 = vmatpush1.msra.mxu0 0.0
    %1103 = vmatprep.subr.mxu0 0.0
    %1104 = vmatpush1.msra.mxu0 0.0
    %1105 = vmatprep.subr.mxu0 0.0
    %1106 = vmatpush1.msra.mxu0 0.0
    %1107 = vmatprep.subr.mxu0 0.0
    %1108 = vmatpush1.msra.mxu0 0.0
    %1109 = vmatprep.subr.mxu0 0.0
    %1110 = vmatpush1.msra.mxu0 0.0
    %1111 = vmatprep.subr.mxu0 0.0
    %1112 = vmatpush1.msra.mxu0 0.0
    %1113 = vmatprep.subr.mxu0 0.0
    %1114 = vmatpush1.msra.mxu0 0.0
    %1115 = vmatprep.mubr.f32.mxu0 0.0
    %1116 = vmatmul.mubr.f32.gmra.mrb[0].mxu0 %v1049
    %v1117 = vpop.f32.mrb[0].mxu0
    %v1118 = vadd.f32 %v399, %v1117
    %v1119 = vpop.f32.mrb[0].mxu0
    %1120 = vdwg.mxu0
    %v1121 = vxor.u32 %v1118, 2147483648
    %v1122 = vmul.f32 %v1121, 1.442695
    %v1123 = vpow.pop %v1122
    %v1124 = vadd.f32 %v1123, 1.0
    %v1125 = vrcp.pop %v1124
    %v1126 = vmul.f32 1.0, %v1125
    %v1127 = vtanh.pop %v1118
    %v1128 = vmul.f32 %v1126, %v819
    %1130 = vrot.lane.b32.xlu0 %v1127, 64
    %v1131 = vpop.permute.xlu0 %1130
    %v1133 = vmul.f32 %v1126, %v1131
    %1135 = vrot.lane.b32.xlu0 %v1133, 32
    %v1136 = vpop.permute.xlu0 %1135
    %v1138 = vadd.f32 %v1128, %v1136
    %v1139 = vtanh.pop %v1138
    %1141 = vrot.lane.b32.xlu0 %v1139, 64
    %v1142 = vpop.permute.xlu0 %1141
    %v1144 = vmul.f32 %v1126, %v1142
    %v1145 = vrot.slane %v931, 4
    %1146 = vrot.lane.b32.xlu0 %v1145, 32
    %v1147 = vpop.permute.xlu0 %1146
    %v1148 = vsel %vm284, %v1147, 0
    %1150 = vmatprep.subr.mxu0 0.0
    %1151 = vmatpush1.msra.mxu0 %v36
    %1152 = vmatprep.subr.mxu0 0.0
    %1153 = vmatpush1.msra.mxu0 %v37
    %1154 = vmatprep.subr.mxu0 0.0
    %1155 = vmatpush1.msra.mxu0 %v38
    %1156 = vmatprep.subr.mxu0 0.0
    %1157 = vmatpush1.msra.mxu0 %v39
    %1158 = vmatprep.subr.mxu0 0.0
    %1159 = vmatpush1.msra.mxu0 0.0
    %1160 = vmatprep.subr.mxu0 0.0
    %1161 = vmatpush1.msra.mxu0 0.0
    %1162 = vmatprep.subr.mxu0 0.0
    %1163 = vmatpush1.msra.mxu0 0.0
    %1164 = vmatprep.subr.mxu0 0.0
    %1165 = vmatpush1.msra.mxu0 0.0
    %1166 = vmatprep.subr.mxu0 0.0
    %1167 = vmatpush1.msra.mxu0 0.0
    %1168 = vmatprep.subr.mxu0 0.0
    %1169 = vmatpush1.msra.mxu0 0.0
    %1170 = vmatprep.subr.mxu0 0.0
    %1171 = vmatpush1.msra.mxu0 0.0
    %1172 = vmatprep.subr.mxu0 0.0
    %1173 = vmatpush1.msra.mxu0 0.0
    %1174 = vmatprep.subr.mxu0 0.0
    %1175 = vmatpush1.msra.mxu0 0.0
    %1176 = vmatprep.subr.mxu0 0.0
    %1177 = vmatpush1.msra.mxu0 0.0
    %1178 = vmatprep.subr.mxu0 0.0
    %1179 = vmatpush1.msra.mxu0 0.0
    %1180 = vmatprep.subr.mxu0 0.0
    %1181 = vmatpush1.msra.mxu0 0.0
    %1182 = vmatprep.subr.mxu0 0.0
    %1183 = vmatpush1.msra.mxu0 0.0
    %1184 = vmatprep.subr.mxu0 0.0
    %1185 = vmatpush1.msra.mxu0 0.0
    %1186 = vmatprep.subr.mxu0 0.0
    %1187 = vmatpush1.msra.mxu0 0.0
    %1188 = vmatprep.subr.mxu0 0.0
    %1189 = vmatpush1.msra.mxu0 0.0
    %1190 = vmatprep.subr.mxu0 0.0
    %1191 = vmatpush1.msra.mxu0 0.0
    %1192 = vmatprep.subr.mxu0 0.0
    %1193 = vmatpush1.msra.mxu0 0.0
    %1194 = vmatprep.subr.mxu0 0.0
    %1195 = vmatpush1.msra.mxu0 0.0
    %1196 = vmatprep.subr.mxu0 0.0
    %1197 = vmatpush1.msra.mxu0 0.0
    %1198 = vmatprep.subr.mxu0 0.0
    %1199 = vmatpush1.msra.mxu0 0.0
    %1200 = vmatprep.subr.mxu0 0.0
    %1201 = vmatpush1.msra.mxu0 0.0
    %1202 = vmatprep.subr.mxu0 0.0
    %1203 = vmatpush1.msra.mxu0 0.0
    %1204 = vmatprep.subr.mxu0 0.0
    %1205 = vmatpush1.msra.mxu0 0.0
    %1206 = vmatprep.subr.mxu0 0.0
    %1207 = vmatpush1.msra.mxu0 0.0
    %1208 = vmatprep.subr.mxu0 0.0
    %1209 = vmatpush1.msra.mxu0 0.0
    %1210 = vmatprep.subr.mxu0 0.0
    %1211 = vmatpush1.msra.mxu0 0.0
    %1212 = vmatprep.subr.mxu0 0.0
    %1213 = vmatpush1.msra.mxu0 0.0
    %1214 = vmatprep.mubr.f32.mxu0 0.0
    %1215 = vmatmul.mubr.f32.gmra.mrb[0].mxu0 %v1148
    %v1216 = vpop.f32.mrb[0].mxu0
    %v1217 = vadd.f32 0.0, %v1216
    %v1218 = vpop.f32.mrb[0].mxu0
    %1219 = vdwg.mxu0
    %v1221 = vrot.slane %v1217, 2
    %v1223 = vadd.f32 %v265, %v1221
    %v1224 = vxor.u32 %v1223, 2147483648
    %v1225 = vmul.f32 %v1224, 1.442695
    %v1226 = vpow.pop %v1225
    %v1227 = vadd.f32 %v1226, 1.0
    %v1228 = vrcp.pop %v1227
    %v1229 = vmul.f32 1.0, %v1228
    %v1230 = vtanh.pop %v1223
    %v1232 = vrot.slane %v925, 6
    %v1234 = vmul.f32 %v1229, %v1232
    %1236 = vrot.lane.b32.xlu0 %v1230, 64
    %v1237 = vpop.permute.xlu0 %1236
    %v1239 = vmul.f32 %v1229, %v1237
    %1241 = vrot.lane.b32.xlu0 %v1239, 32
    %v1242 = vpop.permute.xlu0 %1241
    %v1244 = vadd.f32 %v1234, %v1242
    %v1245 = vtanh.pop %v1244
    %1247 = vrot.lane.b32.xlu0 %v1245, 64
    %v1248 = vpop.permute.xlu0 %1247
    %v1250 = vmul.f32 %v1229, %v1248
    %1252 = vrot.lane.b32.xlu0 %v1144, 32
    %v1253 = vpop.permute.xlu0 %1252
    %1256 = vrot.lane.b32.xlu0 %v1037, 64
    %v1257 = vpop.permute.xlu0 %1256
    %v1259 = vsel %vm284, %v1253, %v1257
    %v1261 = vsel %vm400, %v1259, 0
    %1263 = vmatprep.subr.mxu0 0.0
    %1264 = vmatpush1.msra.mxu0 %v48
    %1265 = vmatprep.subr.mxu0 0.0
    %1266 = vmatpush1.msra.mxu0 %v49
    %1267 = vmatprep.subr.mxu0 0.0
    %1268 = vmatpush1.msra.mxu0 %v50
    %1269 = vmatprep.subr.mxu0 0.0
    %1270 = vmatpush1.msra.mxu0 %v51
    %1271 = vmatprep.subr.mxu0 0.0
    %1272 = vmatpush1.msra.mxu0 %v52
    %1273 = vmatprep.subr.mxu0 0.0
    %1274 = vmatpush1.msra.mxu0 %v53
    %1275 = vmatprep.subr.mxu0 0.0
    %1276 = vmatpush1.msra.mxu0 %v54
    %1277 = vmatprep.subr.mxu0 0.0
    %1278 = vmatpush1.msra.mxu0 %v55
    %1279 = vmatprep.subr.mxu0 0.0
    %1280 = vmatpush1.msra.mxu0 0.0
    %1281 = vmatprep.subr.mxu0 0.0
    %1282 = vmatpush1.msra.mxu0 0.0
    %1283 = vmatprep.subr.mxu0 0.0
    %1284 = vmatpush1.msra.mxu0 0.0
    %1285 = vmatprep.subr.mxu0 0.0
    %1286 = vmatpush1.msra.mxu0 0.0
    %1287 = vmatprep.subr.mxu0 0.0
    %1288 = vmatpush1.msra.mxu0 0.0
    %1289 = vmatprep.subr.mxu0 0.0
    %1290 = vmatpush1.msra.mxu0 0.0
    %1291 = vmatprep.subr.mxu0 0.0
    %1292 = vmatpush1.msra.mxu0 0.0
    %1293 = vmatprep.subr.mxu0 0.0
    %1294 = vmatpush1.msra.mxu0 0.0
    %1295 = vmatprep.subr.mxu0 0.0
    %1296 = vmatpush1.msra.mxu0 0.0
    %1297 = vmatprep.subr.mxu0 0.0
    %1298 = vmatpush1.msra.mxu0 0.0
    %1299 = vmatprep.subr.mxu0 0.0
    %1300 = vmatpush1.msra.mxu0 0.0
    %1301 = vmatprep.subr.mxu0 0.0
    %1302 = vmatpush1.msra.mxu0 0.0
    %1303 = vmatprep.subr.mxu0 0.0
    %1304 = vmatpush1.msra.mxu0 0.0
    %1305 = vmatprep.subr.mxu0 0.0
    %1306 = vmatpush1.msra.mxu0 0.0
    %1307 = vmatprep.subr.mxu0 0.0
    %1308 = vmatpush1.msra.mxu0 0.0
    %1309 = vmatprep.subr.mxu0 0.0
    %1310 = vmatpush1.msra.mxu0 0.0
    %1311 = vmatprep.subr.mxu0 0.0
    %1312 = vmatpush1.msra.mxu0 0.0
    %1313 = vmatprep.subr.mxu0 0.0
    %1314 = vmatpush1.msra.mxu0 0.0
    %1315 = vmatprep.subr.mxu0 0.0
    %1316 = vmatpush1.msra.mxu0 0.0
    %1317 = vmatprep.subr.mxu0 0.0
    %1318 = vmatpush1.msra.mxu0 0.0
    %1319 = vmatprep.subr.mxu0 0.0
    %1320 = vmatpush1.msra.mxu0 0.0
    %1321 = vmatprep.subr.mxu0 0.0
    %1322 = vmatpush1.msra.mxu0 0.0
    %1323 = vmatprep.subr.mxu0 0.0
    %1324 = vmatpush1.msra.mxu0 0.0
    %1325 = vmatprep.subr.mxu0 0.0
    %1326 = vmatpush1.msra.mxu0 0.0
    %1327 = vmatprep.mubr.f32.mxu0 0.0
    %1328 = vmatmul.mubr.f32.gmra.mrb[0].mxu0 %v1261
    %v1329 = vpop.f32.mrb[0].mxu0
    %v1330 = vadd.f32 %v617, %v1329
    %v1331 = vpop.f32.mrb[0].mxu0
    %1332 = vdwg.mxu0
    %v1333 = vxor.u32 %v1330, 2147483648
    %v1334 = vmul.f32 %v1333, 1.442695
    %v1335 = vpow.pop %v1334
    %v1336 = vadd.f32 %v1335, 1.0
    %v1337 = vrcp.pop %v1336
    %v1338 = vmul.f32 1.0, %v1337
    %v1339 = vtanh.pop %v1330
    %v1340 = vmul.f32 %v1338, %v1031
    %1342 = vrot.lane.b32.xlu0 %v1339, 64
    %v1343 = vpop.permute.xlu0 %1342
    %v1345 = vmul.f32 %v1338, %v1343
    %1347 = vrot.lane.b32.xlu0 %v1345, 32
    %v1348 = vpop.permute.xlu0 %1347
    %v1350 = vadd.f32 %v1340, %v1348
    %v1351 = vtanh.pop %v1350
    %1353 = vrot.lane.b32.xlu0 %v1351, 64
    %v1354 = vpop.permute.xlu0 %1353
    %v1356 = vmul.f32 %v1338, %v1354
    %1358 = vrot.lane.b32.xlu0 %v1250, 32
    %v1359 = vpop.permute.xlu0 %1358
    %v1361 = vrot.slane %v1144, 2
    %1362 = vrot.lane.b32.xlu0 %v1361, 64
    %v1363 = vpop.permute.xlu0 %1362
    %v1365 = vsel %vm284, %v1359, %v1363
    %v1367 = vrot.slane %v1365, 6
    %v1368 = vsel %vm400, %v1367, 0
    %1370 = vmatprep.subr.mxu0 0.0
    %1371 = vmatpush1.msra.mxu0 %v40
    %1372 = vmatprep.subr.mxu0 0.0
    %1373 = vmatpush1.msra.mxu0 %v41
    %1374 = vmatprep.subr.mxu0 0.0
    %1375 = vmatpush1.msra.mxu0 %v42
    %1376 = vmatprep.subr.mxu0 0.0
    %1377 = vmatpush1.msra.mxu0 %v43
    %1378 = vmatprep.subr.mxu0 0.0
    %1379 = vmatpush1.msra.mxu0 %v44
    %1380 = vmatprep.subr.mxu0 0.0
    %1381 = vmatpush1.msra.mxu0 %v45
    %1382 = vmatprep.subr.mxu0 0.0
    %1383 = vmatpush1.msra.mxu0 %v46
    %1384 = vmatprep.subr.mxu0 0.0
    %1385 = vmatpush1.msra.mxu0 %v47
    %1386 = vmatprep.subr.mxu0 0.0
    %1387 = vmatpush1.msra.mxu0 0.0
    %1388 = vmatprep.subr.mxu0 0.0
    %1389 = vmatpush1.msra.mxu0 0.0
    %1390 = vmatprep.subr.mxu0 0.0
    %1391 = vmatpush1.msra.mxu0 0.0
    %1392 = vmatprep.subr.mxu0 0.0
    %1393 = vmatpush1.msra.mxu0 0.0
    %1394 = vmatprep.subr.mxu0 0.0
    %1395 = vmatpush1.msra.mxu0 0.0
    %1396 = vmatprep.subr.mxu0 0.0
    %1397 = vmatpush1.msra.mxu0 0.0
    %1398 = vmatprep.subr.mxu0 0.0
    %1399 = vmatpush1.msra.mxu0 0.0
    %1400 = vmatprep.subr.mxu0 0.0
    %1401 = vmatpush1.msra.mxu0 0.0
    %1402 = vmatprep.subr.mxu0 0.0
    %1403 = vmatpush1.msra.mxu0 0.0
    %1404 = vmatprep.subr.mxu0 0.0
    %1405 = vmatpush1.msra.mxu0 0.0
    %1406 = vmatprep.subr.mxu0 0.0
    %1407 = vmatpush1.msra.mxu0 0.0
    %1408 = vmatprep.subr.mxu0 0.0
    %1409 = vmatpush1.msra.mxu0 0.0
    %1410 = vmatprep.subr.mxu0 0.0
    %1411 = vmatpush1.msra.mxu0 0.0
    %1412 = vmatprep.subr.mxu0 0.0
    %1413 = vmatpush1.msra.mxu0 0.0
    %1414 = vmatprep.subr.mxu0 0.0
    %1415 = vmatpush1.msra.mxu0 0.0
    %1416 = vmatprep.subr.mxu0 0.0
    %1417 = vmatpush1.msra.mxu0 0.0
    %1418 = vmatprep.subr.mxu0 0.0
    %1419 = vmatpush1.msra.mxu0 0.0
    %1420 = vmatprep.subr.mxu0 0.0
    %1421 = vmatpush1.msra.mxu0 0.0
    %1422 = vmatprep.subr.mxu0 0.0
    %1423 = vmatpush1.msra.mxu0 0.0
    %1424 = vmatprep.subr.mxu0 0.0
    %1425 = vmatpush1.msra.mxu0 0.0
    %1426 = vmatprep.subr.mxu0 0.0
    %1427 = vmatpush1.msra.mxu0 0.0
    %1428 = vmatprep.subr.mxu0 0.0
    %1429 = vmatpush1.msra.mxu0 0.0
    %1430 = vmatprep.subr.mxu0 0.0
    %1431 = vmatpush1.msra.mxu0 0.0
    %1432 = vmatprep.subr.mxu0 0.0
    %1433 = vmatpush1.msra.mxu0 0.0
    %1434 = vmatprep.mubr.f32.mxu0 0.0
    %1435 = vmatmul.mubr.f32.gmra.mrb[0].mxu0 %v1368
    %v1436 = vpop.f32.mrb[0].mxu0
    %v1437 = vadd.f32 %v399, %v1436
    %v1438 = vpop.f32.mrb[0].mxu0
    %1439 = vdwg.mxu0
    %v1440 = vxor.u32 %v1437, 2147483648
    %v1441 = vmul.f32 %v1440, 1.442695
    %v1442 = vpow.pop %v1441
    %v1443 = vadd.f32 %v1442, 1.0
    %v1444 = vrcp.pop %v1443
    %v1445 = vmul.f32 1.0, %v1444
    %v1446 = vtanh.pop %v1437
    %v1447 = vmul.f32 %v1445, %v1138
    %1449 = vrot.lane.b32.xlu0 %v1446, 64
    %v1450 = vpop.permute.xlu0 %1449
    %v1452 = vmul.f32 %v1445, %v1450
    %1454 = vrot.lane.b32.xlu0 %v1452, 32
    %v1455 = vpop.permute.xlu0 %1454
    %v1457 = vadd.f32 %v1447, %v1455
    %v1458 = vtanh.pop %v1457
    %1460 = vrot.lane.b32.xlu0 %v1458, 64
    %v1461 = vpop.permute.xlu0 %1460
    %v1463 = vmul.f32 %v1445, %v1461
    %v1464 = vrot.slane %v1250, 6
    %1465 = vrot.lane.b32.xlu0 %v1464, 32
    %v1466 = vpop.permute.xlu0 %1465
    %v1467 = vsel %vm284, %v1466, 0
    %1469 = vmatprep.subr.mxu0 0.0
    %1470 = vmatpush1.msra.mxu0 %v36
    %1471 = vmatprep.subr.mxu0 0.0
    %1472 = vmatpush1.msra.mxu0 %v37
    %1473 = vmatprep.subr.mxu0 0.0
    %1474 = vmatpush1.msra.mxu0 %v38
    %1475 = vmatprep.subr.mxu0 0.0
    %1476 = vmatpush1.msra.mxu0 %v39
    %1477 = vmatprep.subr.mxu0 0.0
    %1478 = vmatpush1.msra.mxu0 0.0
    %1479 = vmatprep.subr.mxu0 0.0
    %1480 = vmatpush1.msra.mxu0 0.0
    %1481 = vmatprep.subr.mxu0 0.0
    %1482 = vmatpush1.msra.mxu0 0.0
    %1483 = vmatprep.subr.mxu0 0.0
    %1484 = vmatpush1.msra.mxu0 0.0
    %1485 = vmatprep.subr.mxu0 0.0
    %1486 = vmatpush1.msra.mxu0 0.0
    %1487 = vmatprep.subr.mxu0 0.0
    %1488 = vmatpush1.msra.mxu0 0.0
    %1489 = vmatprep.subr.mxu0 0.0
    %1490 = vmatpush1.msra.mxu0 0.0
    %1491 = vmatprep.subr.mxu0 0.0
    %1492 = vmatpush1.msra.mxu0 0.0
    %1493 = vmatprep.subr.mxu0 0.0
    %1494 = vmatpush1.msra.mxu0 0.0
    %1495 = vmatprep.subr.mxu0 0.0
    %1496 = vmatpush1.msra.mxu0 0.0
    %1497 = vmatprep.subr.mxu0 0.0
    %1498 = vmatpush1.msra.mxu0 0.0
    %1499 = vmatprep.subr.mxu0 0.0
    %1500 = vmatpush1.msra.mxu0 0.0
    %1501 = vmatprep.subr.mxu0 0.0
    %1502 = vmatpush1.msra.mxu0 0.0
    %1503 = vmatprep.subr.mxu0 0.0
    %1504 = vmatpush1.msra.mxu0 0.0
    %1505 = vmatprep.subr.mxu0 0.0
    %1506 = vmatpush1.msra.mxu0 0.0
    %1507 = vmatprep.subr.mxu0 0.0
    %1508 = vmatpush1.msra.mxu0 0.0
    %1509 = vmatprep.subr.mxu0 0.0
    %1510 = vmatpush1.msra.mxu0 0.0
    %1511 = vmatprep.subr.mxu0 0.0
    %1512 = vmatpush1.msra.mxu0 0.0
    %1513 = vmatprep.subr.mxu0 0.0
    %1514 = vmatpush1.msra.mxu0 0.0
    %1515 = vmatprep.subr.mxu0 0.0
    %1516 = vmatpush1.msra.mxu0 0.0
    %1517 = vmatprep.subr.mxu0 0.0
    %1518 = vmatpush1.msra.mxu0 0.0
    %1519 = vmatprep.subr.mxu0 0.0
    %1520 = vmatpush1.msra.mxu0 0.0
    %1521 = vmatprep.subr.mxu0 0.0
    %1522 = vmatpush1.msra.mxu0 0.0
    %1523 = vmatprep.subr.mxu0 0.0
    %1524 = vmatpush1.msra.mxu0 0.0
    %1525 = vmatprep.subr.mxu0 0.0
    %1526 = vmatpush1.msra.mxu0 0.0
    %1527 = vmatprep.subr.mxu0 0.0
    %1528 = vmatpush1.msra.mxu0 0.0
    %1529 = vmatprep.subr.mxu0 0.0
    %1530 = vmatpush1.msra.mxu0 0.0
    %1531 = vmatprep.subr.mxu0 0.0
    %1532 = vmatpush1.msra.mxu0 0.0
    %1533 = vmatprep.mubr.f32.mxu0 0.0
    %1534 = vmatmul.mubr.f32.gmra.mrb[0].mxu0 %v1467
    %v1535 = vpop.f32.mrb[0].mxu0
    %v1536 = vadd.f32 0.0, %v1535
    %v1537 = vpop.f32.mrb[0].mxu0
    %1538 = vdwg.mxu0
    %v1539 = vadd.f32 %v270, %v1536
    %v1540 = vxor.u32 %v1539, 2147483648
    %v1541 = vmul.f32 %v1540, 1.442695
    %v1542 = vpow.pop %v1541
    %v1543 = vadd.f32 %v1542, 1.0
    %v1544 = vrcp.pop %v1543
    %v1545 = vmul.f32 1.0, %v1544
    %v1546 = vtanh.pop %v1539
    %v1548 = vrot.slane %v1244, 6
    %v1550 = vmul.f32 %v1545, %v1548
    %1552 = vrot.lane.b32.xlu0 %v1546, 64
    %v1553 = vpop.permute.xlu0 %1552
    %v1555 = vmul.f32 %v1545, %v1553
    %1557 = vrot.lane.b32.xlu0 %v1555, 32
    %v1558 = vpop.permute.xlu0 %1557
    %v1560 = vadd.f32 %v1550, %v1558
    %v1561 = vtanh.pop %v1560
    %1563 = vrot.lane.b32.xlu0 %v1561, 64
    %v1564 = vpop.permute.xlu0 %1563
    %v1566 = vmul.f32 %v1545, %v1564
    %1568 = vrot.lane.b32.xlu0 %v1463, 32
    %v1569 = vpop.permute.xlu0 %1568
    %1572 = vrot.lane.b32.xlu0 %v1356, 64
    %v1573 = vpop.permute.xlu0 %1572
    %v1575 = vsel %vm284, %v1569, %v1573
    %v1577 = vsel %vm400, %v1575, 0
    %1579 = vmatprep.subr.mxu0 0.0
    %1580 = vmatpush1.msra.mxu0 %v48
    %1581 = vmatprep.subr.mxu0 0.0
    %1582 = vmatpush1.msra.mxu0 %v49
    %1583 = vmatprep.subr.mxu0 0.0
    %1584 = vmatpush1.msra.mxu0 %v50
    %1585 = vmatprep.subr.mxu0 0.0
    %1586 = vmatpush1.msra.mxu0 %v51
    %1587 = vmatprep.subr.mxu0 0.0
    %1588 = vmatpush1.msra.mxu0 %v52
    %1589 = vmatprep.subr.mxu0 0.0
    %1590 = vmatpush1.msra.mxu0 %v53
    %1591 = vmatprep.subr.mxu0 0.0
    %1592 = vmatpush1.msra.mxu0 %v54
    %1593 = vmatprep.subr.mxu0 0.0
    %1594 = vmatpush1.msra.mxu0 %v55
    %1595 = vmatprep.subr.mxu0 0.0
    %1596 = vmatpush1.msra.mxu0 0.0
    %1597 = vmatprep.subr.mxu0 0.0
    %1598 = vmatpush1.msra.mxu0 0.0
    %1599 = vmatprep.subr.mxu0 0.0
    %1600 = vmatpush1.msra.mxu0 0.0
    %1601 = vmatprep.subr.mxu0 0.0
    %1602 = vmatpush1.msra.mxu0 0.0
    %1603 = vmatprep.subr.mxu0 0.0
    %1604 = vmatpush1.msra.mxu0 0.0
    %1605 = vmatprep.subr.mxu0 0.0
    %1606 = vmatpush1.msra.mxu0 0.0
    %1607 = vmatprep.subr.mxu0 0.0
    %1608 = vmatpush1.msra.mxu0 0.0
    %1609 = vmatprep.subr.mxu0 0.0
    %1610 = vmatpush1.msra.mxu0 0.0
    %1611 = vmatprep.subr.mxu0 0.0
    %1612 = vmatpush1.msra.mxu0 0.0
    %1613 = vmatprep.subr.mxu0 0.0
    %1614 = vmatpush1.msra.mxu0 0.0
    %1615 = vmatprep.subr.mxu0 0.0
    %1616 = vmatpush1.msra.mxu0 0.0
    %1617 = vmatprep.subr.mxu0 0.0
    %1618 = vmatpush1.msra.mxu0 0.0
    %1619 = vmatprep.subr.mxu0 0.0
    %1620 = vmatpush1.msra.mxu0 0.0
    %1621 = vmatprep.subr.mxu0 0.0
    %1622 = vmatpush1.msra.mxu0 0.0
    %1623 = vmatprep.subr.mxu0 0.0
    %1624 = vmatpush1.msra.mxu0 0.0
    %1625 = vmatprep.subr.mxu0 0.0
    %1626 = vmatpush1.msra.mxu0 0.0
    %1627 = vmatprep.subr.mxu0 0.0
    %1628 = vmatpush1.msra.mxu0 0.0
    %1629 = vmatprep.subr.mxu0 0.0
    %1630 = vmatpush1.msra.mxu0 0.0
    %1631 = vmatprep.subr.mxu0 0.0
    %1632 = vmatpush1.msra.mxu0 0.0
    %1633 = vmatprep.subr.mxu0 0.0
    %1634 = vmatpush1.msra.mxu0 0.0
    %1635 = vmatprep.subr.mxu0 0.0
    %1636 = vmatpush1.msra.mxu0 0.0
    %1637 = vmatprep.subr.mxu0 0.0
    %1638 = vmatpush1.msra.mxu0 0.0
    %1639 = vmatprep.subr.mxu0 0.0
    %1640 = vmatpush1.msra.mxu0 0.0
    %1641 = vmatprep.subr.mxu0 0.0
    %1642 = vmatpush1.msra.mxu0 0.0
    %1643 = vmatprep.mubr.f32.mxu0 0.0
    %1644 = vmatmul.mubr.f32.gmra.mrb[0].mxu0 %v1577
    %v1645 = vpop.f32.mrb[0].mxu0
    %v1646 = vadd.f32 %v617, %v1645
    %v1647 = vpop.f32.mrb[0].mxu0
    %1648 = vdwg.mxu0
    %v1649 = vxor.u32 %v1646, 2147483648
    %v1650 = vmul.f32 %v1649, 1.442695
    %v1651 = vpow.pop %v1650
    %v1652 = vadd.f32 %v1651, 1.0
    %v1653 = vrcp.pop %v1652
    %v1654 = vmul.f32 1.0, %v1653
    %v1655 = vtanh.pop %v1646
    %v1656 = vmul.f32 %v1654, %v1350
    %1658 = vrot.lane.b32.xlu0 %v1655, 64
    %v1659 = vpop.permute.xlu0 %1658
    %v1661 = vmul.f32 %v1654, %v1659
    %1663 = vrot.lane.b32.xlu0 %v1661, 32
    %v1664 = vpop.permute.xlu0 %1663
    %v1666 = vadd.f32 %v1656, %v1664
    %v1667 = vtanh.pop %v1666
    %1669 = vrot.lane.b32.xlu0 %v1667, 64
    %v1670 = vpop.permute.xlu0 %1669
    %v1672 = vmul.f32 %v1654, %v1670
    %1674 = vrot.lane.b32.xlu0 %v1566, 32
    %v1675 = vpop.permute.xlu0 %1674
    %1677 = vrot.lane.b32.xlu0 %v1463, 64
    %v1678 = vpop.permute.xlu0 %1677
    %v1680 = vsel %vm284, %v1675, %v1678
    %v1682 = vsel %vm400, %v1680, 0
    %1684 = vmatprep.subr.mxu0 0.0
    %1685 = vmatpush1.msra.mxu0 %v40
    %1686 = vmatprep.subr.mxu0 0.0
    %1687 = vmatpush1.msra.mxu0 %v41
    %1688 = vmatprep.subr.mxu0 0.0
    %1689 = vmatpush1.msra.mxu0 %v42
    %1690 = vmatprep.subr.mxu0 0.0
    %1691 = vmatpush1.msra.mxu0 %v43
    %1692 = vmatprep.subr.mxu0 0.0
    %1693 = vmatpush1.msra.mxu0 %v44
    %1694 = vmatprep.subr.mxu0 0.0
    %1695 = vmatpush1.msra.mxu0 %v45
    %1696 = vmatprep.subr.mxu0 0.0
    %1697 = vmatpush1.msra.mxu0 %v46
    %1698 = vmatprep.subr.mxu0 0.0
    %1699 = vmatpush1.msra.mxu0 %v47
    %1700 = vmatprep.subr.mxu0 0.0
    %1701 = vmatpush1.msra.mxu0 0.0
    %1702 = vmatprep.subr.mxu0 0.0
    %1703 = vmatpush1.msra.mxu0 0.0
    %1704 = vmatprep.subr.mxu0 0.0
    %1705 = vmatpush1.msra.mxu0 0.0
    %1706 = vmatprep.subr.mxu0 0.0
    %1707 = vmatpush1.msra.mxu0 0.0
    %1708 = vmatprep.subr.mxu0 0.0
    %1709 = vmatpush1.msra.mxu0 0.0
    %1710 = vmatprep.subr.mxu0 0.0
    %1711 = vmatpush1.msra.mxu0 0.0
    %1712 = vmatprep.subr.mxu0 0.0
    %1713 = vmatpush1.msra.mxu0 0.0
    %1714 = vmatprep.subr.mxu0 0.0
    %1715 = vmatpush1.msra.mxu0 0.0
    %1716 = vmatprep.subr.mxu0 0.0
    %1717 = vmatpush1.msra.mxu0 0.0
    %1718 = vmatprep.subr.mxu0 0.0
    %1719 = vmatpush1.msra.mxu0 0.0
    %1720 = vmatprep.subr.mxu0 0.0
    %1721 = vmatpush1.msra.mxu0 0.0
    %1722 = vmatprep.subr.mxu0 0.0
    %1723 = vmatpush1.msra.mxu0 0.0
    %1724 = vmatprep.subr.mxu0 0.0
    %1725 = vmatpush1.msra.mxu0 0.0
    %1726 = vmatprep.subr.mxu0 0.0
    %1727 = vmatpush1.msra.mxu0 0.0
    %1728 = vmatprep.subr.mxu0 0.0
    %1729 = vmatpush1.msra.mxu0 0.0
    %1730 = vmatprep.subr.mxu0 0.0
    %1731 = vmatpush1.msra.mxu0 0.0
    %1732 = vmatprep.subr.mxu0 0.0
    %1733 = vmatpush1.msra.mxu0 0.0
    %1734 = vmatprep.subr.mxu0 0.0
    %1735 = vmatpush1.msra.mxu0 0.0
    %1736 = vmatprep.subr.mxu0 0.0
    %1737 = vmatpush1.msra.mxu0 0.0
    %1738 = vmatprep.subr.mxu0 0.0
    %1739 = vmatpush1.msra.mxu0 0.0
    %1740 = vmatprep.subr.mxu0 0.0
    %1741 = vmatpush1.msra.mxu0 0.0
    %1742 = vmatprep.subr.mxu0 0.0
    %1743 = vmatpush1.msra.mxu0 0.0
    %1744 = vmatprep.subr.mxu0 0.0
    %1745 = vmatpush1.msra.mxu0 0.0
    %1746 = vmatprep.subr.mxu0 0.0
    %1747 = vmatpush1.msra.mxu0 0.0
    %1748 = vmatprep.mubr.f32.mxu0 0.0
    %1749 = vmatmul.mubr.f32.gmra.mrb[0].mxu0 %v1682
    %v1750 = vpop.f32.mrb[0].mxu0
    %v1751 = vadd.f32 %v399, %v1750
    %v1752 = vpop.f32.mrb[0].mxu0
    %1753 = vdwg.mxu0
    %v1754 = vxor.u32 %v1751, 2147483648
    %v1755 = vmul.f32 %v1754, 1.442695
    %v1756 = vpow.pop %v1755
    %v1757 = vadd.f32 %v1756, 1.0
    %v1758 = vrcp.pop %v1757
    %v1759 = vmul.f32 1.0, %v1758
    %v1760 = vtanh.pop %v1751
    %v1761 = vmul.f32 %v1759, %v1457
    %1763 = vrot.lane.b32.xlu0 %v1760, 64
    %v1764 = vpop.permute.xlu0 %1763
    %v1766 = vmul.f32 %v1759, %v1764
    %1768 = vrot.lane.b32.xlu0 %v1766, 32
    %v1769 = vpop.permute.xlu0 %1768
    %v1771 = vadd.f32 %v1761, %v1769
    %v1772 = vtanh.pop %v1771
    %1774 = vrot.lane.b32.xlu0 %v1772, 64
    %v1775 = vpop.permute.xlu0 %1774
    %v1777 = vmul.f32 %v1759, %v1775
    %v1778 = vsel %vm284, %v1675, 0
    %1780 = vmatprep.subr.mxu0 0.0
    %1781 = vmatpush1.msra.mxu0 %v36
    %1782 = vmatprep.subr.mxu0 0.0
    %1783 = vmatpush1.msra.mxu0 %v37
    %1784 = vmatprep.subr.mxu0 0.0
    %1785 = vmatpush1.msra.mxu0 %v38
    %1786 = vmatprep.subr.mxu0 0.0
    %1787 = vmatpush1.msra.mxu0 %v39
    %1788 = vmatprep.subr.mxu0 0.0
    %1789 = vmatpush1.msra.mxu0 0.0
    %1790 = vmatprep.subr.mxu0 0.0
    %1791 = vmatpush1.msra.mxu0 0.0
    %1792 = vmatprep.subr.mxu0 0.0
    %1793 = vmatpush1.msra.mxu0 0.0
    %1794 = vmatprep.subr.mxu0 0.0
    %1795 = vmatpush1.msra.mxu0 0.0
    %1796 = vmatprep.subr.mxu0 0.0
    %1797 = vmatpush1.msra.mxu0 0.0
    %1798 = vmatprep.subr.mxu0 0.0
    %1799 = vmatpush1.msra.mxu0 0.0
    %1800 = vmatprep.subr.mxu0 0.0
    %1801 = vmatpush1.msra.mxu0 0.0
    %1802 = vmatprep.subr.mxu0 0.0
    %1803 = vmatpush1.msra.mxu0 0.0
    %1804 = vmatprep.subr.mxu0 0.0
    %1805 = vmatpush1.msra.mxu0 0.0
    %1806 = vmatprep.subr.mxu0 0.0
    %1807 = vmatpush1.msra.mxu0 0.0
    %1808 = vmatprep.subr.mxu0 0.0
    %1809 = vmatpush1.msra.mxu0 0.0
    %1810 = vmatprep.subr.mxu0 0.0
    %1811 = vmatpush1.msra.mxu0 0.0
    %1812 = vmatprep.subr.mxu0 0.0
    %1813 = vmatpush1.msra.mxu0 0.0
    %1814 = vmatprep.subr.mxu0 0.0
    %1815 = vmatpush1.msra.mxu0 0.0
    %1816 = vmatprep.subr.mxu0 0.0
    %1817 = vmatpush1.msra.mxu0 0.0
    %1818 = vmatprep.subr.mxu0 0.0
    %1819 = vmatpush1.msra.mxu0 0.0
    %1820 = vmatprep.subr.mxu0 0.0
    %1821 = vmatpush1.msra.mxu0 0.0
    %1822 = vmatprep.subr.mxu0 0.0
    %1823 = vmatpush1.msra.mxu0 0.0
    %1824 = vmatprep.subr.mxu0 0.0
    %1825 = vmatpush1.msra.mxu0 0.0
    %1826 = vmatprep.subr.mxu0 0.0
    %1827 = vmatpush1.msra.mxu0 0.0
    %1828 = vmatprep.subr.mxu0 0.0
    %1829 = vmatpush1.msra.mxu0 0.0
    %1830 = vmatprep.subr.mxu0 0.0
    %1831 = vmatpush1.msra.mxu0 0.0
    %1832 = vmatprep.subr.mxu0 0.0
    %1833 = vmatpush1.msra.mxu0 0.0
    %1834 = vmatprep.subr.mxu0 0.0
    %1835 = vmatpush1.msra.mxu0 0.0
    %1836 = vmatprep.subr.mxu0 0.0
    %1837 = vmatpush1.msra.mxu0 0.0
    %1838 = vmatprep.subr.mxu0 0.0
    %1839 = vmatpush1.msra.mxu0 0.0
    %1840 = vmatprep.subr.mxu0 0.0
    %1841 = vmatpush1.msra.mxu0 0.0
    %1842 = vmatprep.subr.mxu0 0.0
    %1843 = vmatpush1.msra.mxu0 0.0
    %1844 = vmatprep.mubr.f32.mxu0 0.0
    %1845 = vmatmul.mubr.f32.gmra.mrb[0].mxu0 %v1778
    %v1846 = vpop.f32.mrb[0].mxu0
    %v1847 = vadd.f32 0.0, %v1846
    %v1848 = vpop.f32.mrb[0].mxu0
    %1849 = vdwg.mxu0
    %v1851 = vrot.slane %v1847, 6
    %v1853 = vadd.f32 %v270, %v1851
    %v1854 = vxor.u32 %v1853, 2147483648
    %v1855 = vmul.f32 %v1854, 1.442695
    %v1856 = vpow.pop %v1855
    %v1857 = vadd.f32 %v1856, 1.0
    %v1858 = vrcp.pop %v1857
    %v1859 = vmul.f32 1.0, %v1858
    %v1860 = vtanh.pop %v1853
    %v1862 = vrot.slane %v1560, 6
    %v1864 = vmul.f32 %v1859, %v1862
    %1866 = vrot.lane.b32.xlu0 %v1860, 64
    %v1867 = vpop.permute.xlu0 %1866
    %v1869 = vmul.f32 %v1859, %v1867
    %1871 = vrot.lane.b32.xlu0 %v1869, 32
    %v1872 = vpop.permute.xlu0 %1871
    %v1874 = vadd.f32 %v1864, %v1872
    %v1875 = vtanh.pop %v1874
    %1877 = vrot.lane.b32.xlu0 %v1875, 64
    %v1878 = vpop.permute.xlu0 %1877
    %v1880 = vmul.f32 %v1859, %v1878
    %1882 = vrot.lane.b32.xlu0 %v1777, 32
    %v1883 = vpop.permute.xlu0 %1882
    %1886 = vrot.lane.b32.xlu0 %v1672, 64
    %v1887 = vpop.permute.xlu0 %1886
    %v1889 = vsel %vm284, %v1883, %v1887
    %v1891 = vsel %vm400, %v1889, 0
    %1893 = vmatprep.subr.mxu0 0.0
    %1894 = vmatpush1.msra.mxu0 %v48
    %1895 = vmatprep.subr.mxu0 0.0
    %1896 = vmatpush1.msra.mxu0 %v49
    %1897 = vmatprep.subr.mxu0 0.0
    %1898 = vmatpush1.msra.mxu0 %v50
    %1899 = vmatprep.subr.mxu0 0.0
    %1900 = vmatpush1.msra.mxu0 %v51
    %1901 = vmatprep.subr.mxu0 0.0
    %1902 = vmatpush1.msra.mxu0 %v52
    %1903 = vmatprep.subr.mxu0 0.0
    %1904 = vmatpush1.msra.mxu0 %v53
    %1905 = vmatprep.subr.mxu0 0.0
    %1906 = vmatpush1.msra.mxu0 %v54
    %1907 = vmatprep.subr.mxu0 0.0
    %1908 = vmatpush1.msra.mxu0 %v55
    %1909 = vmatprep.subr.mxu0 0.0
    %1910 = vmatpush1.msra.mxu0 0.0
    %1911 = vmatprep.subr.mxu0 0.0
    %1912 = vmatpush1.msra.mxu0 0.0
    %1913 = vmatprep.subr.mxu0 0.0
    %1914 = vmatpush1.msra.mxu0 0.0
    %1915 = vmatprep.subr.mxu0 0.0
    %1916 = vmatpush1.msra.mxu0 0.0
    %1917 = vmatprep.subr.mxu0 0.0
    %1918 = vmatpush1.msra.mxu0 0.0
    %1919 = vmatprep.subr.mxu0 0.0
    %1920 = vmatpush1.msra.mxu0 0.0
    %1921 = vmatprep.subr.mxu0 0.0
    %1922 = vmatpush1.msra.mxu0 0.0
    %1923 = vmatprep.subr.mxu0 0.0
    %1924 = vmatpush1.msra.mxu0 0.0
    %1925 = vmatprep.subr.mxu0 0.0
    %1926 = vmatpush1.msra.mxu0 0.0
    %1927 = vmatprep.subr.mxu0 0.0
    %1928 = vmatpush1.msra.mxu0 0.0
    %1929 = vmatprep.subr.mxu0 0.0
    %1930 = vmatpush1.msra.mxu0 0.0
    %1931 = vmatprep.subr.mxu0 0.0
    %1932 = vmatpush1.msra.mxu0 0.0
    %1933 = vmatprep.subr.mxu0 0.0
    %1934 = vmatpush1.msra.mxu0 0.0
    %1935 = vmatprep.subr.mxu0 0.0
    %1936 = vmatpush1.msra.mxu0 0.0
    %1937 = vmatprep.subr.mxu0 0.0
    %1938 = vmatpush1.msra.mxu0 0.0
    %1939 = vmatprep.subr.mxu0 0.0
    %1940 = vmatpush1.msra.mxu0 0.0
    %1941 = vmatprep.subr.mxu0 0.0
    %1942 = vmatpush1.msra.mxu0 0.0
    %1943 = vmatprep.subr.mxu0 0.0
    %1944 = vmatpush1.msra.mxu0 0.0
    %1945 = vmatprep.subr.mxu0 0.0
    %1946 = vmatpush1.msra.mxu0 0.0
    %1947 = vmatprep.subr.mxu0 0.0
    %1948 = vmatpush1.msra.mxu0 0.0
    %1949 = vmatprep.subr.mxu0 0.0
    %1950 = vmatpush1.msra.mxu0 0.0
    %1951 = vmatprep.subr.mxu0 0.0
    %1952 = vmatpush1.msra.mxu0 0.0
    %1953 = vmatprep.subr.mxu0 0.0
    %1954 = vmatpush1.msra.mxu0 0.0
    %1955 = vmatprep.subr.mxu0 0.0
    %1956 = vmatpush1.msra.mxu0 0.0
    %1957 = vmatprep.mubr.f32.mxu0 0.0
    %1958 = vmatmul.mubr.f32.gmra.mrb[0].mxu0 %v1891
    %v1959 = vpop.f32.mrb[0].mxu0
    %v1960 = vadd.f32 %v617, %v1959
    %v1961 = vpop.f32.mrb[0].mxu0
    %1962 = vdwg.mxu0
    %v1963 = vxor.u32 %v1960, 2147483648
    %v1964 = vmul.f32 %v1963, 1.442695
    %v1965 = vpow.pop %v1964
    %v1966 = vadd.f32 %v1965, 1.0
    %v1967 = vrcp.pop %v1966
    %v1968 = vmul.f32 1.0, %v1967
    %v1969 = vtanh.pop %v1960
    %v1970 = vmul.f32 %v1968, %v1666
    %1972 = vrot.lane.b32.xlu0 %v1969, 64
    %v1973 = vpop.permute.xlu0 %1972
    %v1975 = vmul.f32 %v1968, %v1973
    %1977 = vrot.lane.b32.xlu0 %v1975, 32
    %v1978 = vpop.permute.xlu0 %1977
    %v1980 = vadd.f32 %v1970, %v1978
    %v1981 = vtanh.pop %v1980
    %1983 = vrot.lane.b32.xlu0 %v1981, 64
    %v1984 = vpop.permute.xlu0 %1983
    %v1986 = vmul.f32 %v1968, %v1984
    %1988 = vrot.lane.b32.xlu0 %v1880, 32
    %v1989 = vpop.permute.xlu0 %1988
    %v1991 = vrot.slane %v1777, 6
    %1992 = vrot.lane.b32.xlu0 %v1991, 64
    %v1993 = vpop.permute.xlu0 %1992
    %v1995 = vsel %vm284, %v1989, %v1993
    %v1997 = vrot.slane %v1995, 2
    %v1998 = vsel %vm400, %v1997, 0
    %2000 = vmatprep.subr.mxu0 0.0
    %2001 = vmatpush1.msra.mxu0 %v40
    %2002 = vmatprep.subr.mxu0 0.0
    %2003 = vmatpush1.msra.mxu0 %v41
    %2004 = vmatprep.subr.mxu0 0.0
    %2005 = vmatpush1.msra.mxu0 %v42
    %2006 = vmatprep.subr.mxu0 0.0
    %2007 = vmatpush1.msra.mxu0 %v43
    %2008 = vmatprep.subr.mxu0 0.0
    %2009 = vmatpush1.msra.mxu0 %v44
    %2010 = vmatprep.subr.mxu0 0.0
    %2011 = vmatpush1.msra.mxu0 %v45
    %2012 = vmatprep.subr.mxu0 0.0
    %2013 = vmatpush1.msra.mxu0 %v46
    %2014 = vmatprep.subr.mxu0 0.0
    %2015 = vmatpush1.msra.mxu0 %v47
    %2016 = vmatprep.subr.mxu0 0.0
    %2017 = vmatpush1.msra.mxu0 0.0
    %2018 = vmatprep.subr.mxu0 0.0
    %2019 = vmatpush1.msra.mxu0 0.0
    %2020 = vmatprep.subr.mxu0 0.0
    %2021 = vmatpush1.msra.mxu0 0.0
    %2022 = vmatprep.subr.mxu0 0.0
    %2023 = vmatpush1.msra.mxu0 0.0
    %2024 = vmatprep.subr.mxu0 0.0
    %2025 = vmatpush1.msra.mxu0 0.0
    %2026 = vmatprep.subr.mxu0 0.0
    %2027 = vmatpush1.msra.mxu0 0.0
    %2028 = vmatprep.subr.mxu0 0.0
    %2029 = vmatpush1.msra.mxu0 0.0
    %2030 = vmatprep.subr.mxu0 0.0
    %2031 = vmatpush1.msra.mxu0 0.0
    %2032 = vmatprep.subr.mxu0 0.0
    %2033 = vmatpush1.msra.mxu0 0.0
    %2034 = vmatprep.subr.mxu0 0.0
    %2035 = vmatpush1.msra.mxu0 0.0
    %2036 = vmatprep.subr.mxu0 0.0
    %2037 = vmatpush1.msra.mxu0 0.0
    %2038 = vmatprep.subr.mxu0 0.0
    %2039 = vmatpush1.msra.mxu0 0.0
    %2040 = vmatprep.subr.mxu0 0.0
    %2041 = vmatpush1.msra.mxu0 0.0
    %2042 = vmatprep.subr.mxu0 0.0
    %2043 = vmatpush1.msra.mxu0 0.0
    %2044 = vmatprep.subr.mxu0 0.0
    %2045 = vmatpush1.msra.mxu0 0.0
    %2046 = vmatprep.subr.mxu0 0.0
    %2047 = vmatpush1.msra.mxu0 0.0
    %2048 = vmatprep.subr.mxu0 0.0
    %2049 = vmatpush1.msra.mxu0 0.0
    %2050 = vmatprep.subr.mxu0 0.0
    %2051 = vmatpush1.msra.mxu0 0.0
    %2052 = vmatprep.subr.mxu0 0.0
    %2053 = vmatpush1.msra.mxu0 0.0
    %2054 = vmatprep.subr.mxu0 0.0
    %2055 = vmatpush1.msra.mxu0 0.0
    %2056 = vmatprep.subr.mxu0 0.0
    %2057 = vmatpush1.msra.mxu0 0.0
    %2058 = vmatprep.subr.mxu0 0.0
    %2059 = vmatpush1.msra.mxu0 0.0
    %2060 = vmatprep.subr.mxu0 0.0
    %2061 = vmatpush1.msra.mxu0 0.0
    %2062 = vmatprep.subr.mxu0 0.0
    %2063 = vmatpush1.msra.mxu0 0.0
    %2064 = vmatprep.mubr.f32.mxu0 0.0
    %2065 = vmatmul.mubr.f32.gmra.mrb[0].mxu0 %v1998
    %v2066 = vpop.f32.mrb[0].mxu0
    %v2067 = vadd.f32 %v399, %v2066
    %v2068 = vpop.f32.mrb[0].mxu0
    %2069 = vdwg.mxu0
    %v2070 = vxor.u32 %v2067, 2147483648
    %v2071 = vmul.f32 %v2070, 1.442695
    %v2072 = vpow.pop %v2071
    %v2073 = vadd.f32 %v2072, 1.0
    %v2074 = vrcp.pop %v2073
    %v2075 = vmul.f32 1.0, %v2074
    %v2076 = vtanh.pop %v2067
    %v2077 = vmul.f32 %v2075, %v1771
    %2079 = vrot.lane.b32.xlu0 %v2076, 64
    %v2080 = vpop.permute.xlu0 %2079
    %v2082 = vmul.f32 %v2075, %v2080
    %2084 = vrot.lane.b32.xlu0 %v2082, 32
    %v2085 = vpop.permute.xlu0 %2084
    %v2087 = vadd.f32 %v2077, %v2085
    %v2088 = vtanh.pop %v2087
    %2090 = vrot.lane.b32.xlu0 %v2088, 64
    %v2091 = vpop.permute.xlu0 %2090
    %v2093 = vmul.f32 %v2075, %v2091
    %v2094 = vrot.slane %v1880, 2
    %2095 = vrot.lane.b32.xlu0 %v2094, 32
    %v2096 = vpop.permute.xlu0 %2095
    %v2097 = vsel %vm284, %v2096, 0
    %2099 = vmatprep.subr.mxu0 0.0
    %2100 = vmatpush1.msra.mxu0 %v36
    %2101 = vmatprep.subr.mxu0 0.0
    %2102 = vmatpush1.msra.mxu0 %v37
    %2103 = vmatprep.subr.mxu0 0.0
    %2104 = vmatpush1.msra.mxu0 %v38
    %2105 = vmatprep.subr.mxu0 0.0
    %2106 = vmatpush1.msra.mxu0 %v39
    %2107 = vmatprep.subr.mxu0 0.0
    %2108 = vmatpush1.msra.mxu0 0.0
    %2109 = vmatprep.subr.mxu0 0.0
    %2110 = vmatpush1.msra.mxu0 0.0
    %2111 = vmatprep.subr.mxu0 0.0
    %2112 = vmatpush1.msra.mxu0 0.0
    %2113 = vmatprep.subr.mxu0 0.0
    %2114 = vmatpush1.msra.mxu0 0.0
    %2115 = vmatprep.subr.mxu0 0.0
    %2116 = vmatpush1.msra.mxu0 0.0
    %2117 = vmatprep.subr.mxu0 0.0
    %2118 = vmatpush1.msra.mxu0 0.0
    %2119 = vmatprep.subr.mxu0 0.0
    %2120 = vmatpush1.msra.mxu0 0.0
    %2121 = vmatprep.subr.mxu0 0.0
    %2122 = vmatpush1.msra.mxu0 0.0
    %2123 = vmatprep.subr.mxu0 0.0
    %2124 = vmatpush1.msra.mxu0 0.0
    %2125 = vmatprep.subr.mxu0 0.0
    %2126 = vmatpush1.msra.mxu0 0.0
    %2127 = vmatprep.subr.mxu0 0.0
    %2128 = vmatpush1.msra.mxu0 0.0
    %2129 = vmatprep.subr.mxu0 0.0
    %2130 = vmatpush1.msra.mxu0 0.0
    %2131 = vmatprep.subr.mxu0 0.0
    %2132 = vmatpush1.msra.mxu0 0.0
    %2133 = vmatprep.subr.mxu0 0.0
    %2134 = vmatpush1.msra.mxu0 0.0
    %2135 = vmatprep.subr.mxu0 0.0
    %2136 = vmatpush1.msra.mxu0 0.0
    %2137 = vmatprep.subr.mxu0 0.0
    %2138 = vmatpush1.msra.mxu0 0.0
    %2139 = vmatprep.subr.mxu0 0.0
    %2140 = vmatpush1.msra.mxu0 0.0
    %2141 = vmatprep.subr.mxu0 0.0
    %2142 = vmatpush1.msra.mxu0 0.0
    %2143 = vmatprep.subr.mxu0 0.0
    %2144 = vmatpush1.msra.mxu0 0.0
    %2145 = vmatprep.subr.mxu0 0.0
    %2146 = vmatpush1.msra.mxu0 0.0
    %2147 = vmatprep.subr.mxu0 0.0
    %2148 = vmatpush1.msra.mxu0 0.0
    %2149 = vmatprep.subr.mxu0 0.0
    %2150 = vmatpush1.msra.mxu0 0.0
    %2151 = vmatprep.subr.mxu0 0.0
    %2152 = vmatpush1.msra.mxu0 0.0
    %2153 = vmatprep.subr.mxu0 0.0
    %2154 = vmatpush1.msra.mxu0 0.0
    %2155 = vmatprep.subr.mxu0 0.0
    %2156 = vmatpush1.msra.mxu0 0.0
    %2157 = vmatprep.subr.mxu0 0.0
    %2158 = vmatpush1.msra.mxu0 0.0
    %2159 = vmatprep.subr.mxu0 0.0
    %2160 = vmatpush1.msra.mxu0 0.0
    %2161 = vmatprep.subr.mxu0 0.0
    %2162 = vmatpush1.msra.mxu0 0.0
    %2163 = vmatprep.mubr.f32.mxu0 0.0
    %2164 = vmatmul.mubr.f32.gmra.mrb[0].mxu0 %v2097
    %v2165 = vpop.f32.mrb[0].mxu0
    %v2166 = vadd.f32 0.0, %v2165
    %v2167 = vpop.f32.mrb[0].mxu0
    %2168 = vdwg.mxu0
    %v2170 = vrot.slane %v2166, 4
    %v2172 = vadd.f32 %v270, %v2170
    %v2173 = vxor.u32 %v2172, 2147483648
    %v2174 = vmul.f32 %v2173, 1.442695
    %v2175 = vpow.pop %v2174
    %v2176 = vadd.f32 %v2175, 1.0
    %v2177 = vrcp.pop %v2176
    %v2178 = vmul.f32 1.0, %v2177
    %v2179 = vtanh.pop %v2172
    %v2181 = vrot.slane %v1874, 6
    %v2183 = vmul.f32 %v2178, %v2181
    %2185 = vrot.lane.b32.xlu0 %v2179, 64
    %v2186 = vpop.permute.xlu0 %2185
    %v2188 = vmul.f32 %v2178, %v2186
    %2190 = vrot.lane.b32.xlu0 %v2188, 32
    %v2191 = vpop.permute.xlu0 %2190
    %v2193 = vadd.f32 %v2183, %v2191
    %v2194 = vtanh.pop %v2193
    %2196 = vrot.lane.b32.xlu0 %v2194, 64
    %v2197 = vpop.permute.xlu0 %2196
    %v2199 = vmul.f32 %v2178, %v2197
    %2201 = vrot.lane.b32.xlu0 %v2093, 32
    %v2202 = vpop.permute.xlu0 %2201
    %2205 = vrot.lane.b32.xlu0 %v1986, 64
    %v2206 = vpop.permute.xlu0 %2205
    %v2208 = vsel %vm284, %v2202, %v2206
    %v2210 = vsel %vm400, %v2208, 0
    %2212 = vmatprep.subr.mxu0 0.0
    %2213 = vmatpush1.msra.mxu0 %v48
    %2214 = vmatprep.subr.mxu0 0.0
    %2215 = vmatpush1.msra.mxu0 %v49
    %2216 = vmatprep.subr.mxu0 0.0
    %2217 = vmatpush1.msra.mxu0 %v50
    %2218 = vmatprep.subr.mxu0 0.0
    %2219 = vmatpush1.msra.mxu0 %v51
    %2220 = vmatprep.subr.mxu0 0.0
    %2221 = vmatpush1.msra.mxu0 %v52
    %2222 = vmatprep.subr.mxu0 0.0
    %2223 = vmatpush1.msra.mxu0 %v53
    %2224 = vmatprep.subr.mxu0 0.0
    %2225 = vmatpush1.msra.mxu0 %v54
    %2226 = vmatprep.subr.mxu0 0.0
    %2227 = vmatpush1.msra.mxu0 %v55
    %2228 = vmatprep.subr.mxu0 0.0
    %2229 = vmatpush1.msra.mxu0 0.0
    %2230 = vmatprep.subr.mxu0 0.0
    %2231 = vmatpush1.msra.mxu0 0.0
    %2232 = vmatprep.subr.mxu0 0.0
    %2233 = vmatpush1.msra.mxu0 0.0
    %2234 = vmatprep.subr.mxu0 0.0
    %2235 = vmatpush1.msra.mxu0 0.0
    %2236 = vmatprep.subr.mxu0 0.0
    %2237 = vmatpush1.msra.mxu0 0.0
    %2238 = vmatprep.subr.mxu0 0.0
    %2239 = vmatpush1.msra.mxu0 0.0
    %2240 = vmatprep.subr.mxu0 0.0
    %2241 = vmatpush1.msra.mxu0 0.0
    %2242 = vmatprep.subr.mxu0 0.0
    %2243 = vmatpush1.msra.mxu0 0.0
    %2244 = vmatprep.subr.mxu0 0.0
    %2245 = vmatpush1.msra.mxu0 0.0
    %2246 = vmatprep.subr.mxu0 0.0
    %2247 = vmatpush1.msra.mxu0 0.0
    %2248 = vmatprep.subr.mxu0 0.0
    %2249 = vmatpush1.msra.mxu0 0.0
    %2250 = vmatprep.subr.mxu0 0.0
    %2251 = vmatpush1.msra.mxu0 0.0
    %2252 = vmatprep.subr.mxu0 0.0
    %2253 = vmatpush1.msra.mxu0 0.0
    %2254 = vmatprep.subr.mxu0 0.0
    %2255 = vmatpush1.msra.mxu0 0.0
    %2256 = vmatprep.subr.mxu0 0.0
    %2257 = vmatpush1.msra.mxu0 0.0
    %2258 = vmatprep.subr.mxu0 0.0
    %2259 = vmatpush1.msra.mxu0 0.0
    %2260 = vmatprep.subr.mxu0 0.0
    %2261 = vmatpush1.msra.mxu0 0.0
    %2262 = vmatprep.subr.mxu0 0.0
    %2263 = vmatpush1.msra.mxu0 0.0
    %2264 = vmatprep.subr.mxu0 0.0
    %2265 = vmatpush1.msra.mxu0 0.0
    %2266 = vmatprep.subr.mxu0 0.0
    %2267 = vmatpush1.msra.mxu0 0.0
    %2268 = vmatprep.subr.mxu0 0.0
    %2269 = vmatpush1.msra.mxu0 0.0
    %2270 = vmatprep.subr.mxu0 0.0
    %2271 = vmatpush1.msra.mxu0 0.0
    %2272 = vmatprep.subr.mxu0 0.0
    %2273 = vmatpush1.msra.mxu0 0.0
    %2274 = vmatprep.subr.mxu0 0.0
    %2275 = vmatpush1.msra.mxu0 0.0
    %2276 = vmatprep.mubr.f32.mxu0 0.0
    %2277 = vmatmul.mubr.f32.gmra.mrb[0].mxu0 %v2210
    %v2278 = vpop.f32.mrb[0].mxu0
    %v2279 = vadd.f32 %v617, %v2278
    %v2280 = vpop.f32.mrb[0].mxu0
    %2281 = vdwg.mxu0
    %v2282 = vxor.u32 %v2279, 2147483648
    %v2283 = vmul.f32 %v2282, 1.442695
    %v2284 = vpow.pop %v2283
    %v2285 = vadd.f32 %v2284, 1.0
    %v2286 = vrcp.pop %v2285
    %v2287 = vmul.f32 1.0, %v2286
    %v2288 = vtanh.pop %v2279
    %v2289 = vmul.f32 %v2287, %v1980
    %2291 = vrot.lane.b32.xlu0 %v2288, 64
    %v2292 = vpop.permute.xlu0 %2291
    %v2294 = vmul.f32 %v2287, %v2292
    %2296 = vrot.lane.b32.xlu0 %v2294, 32
    %v2297 = vpop.permute.xlu0 %2296
    %v2299 = vadd.f32 %v2289, %v2297
    %v2300 = vtanh.pop %v2299
    %2302 = vrot.lane.b32.xlu0 %v2300, 64
    %v2303 = vpop.permute.xlu0 %2302
    %v2305 = vmul.f32 %v2287, %v2303
    %2307 = vrot.lane.b32.xlu0 %v2199, 32
    %v2308 = vpop.permute.xlu0 %2307
    %v2310 = vrot.slane %v2093, 4
    %2311 = vrot.lane.b32.xlu0 %v2310, 64
    %v2312 = vpop.permute.xlu0 %2311
    %v2314 = vsel %vm284, %v2308, %v2312
    %v2316 = vrot.slane %v2314, 4
    %v2317 = vsel %vm400, %v2316, 0
    %2319 = vmatprep.subr.mxu0 0.0
    %2320 = vmatpush1.msra.mxu0 %v40
    %2321 = vmatprep.subr.mxu0 0.0
    %2322 = vmatpush1.msra.mxu0 %v41
    %2323 = vmatprep.subr.mxu0 0.0
    %2324 = vmatpush1.msra.mxu0 %v42
    %2325 = vmatprep.subr.mxu0 0.0
    %2326 = vmatpush1.msra.mxu0 %v43
    %2327 = vmatprep.subr.mxu0 0.0
    %2328 = vmatpush1.msra.mxu0 %v44
    %2329 = vmatprep.subr.mxu0 0.0
    %2330 = vmatpush1.msra.mxu0 %v45
    %2331 = vmatprep.subr.mxu0 0.0
    %2332 = vmatpush1.msra.mxu0 %v46
    %2333 = vmatprep.subr.mxu0 0.0
    %2334 = vmatpush1.msra.mxu0 %v47
    %2335 = vmatprep.subr.mxu0 0.0
    %2336 = vmatpush1.msra.mxu0 0.0
    %2337 = vmatprep.subr.mxu0 0.0
    %2338 = vmatpush1.msra.mxu0 0.0
    %2339 = vmatprep.subr.mxu0 0.0
    %2340 = vmatpush1.msra.mxu0 0.0
    %2341 = vmatprep.subr.mxu0 0.0
    %2342 = vmatpush1.msra.mxu0 0.0
    %2343 = vmatprep.subr.mxu0 0.0
    %2344 = vmatpush1.msra.mxu0 0.0
    %2345 = vmatprep.subr.mxu0 0.0
    %2346 = vmatpush1.msra.mxu0 0.0
    %2347 = vmatprep.subr.mxu0 0.0
    %2348 = vmatpush1.msra.mxu0 0.0
    %2349 = vmatprep.subr.mxu0 0.0
    %2350 = vmatpush1.msra.mxu0 0.0
    %2351 = vmatprep.subr.mxu0 0.0
    %2352 = vmatpush1.msra.mxu0 0.0
    %2353 = vmatprep.subr.mxu0 0.0
    %2354 = vmatpush1.msra.mxu0 0.0
    %2355 = vmatprep.subr.mxu0 0.0
    %2356 = vmatpush1.msra.mxu0 0.0
    %2357 = vmatprep.subr.mxu0 0.0
    %2358 = vmatpush1.msra.mxu0 0.0
    %2359 = vmatprep.subr.mxu0 0.0
    %2360 = vmatpush1.msra.mxu0 0.0
    %2361 = vmatprep.subr.mxu0 0.0
    %2362 = vmatpush1.msra.mxu0 0.0
    %2363 = vmatprep.subr.mxu0 0.0
    %2364 = vmatpush1.msra.mxu0 0.0
    %2365 = vmatprep.subr.mxu0 0.0
    %2366 = vmatpush1.msra.mxu0 0.0
    %2367 = vmatprep.subr.mxu0 0.0
    %2368 = vmatpush1.msra.mxu0 0.0
    %2369 = vmatprep.subr.mxu0 0.0
    %2370 = vmatpush1.msra.mxu0 0.0
    %2371 = vmatprep.subr.mxu0 0.0
    %2372 = vmatpush1.msra.mxu0 0.0
    %2373 = vmatprep.subr.mxu0 0.0
    %2374 = vmatpush1.msra.mxu0 0.0
    %2375 = vmatprep.subr.mxu0 0.0
    %2376 = vmatpush1.msra.mxu0 0.0
    %2377 = vmatprep.subr.mxu0 0.0
    %2378 = vmatpush1.msra.mxu0 0.0
    %2379 = vmatprep.subr.mxu0 0.0
    %2380 = vmatpush1.msra.mxu0 0.0
    %2381 = vmatprep.subr.mxu0 0.0
    %2382 = vmatpush1.msra.mxu0 0.0
    %2383 = vmatprep.mubr.f32.mxu0 0.0
    %2384 = vmatmul.mubr.f32.gmra.mrb[0].mxu0 %v2317
    %v2385 = vpop.f32.mrb[0].mxu0
    %v2386 = vadd.f32 %v399, %v2385
    %v2387 = vpop.f32.mrb[0].mxu0
    %2388 = vdwg.mxu0
    %v2389 = vxor.u32 %v2386, 2147483648
    %v2390 = vmul.f32 %v2389, 1.442695
    %v2391 = vpow.pop %v2390
    %v2392 = vadd.f32 %v2391, 1.0
    %v2393 = vrcp.pop %v2392
    %v2394 = vmul.f32 1.0, %v2393
    %v2395 = vtanh.pop %v2386
    %v2396 = vmul.f32 %v2394, %v2087
    %2398 = vrot.lane.b32.xlu0 %v2395, 64
    %v2399 = vpop.permute.xlu0 %2398
    %v2401 = vmul.f32 %v2394, %v2399
    %2403 = vrot.lane.b32.xlu0 %v2401, 32
    %v2404 = vpop.permute.xlu0 %2403
    %v2406 = vadd.f32 %v2396, %v2404
    %v2407 = vtanh.pop %v2406
    %2409 = vrot.lane.b32.xlu0 %v2407, 64
    %v2410 = vpop.permute.xlu0 %2409
    %v2412 = vmul.f32 %v2394, %v2410
    %v2413 = vrot.slane %v2199, 4
    %2414 = vrot.lane.b32.xlu0 %v2413, 32
    %v2415 = vpop.permute.xlu0 %2414
    %v2416 = vsel %vm284, %v2415, 0
    %2418 = vmatprep.subr.mxu0 0.0
    %2419 = vmatpush1.msra.mxu0 %v36
    %2420 = vmatprep.subr.mxu0 0.0
    %2421 = vmatpush1.msra.mxu0 %v37
    %2422 = vmatprep.subr.mxu0 0.0
    %2423 = vmatpush1.msra.mxu0 %v38
    %2424 = vmatprep.subr.mxu0 0.0
    %2425 = vmatpush1.msra.mxu0 %v39
    %2426 = vmatprep.subr.mxu0 0.0
    %2427 = vmatpush1.msra.mxu0 0.0
    %2428 = vmatprep.subr.mxu0 0.0
    %2429 = vmatpush1.msra.mxu0 0.0
    %2430 = vmatprep.subr.mxu0 0.0
    %2431 = vmatpush1.msra.mxu0 0.0
    %2432 = vmatprep.subr.mxu0 0.0
    %2433 = vmatpush1.msra.mxu0 0.0
    %2434 = vmatprep.subr.mxu0 0.0
    %2435 = vmatpush1.msra.mxu0 0.0
    %2436 = vmatprep.subr.mxu0 0.0
    %2437 = vmatpush1.msra.mxu0 0.0
    %2438 = vmatprep.subr.mxu0 0.0
    %2439 = vmatpush1.msra.mxu0 0.0
    %2440 = vmatprep.subr.mxu0 0.0
    %2441 = vmatpush1.msra.mxu0 0.0
    %2442 = vmatprep.subr.mxu0 0.0
    %2443 = vmatpush1.msra.mxu0 0.0
    %2444 = vmatprep.subr.mxu0 0.0
    %2445 = vmatpush1.msra.mxu0 0.0
    %2446 = vmatprep.subr.mxu0 0.0
    %2447 = vmatpush1.msra.mxu0 0.0
    %2448 = vmatprep.subr.mxu0 0.0
    %2449 = vmatpush1.msra.mxu0 0.0
    %2450 = vmatprep.subr.mxu0 0.0
    %2451 = vmatpush1.msra.mxu0 0.0
    %2452 = vmatprep.subr.mxu0 0.0
    %2453 = vmatpush1.msra.mxu0 0.0
    %2454 = vmatprep.subr.mxu0 0.0
    %2455 = vmatpush1.msra.mxu0 0.0
    %2456 = vmatprep.subr.mxu0 0.0
    %2457 = vmatpush1.msra.mxu0 0.0
    %2458 = vmatprep.subr.mxu0 0.0
    %2459 = vmatpush1.msra.mxu0 0.0
    %2460 = vmatprep.subr.mxu0 0.0
    %2461 = vmatpush1.msra.mxu0 0.0
    %2462 = vmatprep.subr.mxu0 0.0
    %2463 = vmatpush1.msra.mxu0 0.0
    %2464 = vmatprep.subr.mxu0 0.0
    %2465 = vmatpush1.msra.mxu0 0.0
    %2466 = vmatprep.subr.mxu0 0.0
    %2467 = vmatpush1.msra.mxu0 0.0
    %2468 = vmatprep.subr.mxu0 0.0
    %2469 = vmatpush1.msra.mxu0 0.0
    %2470 = vmatprep.subr.mxu0 0.0
    %2471 = vmatpush1.msra.mxu0 0.0
    %2472 = vmatprep.subr.mxu0 0.0
    %2473 = vmatpush1.msra.mxu0 0.0
    %2474 = vmatprep.subr.mxu0 0.0
    %2475 = vmatpush1.msra.mxu0 0.0
    %2476 = vmatprep.subr.mxu0 0.0
    %2477 = vmatpush1.msra.mxu0 0.0
    %2478 = vmatprep.subr.mxu0 0.0
    %2479 = vmatpush1.msra.mxu0 0.0
    %2480 = vmatprep.subr.mxu0 0.0
    %2481 = vmatpush1.msra.mxu0 0.0
    %2482 = vmatprep.mubr.f32.mxu0 0.0
    %2483 = vmatmul.mubr.f32.gmra.mrb[0].mxu0 %v2416
    %v2484 = vpop.f32.mrb[0].mxu0
    %v2485 = vadd.f32 0.0, %v2484
    %v2486 = vpop.f32.mrb[0].mxu0
    %2487 = vdwg.mxu0
    %v2489 = vrot.slane %v2485, 2
    %v2491 = vadd.f32 %v270, %v2489
    %v2492 = vxor.u32 %v2491, 2147483648
    %v2493 = vmul.f32 %v2492, 1.442695
    %v2494 = vpow.pop %v2493
    %v2495 = vadd.f32 %v2494, 1.0
    %v2496 = vrcp.pop %v2495
    %v2497 = vmul.f32 1.0, %v2496
    %v2498 = vtanh.pop %v2491
    %v2500 = vrot.slane %v2193, 6
    %v2502 = vmul.f32 %v2497, %v2500
    %2504 = vrot.lane.b32.xlu0 %v2498, 64
    %v2505 = vpop.permute.xlu0 %2504
    %v2507 = vmul.f32 %v2497, %v2505
    %2509 = vrot.lane.b32.xlu0 %v2507, 32
    %v2510 = vpop.permute.xlu0 %2509
    %v2512 = vadd.f32 %v2502, %v2510
    %v2513 = vtanh.pop %v2512
    %2515 = vrot.lane.b32.xlu0 %v2513, 64
    %v2516 = vpop.permute.xlu0 %2515
    %v2518 = vmul.f32 %v2497, %v2516
    %2520 = vrot.lane.b32.xlu0 %v2412, 32
    %v2521 = vpop.permute.xlu0 %2520
    %2524 = vrot.lane.b32.xlu0 %v2305, 64
    %v2525 = vpop.permute.xlu0 %2524
    %v2527 = vsel %vm284, %v2521, %v2525
    %v2529 = vsel %vm400, %v2527, 0
    %2531 = vmatprep.subr.mxu0 0.0
    %2532 = vmatpush1.msra.mxu0 %v48
    %2533 = vmatprep.subr.mxu0 0.0
    %2534 = vmatpush1.msra.mxu0 %v49
    %2535 = vmatprep.subr.mxu0 0.0
    %2536 = vmatpush1.msra.mxu0 %v50
    %2537 = vmatprep.subr.mxu0 0.0
    %2538 = vmatpush1.msra.mxu0 %v51
    %2539 = vmatprep.subr.mxu0 0.0
    %2540 = vmatpush1.msra.mxu0 %v52
    %2541 = vmatprep.subr.mxu0 0.0
    %2542 = vmatpush1.msra.mxu0 %v53
    %2543 = vmatprep.subr.mxu0 0.0
    %2544 = vmatpush1.msra.mxu0 %v54
    %2545 = vmatprep.subr.mxu0 0.0
    %2546 = vmatpush1.msra.mxu0 %v55
    %2547 = vmatprep.subr.mxu0 0.0
    %2548 = vmatpush1.msra.mxu0 0.0
    %2549 = vmatprep.subr.mxu0 0.0
    %2550 = vmatpush1.msra.mxu0 0.0
    %2551 = vmatprep.subr.mxu0 0.0
    %2552 = vmatpush1.msra.mxu0 0.0
    %2553 = vmatprep.subr.mxu0 0.0
    %2554 = vmatpush1.msra.mxu0 0.0
    %2555 = vmatprep.subr.mxu0 0.0
    %2556 = vmatpush1.msra.mxu0 0.0
    %2557 = vmatprep.subr.mxu0 0.0
    %2558 = vmatpush1.msra.mxu0 0.0
    %2559 = vmatprep.subr.mxu0 0.0
    %2560 = vmatpush1.msra.mxu0 0.0
    %2561 = vmatprep.subr.mxu0 0.0
    %2562 = vmatpush1.msra.mxu0 0.0
    %2563 = vmatprep.subr.mxu0 0.0
    %2564 = vmatpush1.msra.mxu0 0.0
    %2565 = vmatprep.subr.mxu0 0.0
    %2566 = vmatpush1.msra.mxu0 0.0
    %2567 = vmatprep.subr.mxu0 0.0
    %2568 = vmatpush1.msra.mxu0 0.0
    %2569 = vmatprep.subr.mxu0 0.0
    %2570 = vmatpush1.msra.mxu0 0.0
    %2571 = vmatprep.subr.mxu0 0.0
    %2572 = vmatpush1.msra.mxu0 0.0
    %2573 = vmatprep.subr.mxu0 0.0
    %2574 = vmatpush1.msra.mxu0 0.0
    %2575 = vmatprep.subr.mxu0 0.0
    %2576 = vmatpush1.msra.mxu0 0.0
    %2577 = vmatprep.subr.mxu0 0.0
    %2578 = vmatpush1.msra.mxu0 0.0
    %2579 = vmatprep.subr.mxu0 0.0
    %2580 = vmatpush1.msra.mxu0 0.0
    %2581 = vmatprep.subr.mxu0 0.0
    %2582 = vmatpush1.msra.mxu0 0.0
    %2583 = vmatprep.subr.mxu0 0.0
    %2584 = vmatpush1.msra.mxu0 0.0
    %2585 = vmatprep.subr.mxu0 0.0
    %2586 = vmatpush1.msra.mxu0 0.0
    %2587 = vmatprep.subr.mxu0 0.0
    %2588 = vmatpush1.msra.mxu0 0.0
    %2589 = vmatprep.subr.mxu0 0.0
    %2590 = vmatpush1.msra.mxu0 0.0
    %2591 = vmatprep.subr.mxu0 0.0
    %2592 = vmatpush1.msra.mxu0 0.0
    %2593 = vmatprep.subr.mxu0 0.0
    %2594 = vmatpush1.msra.mxu0 0.0
    %2595 = vmatprep.mubr.f32.mxu0 0.0
    %2596 = vmatmul.mubr.f32.gmra.mrb[0].mxu0 %v2529
    %v2597 = vpop.f32.mrb[0].mxu0
    %v2598 = vadd.f32 %v617, %v2597
    %v2599 = vpop.f32.mrb[0].mxu0
    %2600 = vdwg.mxu0
    %v2601 = vxor.u32 %v2598, 2147483648
    %v2602 = vmul.f32 %v2601, 1.442695
    %v2603 = vpow.pop %v2602
    %v2604 = vadd.f32 %v2603, 1.0
    %v2605 = vrcp.pop %v2604
    %v2606 = vmul.f32 1.0, %v2605
    %v2607 = vtanh.pop %v2598
    %v2608 = vmul.f32 %v2606, %v2299
    %2610 = vrot.lane.b32.xlu0 %v2607, 64
    %v2611 = vpop.permute.xlu0 %2610
    %v2613 = vmul.f32 %v2606, %v2611
    %2615 = vrot.lane.b32.xlu0 %v2613, 32
    %v2616 = vpop.permute.xlu0 %2615
    %v2618 = vadd.f32 %v2608, %v2616
    %v2619 = vtanh.pop %v2618
    %2621 = vrot.lane.b32.xlu0 %v2619, 64
    %v2622 = vpop.permute.xlu0 %2621
    %v2624 = vmul.f32 %v2606, %v2622
    %2626 = vrot.lane.b32.xlu0 %v2518, 32
    %v2627 = vpop.permute.xlu0 %2626
    %v2629 = vrot.slane %v2412, 2
    %2630 = vrot.lane.b32.xlu0 %v2629, 64
    %v2631 = vpop.permute.xlu0 %2630
    %v2633 = vsel %vm284, %v2627, %v2631
    %v2635 = vrot.slane %v2633, 6
    %v2636 = vsel %vm400, %v2635, 0
    %2638 = vmatprep.subr.mxu0 0.0
    %2639 = vmatpush1.msra.mxu0 %v40
    %2640 = vmatprep.subr.mxu0 0.0
    %2641 = vmatpush1.msra.mxu0 %v41
    %2642 = vmatprep.subr.mxu0 0.0
    %2643 = vmatpush1.msra.mxu0 %v42
    %2644 = vmatprep.subr.mxu0 0.0
    %2645 = vmatpush1.msra.mxu0 %v43
    %2646 = vmatprep.subr.mxu0 0.0
    %2647 = vmatpush1.msra.mxu0 %v44
    %2648 = vmatprep.subr.mxu0 0.0
    %2649 = vmatpush1.msra.mxu0 %v45
    %2650 = vmatprep.subr.mxu0 0.0
    %2651 = vmatpush1.msra.mxu0 %v46
    %2652 = vmatprep.subr.mxu0 0.0
    %2653 = vmatpush1.msra.mxu0 %v47
    %2654 = vmatprep.subr.mxu0 0.0
    %2655 = vmatpush1.msra.mxu0 0.0
    %2656 = vmatprep.subr.mxu0 0.0
    %2657 = vmatpush1.msra.mxu0 0.0
    %2658 = vmatprep.subr.mxu0 0.0
    %2659 = vmatpush1.msra.mxu0 0.0
    %2660 = vmatprep.subr.mxu0 0.0
    %2661 = vmatpush1.msra.mxu0 0.0
    %2662 = vmatprep.subr.mxu0 0.0
    %2663 = vmatpush1.msra.mxu0 0.0
    %2664 = vmatprep.subr.mxu0 0.0
    %2665 = vmatpush1.msra.mxu0 0.0
    %2666 = vmatprep.subr.mxu0 0.0
    %2667 = vmatpush1.msra.mxu0 0.0
    %2668 = vmatprep.subr.mxu0 0.0
    %2669 = vmatpush1.msra.mxu0 0.0
    %2670 = vmatprep.subr.mxu0 0.0
    %2671 = vmatpush1.msra.mxu0 0.0
    %2672 = vmatprep.subr.mxu0 0.0
    %2673 = vmatpush1.msra.mxu0 0.0
    %2674 = vmatprep.subr.mxu0 0.0
    %2675 = vmatpush1.msra.mxu0 0.0
    %2676 = vmatprep.subr.mxu0 0.0
    %2677 = vmatpush1.msra.mxu0 0.0
    %2678 = vmatprep.subr.mxu0 0.0
    %2679 = vmatpush1.msra.mxu0 0.0
    %2680 = vmatprep.subr.mxu0 0.0
    %2681 = vmatpush1.msra.mxu0 0.0
    %2682 = vmatprep.subr.mxu0 0.0
    %2683 = vmatpush1.msra.mxu0 0.0
    %2684 = vmatprep.subr.mxu0 0.0
    %2685 = vmatpush1.msra.mxu0 0.0
    %2686 = vmatprep.subr.mxu0 0.0
    %2687 = vmatpush1.msra.mxu0 0.0
    %2688 = vmatprep.subr.mxu0 0.0
    %2689 = vmatpush1.msra.mxu0 0.0
    %2690 = vmatprep.subr.mxu0 0.0
    %2691 = vmatpush1.msra.mxu0 0.0
    %2692 = vmatprep.subr.mxu0 0.0
    %2693 = vmatpush1.msra.mxu0 0.0
    %2694 = vmatprep.subr.mxu0 0.0
    %2695 = vmatpush1.msra.mxu0 0.0
    %2696 = vmatprep.subr.mxu0 0.0
    %2697 = vmatpush1.msra.mxu0 0.0
    %2698 = vmatprep.subr.mxu0 0.0
    %2699 = vmatpush1.msra.mxu0 0.0
    %2700 = vmatprep.subr.mxu0 0.0
    %2701 = vmatpush1.msra.mxu0 0.0
    %2702 = vmatprep.mubr.f32.mxu0 0.0
    %2703 = vmatmul.mubr.f32.gmra.mrb[0].mxu0 %v2636
    %v2704 = vpop.f32.mrb[0].mxu0
    %v2705 = vadd.f32 %v399, %v2704
    %v2706 = vpop.f32.mrb[0].mxu0
    %2707 = vdwg.mxu0
    %v2708 = vxor.u32 %v2705, 2147483648
    %v2709 = vmul.f32 %v2708, 1.442695
    %v2710 = vpow.pop %v2709
    %v2711 = vadd.f32 %v2710, 1.0
    %v2712 = vrcp.pop %v2711
    %v2713 = vmul.f32 1.0, %v2712
    %v2714 = vtanh.pop %v2705
    %v2715 = vmul.f32 %v2713, %v2406
    %2717 = vrot.lane.b32.xlu0 %v2714, 64
    %v2718 = vpop.permute.xlu0 %2717
    %v2720 = vmul.f32 %v2713, %v2718
    %2722 = vrot.lane.b32.xlu0 %v2720, 32
    %v2723 = vpop.permute.xlu0 %2722
    %v2725 = vadd.f32 %v2715, %v2723
    %v2726 = vtanh.pop %v2725
    %2728 = vrot.lane.b32.xlu0 %v2726, 64
    %v2729 = vpop.permute.xlu0 %2728
    %v2731 = vmul.f32 %v2713, %v2729
    %2733 = vrot.lane.b32.xlu0 %v2731, 32
    %v2734 = vpop.permute.xlu0 %2733
    %2737 = vrot.lane.b32.xlu0 %v2624, 64
    %v2738 = vpop.permute.xlu0 %2737
    %v2740 = vsel %vm284, %v2734, %v2738
    %v2742 = vsel %vm400, %v2740, 0
    %2744 = vmatprep.subr.mxu0 0.0
    %2745 = vmatpush1.msra.mxu0 %v48
    %2746 = vmatprep.subr.mxu0 0.0
    %2747 = vmatpush1.msra.mxu0 %v49
    %2748 = vmatprep.subr.mxu0 0.0
    %2749 = vmatpush1.msra.mxu0 %v50
    %2750 = vmatprep.subr.mxu0 0.0
    %2751 = vmatpush1.msra.mxu0 %v51
    %2752 = vmatprep.subr.mxu0 0.0
    %2753 = vmatpush1.msra.mxu0 %v52
    %2754 = vmatprep.subr.mxu0 0.0
    %2755 = vmatpush1.msra.mxu0 %v53
    %2756 = vmatprep.subr.mxu0 0.0
    %2757 = vmatpush1.msra.mxu0 %v54
    %2758 = vmatprep.subr.mxu0 0.0
    %2759 = vmatpush1.msra.mxu0 %v55
    %2760 = vmatprep.subr.mxu0 0.0
    %2761 = vmatpush1.msra.mxu0 0.0
    %2762 = vmatprep.subr.mxu0 0.0
    %2763 = vmatpush1.msra.mxu0 0.0
    %2764 = vmatprep.subr.mxu0 0.0
    %2765 = vmatpush1.msra.mxu0 0.0
    %2766 = vmatprep.subr.mxu0 0.0
    %2767 = vmatpush1.msra.mxu0 0.0
    %2768 = vmatprep.subr.mxu0 0.0
    %2769 = vmatpush1.msra.mxu0 0.0
    %2770 = vmatprep.subr.mxu0 0.0
    %2771 = vmatpush1.msra.mxu0 0.0
    %2772 = vmatprep.subr.mxu0 0.0
    %2773 = vmatpush1.msra.mxu0 0.0
    %2774 = vmatprep.subr.mxu0 0.0
    %2775 = vmatpush1.msra.mxu0 0.0
    %2776 = vmatprep.subr.mxu0 0.0
    %2777 = vmatpush1.msra.mxu0 0.0
    %2778 = vmatprep.subr.mxu0 0.0
    %2779 = vmatpush1.msra.mxu0 0.0
    %2780 = vmatprep.subr.mxu0 0.0
    %2781 = vmatpush1.msra.mxu0 0.0
    %2782 = vmatprep.subr.mxu0 0.0
    %2783 = vmatpush1.msra.mxu0 0.0
    %2784 = vmatprep.subr.mxu0 0.0
    %2785 = vmatpush1.msra.mxu0 0.0
    %2786 = vmatprep.subr.mxu0 0.0
    %2787 = vmatpush1.msra.mxu0 0.0
    %2788 = vmatprep.subr.mxu0 0.0
    %2789 = vmatpush1.msra.mxu0 0.0
    %2790 = vmatprep.subr.mxu0 0.0
    %2791 = vmatpush1.msra.mxu0 0.0
    %2792 = vmatprep.subr.mxu0 0.0
    %2793 = vmatpush1.msra.mxu0 0.0
    %2794 = vmatprep.subr.mxu0 0.0
    %2795 = vmatpush1.msra.mxu0 0.0
    %2796 = vmatprep.subr.mxu0 0.0
    %2797 = vmatpush1.msra.mxu0 0.0
    %2798 = vmatprep.subr.mxu0 0.0
    %2799 = vmatpush1.msra.mxu0 0.0
    %2800 = vmatprep.subr.mxu0 0.0
    %2801 = vmatpush1.msra.mxu0 0.0
    %2802 = vmatprep.subr.mxu0 0.0
    %2803 = vmatpush1.msra.mxu0 0.0
    %2804 = vmatprep.subr.mxu0 0.0
    %2805 = vmatpush1.msra.mxu0 0.0
    %2806 = vmatprep.subr.mxu0 0.0
    %2807 = vmatpush1.msra.mxu0 0.0
    %2808 = vmatprep.mubr.f32.mxu0 0.0
    %2809 = vmatmul.mubr.f32.gmra.mrb[0].mxu0 %v2742
    %v2810 = vpop.f32.mrb[0].mxu0
    %v2811 = vadd.f32 %v617, %v2810
    %v2812 = vpop.f32.mrb[0].mxu0
    %2813 = vdwg.mxu0
    %v2814 = vxor.u32 %v2811, 2147483648
    %v2815 = vmul.f32 %v2814, 1.442695
    %v2816 = vpow.pop %v2815
    %v2817 = vadd.f32 %v2816, 1.0
    %v2818 = vrcp.pop %v2817
    %v2819 = vmul.f32 1.0, %v2818
    %v2820 = vtanh.pop %v2811
    %v2821 = vmul.f32 %v2819, %v2618
    %2823 = vrot.lane.b32.xlu0 %v2820, 64
    %v2824 = vpop.permute.xlu0 %2823
    %v2826 = vmul.f32 %v2819, %v2824
    %2828 = vrot.lane.b32.xlu0 %v2826, 32
    %v2829 = vpop.permute.xlu0 %2828
    %v2831 = vadd.f32 %v2821, %v2829
    %v2832 = vtanh.pop %v2831
    %2834 = vrot.lane.b32.xlu0 %v2832, 64
    %v2835 = vpop.permute.xlu0 %2834
    %v2837 = vmul.f32 %v2819, %v2835
    %v2838 = vrot.slane %v1037, 6
    %v2840 = vrot.slane %v1356, 4
    %v2842 = vrot.slane %v1672, 2
    %v2844 = vrot.slane %v2305, 6
    %v2846 = vrot.slane %v2624, 4
    %v2849 = vrot.slane %v2837, 2
    %vm2851 = vcmask 1041408
    %v2852 = vsel %vm2851, %v718, %v2838
    %vm2853 = vcmask 1043456
    %v2854 = vsel %vm2853, %v2852, %v2840
    %vm2855 = vcmask 1045504
    %v2856 = vsel %vm2855, %v2854, %v2842
    %v2857 = vsel %vm2851, %v1986, %v2844
    %v2858 = vsel %vm2853, %v2857, %v2846
    %v2859 = vsel %vm2855, %v2858, %v2849
    %2862 = vrot.lane.b32.xlu0 %v2856, 32
    %v2863 = vpop.permute.xlu0 %2862
    %2864 = vrot.lane.b32.xlu0 %v2859, 32
    %v2865 = vpop.permute.xlu0 %2864
    %v2869 = vsel %vm191, %v189, 0
    %v2872 = vsel %vm191, %v190, 0
    %2874 = vmatprep.subr.mxu0 0.0
    %2875 = vmatpush1.msra.mxu0 %v2863
    %2876 = vmatprep.subr.mxu0 0.0
    %2877 = vmatpush1.msra.mxu0 %v2865
    %2878 = vmatprep.subr.mxu0 0.0
    %2879 = vmatpush1.msra.mxu0 0.0
    %2880 = vmatprep.subr.mxu0 0.0
    %2881 = vmatpush1.msra.mxu0 0.0
    %2882 = vmatprep.subr.mxu0 0.0
    %2883 = vmatpush1.msra.mxu0 0.0
    %2884 = vmatprep.subr.mxu0 0.0
    %2885 = vmatpush1.msra.mxu0 0.0
    %2886 = vmatprep.subr.mxu0 0.0
    %2887 = vmatpush1.msra.mxu0 0.0
    %2888 = vmatprep.subr.mxu0 0.0
    %2889 = vmatpush1.msra.mxu0 0.0
    %2890 = vmatprep.subr.mxu0 0.0
    %2891 = vmatpush1.msra.mxu0 0.0
    %2892 = vmatprep.subr.mxu0 0.0
    %2893 = vmatpush1.msra.mxu0 0.0
    %2894 = vmatprep.subr.mxu0 0.0
    %2895 = vmatpush1.msra.mxu0 0.0
    %2896 = vmatprep.subr.mxu0 0.0
    %2897 = vmatpush1.msra.mxu0 0.0
    %2898 = vmatprep.subr.mxu0 0.0
    %2899 = vmatpush1.msra.mxu0 0.0
    %2900 = vmatprep.subr.mxu0 0.0
    %2901 = vmatpush1.msra.mxu0 0.0
    %2902 = vmatprep.subr.mxu0 0.0
    %2903 = vmatpush1.msra.mxu0 0.0
    %2904 = vmatprep.subr.mxu0 0.0
    %2905 = vmatpush1.msra.mxu0 0.0
    %2906 = vmatprep.subr.mxu0 0.0
    %2907 = vmatpush1.msra.mxu0 0.0
    %2908 = vmatprep.subr.mxu0 0.0
    %2909 = vmatpush1.msra.mxu0 0.0
    %2910 = vmatprep.subr.mxu0 0.0
    %2911 = vmatpush1.msra.mxu0 0.0
    %2912 = vmatprep.subr.mxu0 0.0
    %2913 = vmatpush1.msra.mxu0 0.0
    %2914 = vmatprep.subr.mxu0 0.0
    %2915 = vmatpush1.msra.mxu0 0.0
    %2916 = vmatprep.subr.mxu0 0.0
    %2917 = vmatpush1.msra.mxu0 0.0
    %2918 = vmatprep.subr.mxu0 0.0
    %2919 = vmatpush1.msra.mxu0 0.0
    %2920 = vmatprep.subr.mxu0 0.0
    %2921 = vmatpush1.msra.mxu0 0.0
    %2922 = vmatprep.subr.mxu0 0.0
    %2923 = vmatpush1.msra.mxu0 0.0
    %2924 = vmatprep.subr.mxu0 0.0
    %2925 = vmatpush1.msra.mxu0 0.0
    %2926 = vmatprep.subr.mxu0 0.0
    %2927 = vmatpush1.msra.mxu0 0.0
    %2928 = vmatprep.subr.mxu0 0.0
    %2929 = vmatpush1.msra.mxu0 0.0
    %2930 = vmatprep.subr.mxu0 0.0
    %2931 = vmatpush1.msra.mxu0 0.0
    %2932 = vmatprep.subr.mxu0 0.0
    %2933 = vmatpush1.msra.mxu0 0.0
    %2934 = vmatprep.subr.mxu0 0.0
    %2935 = vmatpush1.msra.mxu0 0.0
    %2936 = vmatprep.subr.mxu0 0.0
    %2937 = vmatpush1.msra.mxu0 0.0
    %2938 = vmatprep.mubr.f32.mxu0 0.0
    %2939 = vmatmul.mubr.f32.gmra.mrb[0].mxu0 %v2869
    %v2940 = vpop.f32.mrb[0].mxu0
    %v2941 = vadd.f32 0.0, %v2940
    %v2942 = vpop.f32.mrb[0].mxu0
    %2943 = vmatprep.mubr.f32.mxu0 0.0
    %2944 = vmatmul.mubr.f32.gmra.mrb[0].mxu0 %v2872
    %v2945 = vpop.f32.mrb[0].mxu0
    %v2946 = vadd.f32 0.0, %v2945
    %v2947 = vpop.f32.mrb[0].mxu0
    %2948 = vdwg.mxu0
    %v2949 = vlaneseq
    %v2950 = vshrl.u32 %v2949, 7
    %v2951 = vsub.s32 0, %v2950
    %v2952 = vrot.slane %v63, %v2951
    %v2954 = vsel %vm284, %v2941, 0
    %v2957 = vsel %vm284, %v2946, 0
    %2959 = vmatprep.subr.mxu0 0.0
    %2960 = vmatpush1.msra.mxu0 %v59
    %2961 = vmatprep.subr.mxu0 0.0
    %2962 = vmatpush1.msra.mxu0 %v60
    %2963 = vmatprep.subr.mxu0 0.0
    %2964 = vmatpush1.msra.mxu0 %v61
    %2965 = vmatprep.subr.mxu0 0.0
    %2966 = vmatpush1.msra.mxu0 %v62
    %2967 = vmatprep.subr.mxu0 0.0
    %2968 = vmatpush1.msra.mxu0 0.0
    %2969 = vmatprep.subr.mxu0 0.0
    %2970 = vmatpush1.msra.mxu0 0.0
    %2971 = vmatprep.subr.mxu0 0.0
    %2972 = vmatpush1.msra.mxu0 0.0
    %2973 = vmatprep.subr.mxu0 0.0
    %2974 = vmatpush1.msra.mxu0 0.0
    %2975 = vmatprep.subr.mxu0 0.0
    %2976 = vmatpush1.msra.mxu0 0.0
    %2977 = vmatprep.subr.mxu0 0.0
    %2978 = vmatpush1.msra.mxu0 0.0
    %2979 = vmatprep.subr.mxu0 0.0
    %2980 = vmatpush1.msra.mxu0 0.0
    %2981 = vmatprep.subr.mxu0 0.0
    %2982 = vmatpush1.msra.mxu0 0.0
    %2983 = vmatprep.subr.mxu0 0.0
    %2984 = vmatpush1.msra.mxu0 0.0
    %2985 = vmatprep.subr.mxu0 0.0
    %2986 = vmatpush1.msra.mxu0 0.0
    %2987 = vmatprep.subr.mxu0 0.0
    %2988 = vmatpush1.msra.mxu0 0.0
    %2989 = vmatprep.subr.mxu0 0.0
    %2990 = vmatpush1.msra.mxu0 0.0
    %2991 = vmatprep.subr.mxu0 0.0
    %2992 = vmatpush1.msra.mxu0 0.0
    %2993 = vmatprep.subr.mxu0 0.0
    %2994 = vmatpush1.msra.mxu0 0.0
    %2995 = vmatprep.subr.mxu0 0.0
    %2996 = vmatpush1.msra.mxu0 0.0
    %2997 = vmatprep.subr.mxu0 0.0
    %2998 = vmatpush1.msra.mxu0 0.0
    %2999 = vmatprep.subr.mxu0 0.0
    %3000 = vmatpush1.msra.mxu0 0.0
    %3001 = vmatprep.subr.mxu0 0.0
    %3002 = vmatpush1.msra.mxu0 0.0
    %3003 = vmatprep.subr.mxu0 0.0
    %3004 = vmatpush1.msra.mxu0 0.0
    %3005 = vmatprep.subr.mxu0 0.0
    %3006 = vmatpush1.msra.mxu0 0.0
    %3007 = vmatprep.subr.mxu0 0.0
    %3008 = vmatpush1.msra.mxu0 0.0
    %3009 = vmatprep.subr.mxu0 0.0
    %3010 = vmatpush1.msra.mxu0 0.0
    %3011 = vmatprep.subr.mxu0 0.0
    %3012 = vmatpush1.msra.mxu0 0.0
    %3013 = vmatprep.subr.mxu0 0.0
    %3014 = vmatpush1.msra.mxu0 0.0
    %3015 = vmatprep.subr.mxu0 0.0
    %3016 = vmatpush1.msra.mxu0 0.0
    %3017 = vmatprep.subr.mxu0 0.0
    %3018 = vmatpush1.msra.mxu0 0.0
    %3019 = vmatprep.subr.mxu0 0.0
    %3020 = vmatpush1.msra.mxu0 0.0
    %3021 = vmatprep.subr.mxu0 0.0
    %3022 = vmatpush1.msra.mxu0 0.0
    %3023 = vmatprep.mubr.f32.mxu0 0.0
    %3024 = vmatmul.mubr.f32.gmra.mrb[0].mxu0 %v2954
    %v3025 = vpop.f32.mrb[0].mxu0
    %v3026 = vadd.f32 %v2952, %v3025
    %v3027 = vpop.f32.mrb[0].mxu0
    %3028 = vmatprep.mubr.f32.mxu0 0.0
    %3029 = vmatmul.mubr.f32.gmra.mrb[0].mxu0 %v2957
    %v3030 = vpop.f32.mrb[0].mxu0
    %v3031 = vadd.f32 %v2952, %v3030
    %v3032 = vpop.f32.mrb[0].mxu0
    %3033 = vdwg.mxu0
    %3034 = vst.msk [vmem:[#allocation5] sm:$0xff] %vm82, %v3026
    %3035 = vst.msk [vmem:[#allocation5 + $0x8] sm:$0xff] %vm82, %v3031
    %vm3036 = vcmask 261126
    %3037 = vst.msk [vmem:[%s4 - $0x6] sm:$0xc0] %vm3036, %v2627
    %3039 = vrot.lane.b32.xlu0 %v2512, 96
    %v3040 = vpop.permute.xlu0 %3039
    %s3042 = scalar_lea.vmem %s4, 6
    %3043 = vst.msk [vmem:[%s3042 - $0x6] sm:$0xc0] %vm3036, %v3040
    %s3044 = scalar_lea.vmem %s4, 2
    %vm3045 = vcmask 254976
    %3046 = vst.msk [vmem:[%s3044] sm:$0x3] %vm3045, %v2734
    %3048 = vrot.lane.b32.xlu0 %v2725, 96
    %v3049 = vpop.permute.xlu0 %3048
    %s3051 = scalar_lea.vmem %s4, 8
    %3052 = vst.msk [vmem:[%s3051] sm:$0x3] %vm3045, %v3049
    %3053 = vrot.lane.b32.xlu0 %v2837, 32
    %v3054 = vpop.permute.xlu0 %3053
    %s3056 = scalar_lea.vmem %s4, 4
    %3057 = vst.msk [vmem:[%s3056] sm:$0x3] %vm3045, %v3054
    %3059 = vrot.lane.b32.xlu0 %v2831, 96
    %v3060 = vpop.permute.xlu0 %3059
    %s3062 = scalar_lea.vmem %s4, 10
    %3063 = vst.msk [vmem:[%s3062] sm:$0x3] %vm3045, %v3060
    // Predicated region
    $region18: #{rnn_lm_forward.1} parent=1 // pred_check
      _
    $region19: #{rnn_lm_forward.1} parent=1 // pred_check_branch
      %3065 = sbr.rel (0) target = $region21
    $region20: #{rnn_lm_forward.1} parent=1 // pred_region
      %s3067 = ssub.s32 256, 256
      %3068 = vsyncadd [#allocation4], %s3067
      %s3069 = sshll.u32 [#allocation5], 4
      %s3070 = int_to_ptr.vmem [resolvable:$true] %s3069
      %3075 = dma.vmem_to_hbm [thread:$0]  %s3070, 256, %s3, [#allocation4], 128, 128, 8
    $region21: #{rnn_lm_forward.1} parent=1 // pred_fallthru
      _
    // Predicated region
    $region22: #{rnn_lm_forward.1} parent=1 // pred_check
      _
    $region23: #{rnn_lm_forward.1} parent=1 // pred_check_branch
      %3077 = sbr.rel (0) target = $region25
    $region24: #{rnn_lm_forward.1} parent=1 // pred_region
      _
    $region25: #{rnn_lm_forward.1} parent=1 // pred_fallthru
      _
    // Predicated region
    $region26: #{rnn_lm_forward.1} parent=1 // pred_check
      _
    $region27: #{rnn_lm_forward.1} parent=1 // pred_check_branch
      %3079 = sbr.rel (0) target = $region29
    $region28: #{rnn_lm_forward.1} parent=1 // pred_region
      %3080 = dma.done [#allocation4], 256
    $region29: #{rnn_lm_forward.1} parent=1 // pred_fallthru
      _
    // Predicated region
    $region30: #{rnn_lm_forward.1} parent=1 // pred_check
      _
    $region31: #{rnn_lm_forward.1} parent=1 // pred_check_branch
      %3082 = sbr.rel (0) target = $region33
    $region32: #{rnn_lm_forward.1} parent=1 // pred_region
      _
    $region33: #{rnn_lm_forward.1} parent=1 // pred_fallthru
      _
    %3083 = vsyncpa [#allocation3], 1
    %3084 = vsyncpa [#allocation4], 1

</llo_original>
